<compile_context>
chip_gen: v7x
topology: tpu7x:2x2x1
jax: 0.10.0
libtpu: 0.0.40
codegen_flags: <defaults>
</compile_context>

<pallas_src>
import jax
import jax.numpy as jnp
from jax import lax
from jax.experimental import pallas as pl
from jax.experimental.pallas import tpu as pltpu

CLASSES = ['baby_visible', 'ventilation', 'stimulation', 'suction']
NUM_LABELS = len(CLASSES)

LANE_PAD = 128   # pad classifier output to a full lane group (lane-dense store)


def _pool_classify_kernel(h_ref, m_ref, r_ref, w_ref, b_ref, o_ref, acc_ref):
    """One grid step = one (batch-tile, sequence-tile) pair.

    h_ref:   (TB, TS, H)    bf16  hidden-state tile
    m_ref:   (TB, 1, TS)    bf16  video-token mask tile (0/1)
    r_ref:   (TB, 1)        f32   exact reciprocal of clamped token counts
    w_ref:   (H, LANE_PAD)  f32   classifier weight, zero-padded columns
    b_ref:   (1, LANE_PAD)  f32   classifier bias, zero-padded
    o_ref:   (TB, LANE_PAD) f32   sigmoid(logits), lane-dense
    acc_ref: (TB, 1, H)     f32   VMEM scratch accumulator
    """
    k = pl.program_id(1)

    @pl.when(k == 0)
    def _init():
        acc_ref[...] = jnp.zeros_like(acc_ref)

    # Masked partial sum over this sequence tile on the MXU:
    #   (TB, 1, TS) bf16  x  (TB, TS, H) bf16  --contract TS, batch TB-->
    #   (TB, 1, H) f32 accumulated in VMEM scratch.
    acc_ref[...] += lax.dot_general(
        m_ref[...], h_ref[...],
        dimension_numbers=(((2,), (1,)), ((0,), (0,))),
        preferred_element_type=jnp.float32)

    # Finalize once per batch tile: mean (multiply by exact reciprocal),
    # classifier head, sigmoid, lane-dense store.
    @pl.when(k == pl.num_programs(1) - 1)
    def _finalize():
        pooled = acc_ref[...][:, 0, :] * r_ref[...]          # (TB, H) f32
        logits = jnp.dot(pooled, w_ref[...],
                         preferred_element_type=jnp.float32) + b_ref[...]
        o_ref[...] = jax.nn.sigmoid(logits)                   # (TB, LANE_PAD)


def _choose_tiles(B, S, H, itemsize):
    """Generation-aware (TB, TS, vmem_limit) selection.

    v5e / v6e (128 MiB VMEM): hidden block up to 16 MiB, 64 MiB scoped limit.
    v7x       ( 64 MiB VMEM): hidden block up to  8 MiB, 44 MiB scoped limit.
    TB is capped at B//2 (for B >= 2) so the parallel batch-grid axis always
    has >= 2 entries (keeps both v7x TensorCores busy).
    """
    try:
        vmem_cap = int(pltpu.get_tpu_info().vmem_capacity_bytes)
    except Exception:
        vmem_cap = 64 * 1024 * 1024                    # conservative fallback
    if vmem_cap >= 96 * 1024 * 1024:                   # v5e / v6e
        hidden_budget = 16 * 1024 * 1024
        vmem_limit = 64 * 1024 * 1024
    else:                                              # v7x
        hidden_budget = 8 * 1024 * 1024
        vmem_limit = 44 * 1024 * 1024

    tb_cap = max(min(8, B // 2), 1)
    TB = next(t for t in range(tb_cap, 0, -1) if B % t == 0)
    # Shrink the row batch only if even a 128-wide sequence tile would not fit.
    while TB > 1 and TB * 128 * H * itemsize > hidden_budget:
        TB = next(t for t in range(TB - 1, 0, -1) if B % t == 0)

    # Largest multiple-of-128 sequence tile whose hidden block fits the budget
    # (never larger than S rounded up to 128 -- the wrapper pads S to TS).
    s_pad128 = ((S + 127) // 128) * 128
    ts_cap = max(hidden_budget // (TB * H * itemsize), 128)
    TS = max((ts_cap // 128) * 128, 128)
    TS = min(TS, s_pad128)
    return TB, TS, vmem_limit


def pool_and_classify(last_hidden, video_token_mask, w, b, *, seq_tile=None):
    """Masked mean pooling + linear head + sigmoid via a single pallas_call."""
    B, S, H = last_hidden.shape
    TB, TS, vmem_limit = _choose_tiles(B, S, H, last_hidden.dtype.itemsize)
    if seq_tile is not None:          # testing knob: force a smaller seq tile
        TS = seq_tile

    # torch: video_token_mask.sum(1, keepdim=True).clamp(min=1) -- exact f32
    # reciprocal precomputed once in the wrapper (no per-tile divide in-kernel).
    mask_f32 = video_token_mask.astype(jnp.float32)
    inv_count = 1.0 / jnp.maximum(jnp.sum(mask_f32, axis=1, keepdims=True), 1.0)

    # 0/1 mask in the hidden dtype (bf16 is exact for 0/1), laid out (B, 1, S)
    # so the in-kernel MXU contraction is a standard batched matmul.
    mask_ld = video_token_mask.astype(last_hidden.dtype).reshape(B, 1, S)

    # Pad S to a multiple of TS with zeros; padded positions have mask 0 and
    # therefore contribute nothing to the pooled sum.
    S_pad = ((S + TS - 1) // TS) * TS
    if S_pad != S:
        last_hidden = jnp.pad(last_hidden, ((0, 0), (0, S_pad - S), (0, 0)))
        mask_ld = jnp.pad(mask_ld, ((0, 0), (0, 0), (0, S_pad - S)))

    # Zero-pad the 4-wide head to 128 lanes for an unmasked lane-dense store.
    # Kept in f32 to exactly match torch's f32 classifier.
    w_pad = jnp.zeros((H, LANE_PAD), jnp.float32).at[:, :NUM_LABELS].set(
        w.astype(jnp.float32))
    b_pad = jnp.zeros((1, LANE_PAD), jnp.float32).at[0, :NUM_LABELS].set(
        b.astype(jnp.float32))

    out = pl.pallas_call(
        _pool_classify_kernel,
        out_shape=jax.ShapeDtypeStruct((B, LANE_PAD), jnp.float32),
        grid_spec=pltpu.PrefetchScalarGridSpec(
            num_scalar_prefetch=0,
            grid=(B // TB, S_pad // TS),            # reduction (sequence) axis last
            in_specs=[
                pl.BlockSpec((TB, TS, H), lambda i, k: (i, k, 0)),   # hidden (bf16)
                pl.BlockSpec((TB, 1, TS), lambda i, k: (i, 0, k)),   # mask (bf16)
                pl.BlockSpec((TB, 1), lambda i, k: (i, 0)),          # 1/clamped count
                pl.BlockSpec((H, LANE_PAD), lambda i, k: (0, 0)),    # classifier W
                pl.BlockSpec((1, LANE_PAD), lambda i, k: (0, 0)),    # classifier b
            ],
            out_specs=pl.BlockSpec((TB, LANE_PAD), lambda i, k: (i, 0)),
            scratch_shapes=[pltpu.VMEM((TB, 1, H), jnp.float32)],
        ),
        compiler_params=pltpu.CompilerParams(
            dimension_semantics=("parallel", "arbitrary"),
            vmem_limit_bytes=vmem_limit,
        ),
    )(last_hidden, mask_ld, inv_count, w_pad, b_pad)

    return out[:, :NUM_LABELS]


def synthetic_backbone(pixel_values_videos, input_ids, attention_mask,
                       embed, vis_proj):
    # TODO(synk): the real LlavaNextVideoForConditionalGeneration backbone
    # (vision tower + multimodal projector + LLM) has no clean Pallas
    # equivalent here; replaced by a deterministic synthetic stand-in that
    # emits `last_hidden` of shape [B, S, H] in bf16 (the backbone's native
    # activation dtype), so the kernel ingests the bandwidth-optimal layout.
    tok = embed[input_ids]                                          # (B, S, H)
    vis = jnp.mean(pixel_values_videos, axis=(1, 2, 3, 4))          # (B,)
    last_hidden = (tok * attention_mask[..., None].astype(tok.dtype)
                   + vis[:, None, None] * vis_proj[None, None, :])
    return last_hidden.astype(jnp.bfloat16)


def llava_video_classifier_forward(pixel_values_videos, input_ids,
                                   attention_mask, video_token_mask, params):
    last_hidden = synthetic_backbone(pixel_values_videos, input_ids,
                                     attention_mask,
                                     params["embed"], params["vis_proj"])
    return pool_and_classify(last_hidden, video_token_mask,
                             params["cls_w"], params["cls_b"])


if __name__ == "__main__":
    # Small, self-consistent shapes.  S=1000 is deliberately not a multiple of
    # 128 to exercise the sequence-padding path; the second call forces a
    # 256-wide sequence tile so the accumulator init/accumulate/finalize path
    # runs over 4 reduction steps.
    B, S, H = 16, 1000, 32       # batch, sequence length, hidden size
    T, C, HP, WP = 3, 3, 8, 8    # frames, channels, spatial
    VOCAB = 64

    key = jax.random.PRNGKey(0)
    k_px, k_ids, k_mask, k_emb, k_vis, k_w, k_b = jax.random.split(key, 7)

    pixel_values_videos = jax.random.normal(k_px, (B, T, C, HP, WP), jnp.float32)
    input_ids = jax.random.randint(k_ids, (B, S), 0, VOCAB, jnp.int32)
    attention_mask = jnp.ones((B, S), jnp.float32)
    video_token_mask = (jax.random.uniform(k_mask, (B, S)) > 0.5).astype(jnp.float32)

    params = {
        # synthetic backbone parameters (deterministic stand-in)
        "embed": jax.random.normal(k_emb, (VOCAB, H), jnp.float32) * 0.02,
        "vis_proj": jax.random.normal(k_vis, (H,), jnp.float32) * 0.02,
        # classifier head: nn.Linear(hidden, NUM_LABELS) -> W [H, NUM_LABELS], b [NUM_LABELS]
        "cls_w": jax.random.normal(k_w, (H, NUM_LABELS), jnp.float32) * 0.1,
        "cls_b": jax.random.normal(k_b, (NUM_LABELS,), jnp.float32) * 0.1,
    }

    # 1) Full forward with auto-chosen (production) tiling.
    probs = llava_video_classifier_forward(pixel_values_videos, input_ids,
                                           attention_mask, video_token_mask,
                                           params)
    probs = jax.block_until_ready(probs)

    # 2) Same pooling/head with a forced 256-wide sequence tile (multi-step
    #    reduction + explicit S padding).
    last_hidden = synthetic_backbone(pixel_values_videos, input_ids,
                                     attention_mask,
                                     params["embed"], params["vis_proj"])
    probs_tiled = pool_and_classify(last_hidden, video_token_mask,
                                    params["cls_w"], params["cls_b"],
                                    seq_tile=256)
    probs_tiled = jax.block_until_ready(probs_tiled)

    # Pure-JAX reference for pooling + classifier + sigmoid (same bf16 hidden,
    # f32 accumulation, matching the torch semantics).
    last_hidden_ref = last_hidden.astype(jnp.float32)
    pooled_ref = ((last_hidden_ref * video_token_mask[..., None]).sum(1)
                  / jnp.clip(video_token_mask.sum(1, keepdims=True), 1.0, None))
    logits_ref = pooled_ref @ params["cls_w"] + params["cls_b"]
    probs_ref = jax.nn.sigmoid(logits_ref)

    assert probs.shape == (B, NUM_LABELS)
    assert probs_tiled.shape == (B, NUM_LABELS)
    assert jnp.allclose(probs, probs_ref, atol=1e-5, rtol=1e-5), (probs, probs_ref)
    assert jnp.allclose(probs_tiled, probs_ref, atol=1e-5, rtol=1e-5), (
        probs_tiled, probs_ref)
    print("KERNEL_OK")
</pallas_src>

<mosaic_0001>
module attributes {stable_mosaic.version = 11 : i64} {
  func.func @_pool_classify_kernel(%arg0: i32, %arg1: i32, %arg2: memref<8x1024x32xbf16, #tpu.memory_space<vmem>>, %arg3: memref<8x1x1024xbf16, #tpu.memory_space<vmem>>, %arg4: memref<8x1xf32, #tpu.memory_space<vmem>>, %arg5: memref<32x128xf32, #tpu.memory_space<vmem>>, %arg6: memref<1x128xf32, #tpu.memory_space<vmem>>, %arg7: memref<8x128xf32, #tpu.memory_space<vmem>>, %arg8: memref<8x1x32xf32, #tpu.memory_space<vmem>>) attributes {dimension_semantics = [#tpu.dimension_semantics<parallel>, #tpu.dimension_semantics<arbitrary>], iteration_bounds = array<i64: 2, 1>, scalar_prefetch = 0 : i64, scratch_operands = 1 : i64, tpu.core_type = #tpu.core_type<tc>, window_params = [{transform_indices = @transform_0, window_bounds = array<i64: 8, 1024, 32>}, {transform_indices = @transform_1, window_bounds = array<i64: 8, 1, 1024>}, {transform_indices = @transform_2, window_bounds = array<i64: 8, 1>}, {pipeline_mode = #tpu.pipeline_mode<synchronous>, transform_indices = @transform_3, window_bounds = array<i64: 32, 128>}, {pipeline_mode = #tpu.pipeline_mode<synchronous>, transform_indices = @transform_4, window_bounds = array<i64: 1, 128>}, {transform_indices = @transform_5, window_bounds = array<i64: 8, 128>}]} {
    %c0_i32 = arith.constant 0 : i32
    %0 = arith.cmpi eq, %arg1, %c0_i32 : i32
    %1 = arith.extui %0 : i1 to i32
    %c0_i32_0 = arith.constant 0 : i32
    %2 = arith.cmpi ne, %1, %c0_i32_0 : i32
    scf.if %2 {
      %cst_14 = arith.constant 0.000000e+00 : f32
      %12 = vector.broadcast %cst_14 : f32 to vector<8x1x32xf32>
      %c0_15 = arith.constant 0 : index
      %c0_16 = arith.constant 0 : index
      %c0_17 = arith.constant 0 : index
      %13 = vector.load %arg8[%c0_15, %c0_16, %c0_17] : memref<8x1x32xf32, #tpu.memory_space<vmem>>, vector<8x1x32xf32>
      tpu.vector_store %arg8[%c0_15, %c0_16, %c0_17], %12 {strides = array<i32>} : memref<8x1x32xf32, #tpu.memory_space<vmem>>, vector<8x1x32xf32>,
    } else {
    }
    %c0 = arith.constant 0 : index
    %c0_1 = arith.constant 0 : index
    %c0_2 = arith.constant 0 : index
    %3 = vector.load %arg8[%c0, %c0_1, %c0_2] : memref<8x1x32xf32, #tpu.memory_space<vmem>>, vector<8x1x32xf32>
    %c0_3 = arith.constant 0 : index
    %c0_4 = arith.constant 0 : index
    %c0_5 = arith.constant 0 : index
    %4 = vector.load %arg3[%c0_3, %c0_4, %c0_5] : memref<8x1x1024xbf16, #tpu.memory_space<vmem>>, vector<8x1x1024xbf16>
    %c0_6 = arith.constant 0 : index
    %c0_7 = arith.constant 0 : index
    %c0_8 = arith.constant 0 : index
    %5 = vector.load %arg2[%c0_6, %c0_7, %c0_8] : memref<8x1024x32xbf16, #tpu.memory_space<vmem>>, vector<8x1024x32xbf16>
    %cst = arith.constant dense<0.000000e+00> : vector<8x1x32xf32>
    %6 = tpu.matmul %4, %5, %cst {dimension_numbers = #tpu.dot_dimension_numbers<[2], [1], [1], [2], [0, 0, 0, 1, 1, 2], [0], [0]>} : vector<8x1x1024xbf16>, vector<8x1024x32xbf16>, vector<8x1x32xf32> -> vector<8x1x32xf32>
    %7 = arith.addf %3, %6 : vector<8x1x32xf32>
    %c0_9 = arith.constant 0 : index
    %c0_10 = arith.constant 0 : index
    %c0_11 = arith.constant 0 : index
    %8 = vector.load %arg8[%c0_9, %c0_10, %c0_11] : memref<8x1x32xf32, #tpu.memory_space<vmem>>, vector<8x1x32xf32>
    tpu.vector_store %arg8[%c0_9, %c0_10, %c0_11], %7 {strides = array<i32>} : memref<8x1x32xf32, #tpu.memory_space<vmem>>, vector<8x1x32xf32>,
    %c0_i32_12 = arith.constant 0 : i32
    %9 = arith.cmpi eq, %arg1, %c0_i32_12 : i32
    %10 = arith.extui %9 : i1 to i32
    %c0_i32_13 = arith.constant 0 : i32
    %11 = arith.cmpi ne, %10, %c0_i32_13 : i32
    scf.if %11 {
      %c0_14 = arith.constant 0 : index
      %c0_15 = arith.constant 0 : index
      %c0_16 = arith.constant 0 : index
      %12 = vector.load %arg8[%c0_14, %c0_15, %c0_16] : memref<8x1x32xf32, #tpu.memory_space<vmem>>, vector<8x1x32xf32>
      %13 = vector.shape_cast %12 : vector<8x1x32xf32> to vector<8x32xf32>
      %c0_17 = arith.constant 0 : index
      %c0_18 = arith.constant 0 : index
      %14 = vector.load %arg4[%c0_17, %c0_18] : memref<8x1xf32, #tpu.memory_space<vmem>>, vector<8x1xf32>
      %15 = vector.broadcast %14 : vector<8x1xf32> to vector<8x32xf32>
      %16 = arith.mulf %13, %15 : vector<8x32xf32>
      %c0_19 = arith.constant 0 : index
      %c0_20 = arith.constant 0 : index
      %17 = vector.load %arg5[%c0_19, %c0_20] : memref<32x128xf32, #tpu.memory_space<vmem>>, vector<32x128xf32>
      %cst_21 = arith.constant dense<0.000000e+00> : vector<8x128xf32>
      %18 = tpu.matmul %16, %17, %cst_21 {dimension_numbers = #tpu.dot_dimension_numbers<[1], [0], [0], [1], [0, 0, 1, 1], [], []>} : vector<8x32xf32>, vector<32x128xf32>, vector<8x128xf32> -> vector<8x128xf32>
      %c0_22 = arith.constant 0 : index
      %c0_23 = arith.constant 0 : index
      %19 = vector.load %arg6[%c0_22, %c0_23] : memref<1x128xf32, #tpu.memory_space<vmem>>, vector<1x128xf32>
      %20 = vector.broadcast %19 : vector<1x128xf32> to vector<8x128xf32>
      %21 = arith.addf %18, %20 : vector<8x128xf32>
      %22 = arith.negf %21 : vector<8x128xf32>
      %23 = math.exp %22 : vector<8x128xf32>
      %cst_24 = arith.constant 1.000000e+00 : f32
      %24 = vector.broadcast %cst_24 : f32 to vector<8x128xf32>
      %25 = arith.addf %24, %23 : vector<8x128xf32>
      %26 = arith.divf %24, %25 : vector<8x128xf32>
      %c0_25 = arith.constant 0 : index
      %c0_26 = arith.constant 0 : index
      %27 = vector.load %arg7[%c0_25, %c0_26] : memref<8x128xf32, #tpu.memory_space<vmem>>, vector<8x128xf32>
      tpu.vector_store %arg7[%c0_25, %c0_26], %26 {strides = array<i32>} : memref<8x128xf32, #tpu.memory_space<vmem>>, vector<8x128xf32>,
    } else {
    }
    return
  }
  func.func @transform_0(%arg0: i32, %arg1: i32) -> (i32, i32, i32) {
    %c0_i32 = arith.constant 0 : i32
    %c0_i32_0 = arith.constant 0 : i32
    return %arg0, %arg1, %c0_i32 : i32, i32, i32
  }
  func.func @transform_1(%arg0: i32, %arg1: i32) -> (i32, i32, i32) {
    %c0_i32 = arith.constant 0 : i32
    %c0_i32_0 = arith.constant 0 : i32
    return %arg0, %c0_i32, %arg1 : i32, i32, i32
  }
  func.func @transform_2(%arg0: i32, %arg1: i32) -> (i32, i32) {
    %c0_i32 = arith.constant 0 : i32
    %c0_i32_0 = arith.constant 0 : i32
    return %arg0, %c0_i32 : i32, i32
  }
  func.func @transform_3(%arg0: i32, %arg1: i32) -> (i32, i32) {
    %c0_i32 = arith.constant 0 : i32
    %c0_i32_0 = arith.constant 0 : i32
    %c0_i32_1 = arith.constant 0 : i32
    return %c0_i32, %c0_i32_0 : i32, i32
  }
  func.func @transform_4(%arg0: i32, %arg1: i32) -> (i32, i32) {
    %c0_i32 = arith.constant 0 : i32
    %c0_i32_0 = arith.constant 0 : i32
    %c0_i32_1 = arith.constant 0 : i32
    return %c0_i32, %c0_i32_0 : i32, i32
  }
  func.func @transform_5(%arg0: i32, %arg1: i32) -> (i32, i32) {
    %c0_i32 = arith.constant 0 : i32
    %c0_i32_0 = arith.constant 0 : i32
    return %arg0, %c0_i32 : i32, i32
  }
}

</mosaic_0001>

<llo_original>
// kernel: tpu_custom_call.1
$region0: #{tpu_custom_call.1}
  #allocation0 [shape = 'u32[]', space=smem, size = 0x4, offset = 0x4, fixed_abs, tag = 'smem constant byte address 0x4 - core index']
  #allocation1 [shape = 'u32[144,128]{1,0:T(1,128)}', space=vmem, size = 0x12000, scoped, tag = 'internal scratch']
  #allocation2 [shape = 'f32[8,1,32]{2,1,0:T(1,128)}', space=vmem, size = 0x1000, scoped, tag = 'scratch operand']
  %s0 = inlined_call_operand.vmem [shape: bf16[16,1024,32], index: 0, kind: input, shape index: {}]
  %s1 = inlined_call_operand.vmem [shape: bf16[16,1,1024], index: 1, kind: input, shape index: {}]
  %s2 = inlined_call_operand.vmem [shape: f32[16,1], index: 2, kind: input, shape index: {}]
  %s3 = inlined_call_operand.vmem [shape: f32[32,128], index: 3, kind: input, shape index: {}]
  %s4 = inlined_call_operand.vmem [shape: f32[1,128], index: 4, kind: input, shape index: {}]
  %s5 = inlined_call_operand.hbm [shape: f32[16,128], index: 5, kind: output, shape index: {}]
  %s6 = sld [smem:[#allocation0]]
  $region61: #{tpu_custom_call.1} parent=0
    _
  %s8 = ssub.s32 1, %s6
  %s9 = scalar_select 0, %s8, %s6
  $region1: #{tpu_custom_call.1} parent=0
    #allocation3 [shape = 'u8[8192]{0}', space=vmem, size = 0x2000, scoped, tag = 'output window, operand 0']
    #allocation4 [shape = 's32[2]{0}', space=sflag, size = 0x8, scoped, tag = 'scoped memory for tpu_custom_call.1']
    %10 = vsyncpa [#allocation4], 0
    %s11 = scalar_lea.sflag [#allocation4], 1
    %12 = vsyncpa %s11, 0
    loop: start=0, step=1, limit=4
    $region2: #{tpu_custom_call.1} parent=1 // loop_pre_header
      _
    $region3: #{tpu_custom_call.1} parent=1 // loop_header
      %s14 = sphi 0, %s18
      %p15 = scmp.ge.s32.totalorder %s14, 4
      %s21 = sphi 0, %s33
      %s22 = sphi 0, %s29
      %s23 = sphi 0, %s21
      %s24 = sphi 0, %s22
      %s25 = sphi 0, %s23
      %s26 = sphi 0, %s24
      %s38 = sphi 0, %s40
      %s41 = sphi 0, %s38
      %s42 = sphi 0, %s41
      %s58 = sphi 0, %s42
      %s66 = sphi 0, %s68
      %s69 = sphi 0, %s66
      %s70 = sphi 0, %s69
      %s86 = sphi 0, %s70
      %s92 = sphi 0, %s94
      %s95 = sphi 0, %s92
      %s96 = sphi 0, %s95
      %s112 = sphi 0, %s96
      %s116 = sphi 0, %s116
      %s118 = sphi 0, %s116
      %s119 = sphi 0, %s118
      %s133 = sphi 0, %s119
      %s137 = sphi 0, %s137
      %s139 = sphi 0, %s137
      %s140 = sphi 0, %s139
      %s154 = sphi 0, %s140
      %s160 = sphi 0, %s162
      %s163 = sphi 0, %s160
      %s164 = sphi 0, %s163
      %s180 = sphi 0, %s164
    $region4: #{tpu_custom_call.1} parent=1 // loop_header_branch
      %17 = sbr.rel (%p15) target = $region8
    $region5: #{tpu_custom_call.1} parent=1 // loop_body
      %s19 = ssub.s32 %s14, 1
      %s20 = ssub.s32 %s14, 2
      %s27 = sadd.s32 1, %s22
      %p28 = scmp.ge.s32.totalorder %s27, 1
      %s29 = scalar_select %p28, 0, %s27
      %s30 = sadd.s32 1, %s21
      %s31 = scalar_select %p28, %s30, %s21
      %p32 = scmp.ge.s32.totalorder %s31, 2
      %s33 = scalar_select %p32, 0, %s31
      %s34 = ssub.s32 %s21, %s33
      %s35 = ssub.s32 %s22, %s29
      %s36 = sor.u32 %s34, %s35
      %p37 = scmp.eq.s32.totalorder %s36, 0
      %s39 = sadd.s32 %s38, 1
      %s40 = scalar_select %p37, %s38, %s39
      %p43 = pneg %p37
      %p44 = scmp.eq.s32.totalorder %s14, 1
      %p45 = por %p43, %p44
      %p46 = scmp.ne.s32.totalorder %s38, %s41
      %p47 = scmp.eq.s32.totalorder %s14, 0
      %p48 = por %p46, %p47
      %p49 = scmp.ne.s32.totalorder %s38, %s41
      %p50 = scmp.eq.s32.totalorder %s19, 1
      %p51 = por %p49, %p50
      %p52 = scmp.ne.s32.totalorder %s41, %s42
      %p53 = scmp.eq.s32.totalorder %s19, 0
      %p54 = por %p52, %p53
      %p55 = scmp.ne.s32.totalorder %s41, %s42
      %p56 = scmp.eq.s32.totalorder %s20, 1
      %p57 = por %p55, %p56
      %p59 = scmp.ne.s32.totalorder %s42, %s58
      %p60 = scmp.eq.s32.totalorder %s20, 0
      %p61 = por %p59, %p60
      %s62 = ssub.s32 %s21, %s33
      %s63 = ssub.s32 %s22, %s29
      %s64 = sor.u32 %s62, %s63
      %p65 = scmp.eq.s32.totalorder %s64, 0
      %s67 = sadd.s32 %s66, 1
      %s68 = scalar_select %p65, %s66, %s67
      %p71 = pneg %p65
      %p72 = scmp.eq.s32.totalorder %s14, 1
      %p73 = por %p71, %p72
      %p74 = scmp.ne.s32.totalorder %s66, %s69
      %p75 = scmp.eq.s32.totalorder %s14, 0
      %p76 = por %p74, %p75
      %p77 = scmp.ne.s32.totalorder %s66, %s69
      %p78 = scmp.eq.s32.totalorder %s19, 1
      %p79 = por %p77, %p78
      %p80 = scmp.ne.s32.totalorder %s69, %s70
      %p81 = scmp.eq.s32.totalorder %s19, 0
      %p82 = por %p80, %p81
      %p83 = scmp.ne.s32.totalorder %s69, %s70
      %p84 = scmp.eq.s32.totalorder %s20, 1
      %p85 = por %p83, %p84
      %p87 = scmp.ne.s32.totalorder %s70, %s86
      %p88 = scmp.eq.s32.totalorder %s20, 0
      %p89 = por %p87, %p88
      %s90 = ssub.s32 %s21, %s33
      %p91 = scmp.eq.s32.totalorder %s90, 0
      %s93 = sadd.s32 %s92, 1
      %s94 = scalar_select %p91, %s92, %s93
      %p97 = pneg %p91
      %p98 = scmp.eq.s32.totalorder %s14, 1
      %p99 = por %p97, %p98
      %p100 = scmp.ne.s32.totalorder %s92, %s95
      %p101 = scmp.eq.s32.totalorder %s14, 0
      %p102 = por %p100, %p101
      %p103 = scmp.ne.s32.totalorder %s92, %s95
      %p104 = scmp.eq.s32.totalorder %s19, 1
      %p105 = por %p103, %p104
      %p106 = scmp.ne.s32.totalorder %s95, %s96
      %p107 = scmp.eq.s32.totalorder %s19, 0
      %p108 = por %p106, %p107
      %p109 = scmp.ne.s32.totalorder %s95, %s96
      %p110 = scmp.eq.s32.totalorder %s20, 1
      %p111 = por %p109, %p110
      %p113 = scmp.ne.s32.totalorder %s96, %s112
      %p114 = scmp.eq.s32.totalorder %s20, 0
      %p115 = por %p113, %p114
      %s117 = sadd.s32 %s116, 1
      %p120 = scmp.eq.s32.totalorder %s14, 1
      %p121 = scmp.ne.s32.totalorder %s116, %s118
      %p122 = scmp.eq.s32.totalorder %s14, 0
      %p123 = por %p121, %p122
      %p124 = scmp.ne.s32.totalorder %s116, %s118
      %p125 = scmp.eq.s32.totalorder %s19, 1
      %p126 = por %p124, %p125
      %p127 = scmp.ne.s32.totalorder %s118, %s119
      %p128 = scmp.eq.s32.totalorder %s19, 0
      %p129 = por %p127, %p128
      %p130 = scmp.ne.s32.totalorder %s118, %s119
      %p131 = scmp.eq.s32.totalorder %s20, 1
      %p132 = por %p130, %p131
      %p134 = scmp.ne.s32.totalorder %s119, %s133
      %p135 = scmp.eq.s32.totalorder %s20, 0
      %p136 = por %p134, %p135
      %s138 = sadd.s32 %s137, 1
      %p141 = scmp.eq.s32.totalorder %s14, 1
      %p142 = scmp.ne.s32.totalorder %s137, %s139
      %p143 = scmp.eq.s32.totalorder %s14, 0
      %p144 = por %p142, %p143
      %p145 = scmp.ne.s32.totalorder %s137, %s139
      %p146 = scmp.eq.s32.totalorder %s19, 1
      %p147 = por %p145, %p146
      %p148 = scmp.ne.s32.totalorder %s139, %s140
      %p149 = scmp.eq.s32.totalorder %s19, 0
      %p150 = por %p148, %p149
      %p151 = scmp.ne.s32.totalorder %s139, %s140
      %p152 = scmp.eq.s32.totalorder %s20, 1
      %p153 = por %p151, %p152
      %p155 = scmp.ne.s32.totalorder %s140, %s154
      %p156 = scmp.eq.s32.totalorder %s20, 0
      %p157 = por %p155, %p156
      %s158 = ssub.s32 %s21, %s33
      %p159 = scmp.eq.s32.totalorder %s158, 0
      %s161 = sadd.s32 %s160, 1
      %s162 = scalar_select %p159, %s160, %s161
      %p165 = pneg %p159
      %p166 = scmp.eq.s32.totalorder %s14, 1
      %p167 = por %p165, %p166
      %p168 = scmp.ne.s32.totalorder %s160, %s163
      %p169 = scmp.eq.s32.totalorder %s14, 0
      %p170 = por %p168, %p169
      %p171 = scmp.ne.s32.totalorder %s160, %s163
      %p172 = scmp.eq.s32.totalorder %s19, 1
      %p173 = por %p171, %p172
      %p174 = scmp.ne.s32.totalorder %s163, %s164
      %p175 = scmp.eq.s32.totalorder %s19, 0
      %p176 = por %p174, %p175
      %p177 = scmp.ne.s32.totalorder %s163, %s164
      %p178 = scmp.eq.s32.totalorder %s20, 1
      %p179 = por %p177, %p178
      %p181 = scmp.ne.s32.totalorder %s164, %s180
      %p182 = scmp.eq.s32.totalorder %s20, 0
      %p183 = por %p181, %p182
      %p184 = scmp.le.s32.totalorder 1, %s14
      %p185 = scmp.lt.s32.totalorder %s14, 3
      %p186 = pnand %p184, %p185
      %p187 = pneg %p186
      // Predicated region
      $region9: #{tpu_custom_call.1} parent=5 // pred_check
        _
      $region10: #{tpu_custom_call.1} parent=5 // pred_check_branch
        %189 = sbr.rel (%p186) target = $region12
      $region11: #{tpu_custom_call.1} parent=5 // pred_region
        %s190 = ssub.s32 %s14, 1
        // Predicated region
        $region13: #{tpu_custom_call.1} parent=11 // pred_check
          %p191 = pneg %p129
        $region14: #{tpu_custom_call.1} parent=11 // pred_check_branch
          %193 = sbr.rel (%p191) target = $region16
        $region15: #{tpu_custom_call.1} parent=11 // pred_region
          _
        $region16: #{tpu_custom_call.1} parent=11 // pred_fallthru
          _
        // Predicated region
        $region17: #{tpu_custom_call.1} parent=11 // pred_check
          %p194 = pneg %p150
        $region18: #{tpu_custom_call.1} parent=11 // pred_check_branch
          %196 = sbr.rel (%p194) target = $region20
        $region19: #{tpu_custom_call.1} parent=11 // pred_region
          _
        $region20: #{tpu_custom_call.1} parent=11 // pred_fallthru
          _
      $region12: #{tpu_custom_call.1} parent=5 // pred_fallthru
        _
      %p197 = scmp.lt.s32.totalorder %s14, 2
      // Predicated region
      $region21: #{tpu_custom_call.1} parent=5 // pred_check
        %p198 = pneg %p197
      $region22: #{tpu_custom_call.1} parent=5 // pred_check_branch
        %200 = sbr.rel (%p198) target = $region24
      $region23: #{tpu_custom_call.1} parent=5 // pred_region
        // Predicated region
        $region25: #{tpu_custom_call.1} parent=23 // pred_check
          %p201 = pneg %p48
        $region26: #{tpu_custom_call.1} parent=23 // pred_check_branch
          %203 = sbr.rel (%p201) target = $region28
        $region27: #{tpu_custom_call.1} parent=23 // pred_region
          %s204 = smul.u32 8, %s21
          %s205 = smul.u32 128, %s22
          %p206 = scmp.lt.s32.totalorder %s204, 15
          %s207 = scalar_select %p206, %s204, 15
          %p208 = scmp.lt.s32.totalorder %s205, 127
          %s209 = scalar_select %p208, %s205, 127
          %s210 = smul.addr %s207, 128
          %s211 = sadd.s32 %s209, %s210
          %s212 = smul.addr %s211, 4
          %s213 = scalar_lea.vmem %s0, %s212
          %s214 = smul.u32 8, %s21
          %s215 = smul.u32 128, %s22
        $region28: #{tpu_custom_call.1} parent=23 // pred_fallthru
          _
        // Predicated region
        $region29: #{tpu_custom_call.1} parent=23 // pred_check
          %p216 = pneg %p76
        $region30: #{tpu_custom_call.1} parent=23 // pred_check_branch
          %218 = sbr.rel (%p216) target = $region32
        $region31: #{tpu_custom_call.1} parent=23 // pred_region
          %s219 = smul.u32 8, %s21
          %s220 = smul.u32 8, %s22
          %p221 = scmp.lt.s32.totalorder %s219, 15
          %s222 = scalar_select %p221, %s219, 15
          %p223 = scmp.lt.s32.totalorder %s220, 7
          %s224 = scalar_select %p223, %s220, 7
          %s225 = smul.addr %s222, 8
          %s226 = sadd.s32 %s224, %s225
          %s227 = scalar_lea.vmem %s1, %s226
          %s228 = smul.u32 8, %s21
          %s229 = smul.u32 8, %s22
        $region32: #{tpu_custom_call.1} parent=23 // pred_fallthru
          _
        // Predicated region
        $region33: #{tpu_custom_call.1} parent=23 // pred_check
          %p230 = pneg %p102
        $region34: #{tpu_custom_call.1} parent=23 // pred_check_branch
          %232 = sbr.rel (%p230) target = $region36
        $region35: #{tpu_custom_call.1} parent=23 // pred_region
          %p233 = scmp.lt.s32.totalorder %s21, 1
          %s234 = scalar_select %p233, %s21, 1
          %s235 = smul.addr %s234, 8
          %s236 = scalar_lea.vmem %s2, %s235
        $region36: #{tpu_custom_call.1} parent=23 // pred_fallthru
          _
      $region24: #{tpu_custom_call.1} parent=5 // pred_fallthru
        _
      %p237 = scmp.le.s32.totalorder 1, %s14
      %p238 = scmp.lt.s32.totalorder %s14, 3
      %p239 = pnand %p237, %p238
      %p240 = pneg %p239
      // Predicated region
      $region37: #{tpu_custom_call.1} parent=5 // pred_check
        _
      $region38: #{tpu_custom_call.1} parent=5 // pred_check_branch
        %242 = sbr.rel (%p239) target = $region40
      $region39: #{tpu_custom_call.1} parent=5 // pred_region
        %s243 = ssub.s32 %s14, 1
        %s244 = smul.u32 8, %s23
        %s245 = smul.u32 128, %s24
        %p246 = scmp.lt.s32.totalorder %s244, 15
        %s247 = scalar_select %p246, %s244, 15
        %p248 = scmp.lt.s32.totalorder %s245, 127
        %s249 = scalar_select %p248, %s245, 127
        %s250 = smul.addr %s247, 128
        %s251 = sadd.s32 %s249, %s250
        %s252 = smul.addr %s251, 4
        %s253 = scalar_lea.vmem %s0, %s252
        %p254 = pneg %p54
        %p255 = pneg %p51
        %s256 = smul.u32 8, %s23
        %s257 = smul.u32 8, %s24
        %p258 = scmp.lt.s32.totalorder %s256, 15
        %s259 = scalar_select %p258, %s256, 15
        %p260 = scmp.lt.s32.totalorder %s257, 7
        %s261 = scalar_select %p260, %s257, 7
        %s262 = smul.addr %s259, 8
        %s263 = sadd.s32 %s261, %s262
        %s264 = scalar_lea.vmem %s1, %s263
        %p265 = pneg %p82
        %p266 = pneg %p79
        %p267 = scmp.lt.s32.totalorder %s23, 1
        %s268 = scalar_select %p267, %s23, 1
        %s269 = smul.addr %s268, 8
        %s270 = scalar_lea.vmem %s2, %s269
        %p271 = pneg %p108
        %p272 = pneg %p105
        %p273 = pneg %p129
        %p274 = pneg %p126
        %p275 = pneg %p150
        %p276 = pneg %p147
        %p277 = pneg %p176
        %p278 = pneg %p173
        %s279 = sand.u32 %s163, 1
        %s280 = scalar_lea.sflag [#allocation4], %s279
        %s281 = sand.u32 %s163, 1
        %s282 = smul.addr %s281, 8
        %s283 = scalar_lea.vmem [#allocation3], %s282
        %s284 = smul.u32 8, %s23
        %s285 = smul.u32 128, %s24
        %p286 = scmp.lt.s32.totalorder %s284, 15
        %s287 = scalar_select %p286, %s284, 15
        %p288 = scmp.lt.s32.totalorder %s285, 127
        %s289 = scalar_select %p288, %s285, 127
        %s290 = smul.addr %s287, 128
        %s291 = sadd.s32 %s289, %s290
        %s292 = smul.addr %s291, 4
        %s293 = scalar_lea.vmem %s0, %s292
        %s294 = smul.u32 8, %s23
        %s295 = smul.u32 128, %s24
        %s296 = smul.u32 8, %s23
        %s297 = smul.u32 8, %s24
        %p298 = scmp.lt.s32.totalorder %s296, 15
        %s299 = scalar_select %p298, %s296, 15
        %p300 = scmp.lt.s32.totalorder %s297, 7
        %s301 = scalar_select %p300, %s297, 7
        %s302 = smul.addr %s299, 8
        %s303 = sadd.s32 %s301, %s302
        %s304 = scalar_lea.vmem %s1, %s303
        %s305 = smul.u32 8, %s23
        %s306 = smul.u32 8, %s24
        %p307 = scmp.lt.s32.totalorder %s23, 1
        %s308 = scalar_select %p307, %s23, 1
        %s309 = smul.addr %s308, 8
        %s310 = scalar_lea.vmem %s2, %s309
        %p312 = scmp.eq.s32.totalorder %s24, 0
        // Predicated region
        $region41: #{tpu_custom_call.1} parent=39 // pred_check
          %p313 = pneg %p312
        $region42: #{tpu_custom_call.1} parent=39 // pred_check_branch
          %315 = sbr.rel (%p313) target = $region44
        $region43: #{tpu_custom_call.1} parent=39 // pred_region
          %vm316 = vcmask 253952
          %317 = vst.msk [vmem:[#allocation2] sm:$0x1] %vm316, 0.0
          %318 = vst.msk [vmem:[#allocation2 + $0x1] sm:$0x1] %vm316, 0.0
          %319 = vst.msk [vmem:[#allocation2 + $0x2] sm:$0x1] %vm316, 0.0
          %320 = vst.msk [vmem:[#allocation2 + $0x3] sm:$0x1] %vm316, 0.0
          %321 = vst.msk [vmem:[#allocation2 + $0x4] sm:$0x1] %vm316, 0.0
          %322 = vst.msk [vmem:[#allocation2 + $0x5] sm:$0x1] %vm316, 0.0
          %323 = vst.msk [vmem:[#allocation2 + $0x6] sm:$0x1] %vm316, 0.0
          %324 = vst.msk [vmem:[#allocation2 + $0x7] sm:$0x1] %vm316, 0.0
        $region44: #{tpu_custom_call.1} parent=39 // pred_fallthru
          _
        %v325 = vld [vmem:[#allocation2] sm:$0x1]
        %v326 = vld [vmem:[#allocation2 + $0x1] sm:$0x1]
        %v327 = vld [vmem:[#allocation2 + $0x2] sm:$0x1]
        %v328 = vld [vmem:[#allocation2 + $0x3] sm:$0x1]
        %v329 = vld [vmem:[#allocation2 + $0x4] sm:$0x1]
        %v330 = vld [vmem:[#allocation2 + $0x5] sm:$0x1]
        %v331 = vld [vmem:[#allocation2 + $0x6] sm:$0x1]
        %v332 = vld [vmem:[#allocation2 + $0x7] sm:$0x1]
        %v333 = vld [vmem:[%s304] sm:$0xff]
        %v334 = vld [vmem:[%s304 + $0x8] sm:$0xff]
        %v335 = vld [vmem:[%s304 + $0x10] sm:$0xff]
        %v336 = vld [vmem:[%s304 + $0x18] sm:$0xff]
        %v337 = vld [vmem:[%s304 + $0x20] sm:$0xff]
        %v338 = vld [vmem:[%s304 + $0x28] sm:$0xff]
        %v339 = vld [vmem:[%s304 + $0x30] sm:$0xff]
        %v340 = vld [vmem:[%s304 + $0x38] sm:$0xff]
        %v341 = vld [vmem:[%s293] sm:$0xf]
        %v342 = vld [vmem:[%s293 + $0x4] sm:$0xf]
        %v343 = vld [vmem:[%s293 + $0x8] sm:$0xf]
        %v344 = vld [vmem:[%s293 + $0xc] sm:$0xf]
        %v345 = vld [vmem:[%s293 + $0x10] sm:$0xf]
        %v346 = vld [vmem:[%s293 + $0x14] sm:$0xf]
        %v347 = vld [vmem:[%s293 + $0x18] sm:$0xf]
        %v348 = vld [vmem:[%s293 + $0x1c] sm:$0xf]
        %v349 = vld [vmem:[%s293 + $0x20] sm:$0xf]
        %v350 = vld [vmem:[%s293 + $0x24] sm:$0xf]
        %v351 = vld [vmem:[%s293 + $0x28] sm:$0xf]
        %v352 = vld [vmem:[%s293 + $0x2c] sm:$0xf]
        %v353 = vld [vmem:[%s293 + $0x30] sm:$0xf]
        %v354 = vld [vmem:[%s293 + $0x34] sm:$0xf]
        %v355 = vld [vmem:[%s293 + $0x38] sm:$0xf]
        %v356 = vld [vmem:[%s293 + $0x3c] sm:$0xf]
        %v357 = vld [vmem:[%s293 + $0x40] sm:$0xf]
        %v358 = vld [vmem:[%s293 + $0x44] sm:$0xf]
        %v359 = vld [vmem:[%s293 + $0x48] sm:$0xf]
        %v360 = vld [vmem:[%s293 + $0x4c] sm:$0xf]
        %v361 = vld [vmem:[%s293 + $0x50] sm:$0xf]
        %v362 = vld [vmem:[%s293 + $0x54] sm:$0xf]
        %v363 = vld [vmem:[%s293 + $0x58] sm:$0xf]
        %v364 = vld [vmem:[%s293 + $0x5c] sm:$0xf]
        %v365 = vld [vmem:[%s293 + $0x60] sm:$0xf]
        %v366 = vld [vmem:[%s293 + $0x64] sm:$0xf]
        %v367 = vld [vmem:[%s293 + $0x68] sm:$0xf]
        %v368 = vld [vmem:[%s293 + $0x6c] sm:$0xf]
        %v369 = vld [vmem:[%s293 + $0x70] sm:$0xf]
        %v370 = vld [vmem:[%s293 + $0x74] sm:$0xf]
        %v371 = vld [vmem:[%s293 + $0x78] sm:$0xf]
        %v372 = vld [vmem:[%s293 + $0x7c] sm:$0xf]
        %v373 = vld [vmem:[%s293 + $0x80] sm:$0xf]
        %v374 = vld [vmem:[%s293 + $0x84] sm:$0xf]
        %v375 = vld [vmem:[%s293 + $0x88] sm:$0xf]
        %v376 = vld [vmem:[%s293 + $0x8c] sm:$0xf]
        %v377 = vld [vmem:[%s293 + $0x90] sm:$0xf]
        %v378 = vld [vmem:[%s293 + $0x94] sm:$0xf]
        %v379 = vld [vmem:[%s293 + $0x98] sm:$0xf]
        %v380 = vld [vmem:[%s293 + $0x9c] sm:$0xf]
        %v381 = vld [vmem:[%s293 + $0xa0] sm:$0xf]
        %v382 = vld [vmem:[%s293 + $0xa4] sm:$0xf]
        %v383 = vld [vmem:[%s293 + $0xa8] sm:$0xf]
        %v384 = vld [vmem:[%s293 + $0xac] sm:$0xf]
        %v385 = vld [vmem:[%s293 + $0xb0] sm:$0xf]
        %v386 = vld [vmem:[%s293 + $0xb4] sm:$0xf]
        %v387 = vld [vmem:[%s293 + $0xb8] sm:$0xf]
        %v388 = vld [vmem:[%s293 + $0xbc] sm:$0xf]
        %v389 = vld [vmem:[%s293 + $0xc0] sm:$0xf]
        %v390 = vld [vmem:[%s293 + $0xc4] sm:$0xf]
        %v391 = vld [vmem:[%s293 + $0xc8] sm:$0xf]
        %v392 = vld [vmem:[%s293 + $0xcc] sm:$0xf]
        %v393 = vld [vmem:[%s293 + $0xd0] sm:$0xf]
        %v394 = vld [vmem:[%s293 + $0xd4] sm:$0xf]
        %v395 = vld [vmem:[%s293 + $0xd8] sm:$0xf]
        %v396 = vld [vmem:[%s293 + $0xdc] sm:$0xf]
        %v397 = vld [vmem:[%s293 + $0xe0] sm:$0xf]
        %v398 = vld [vmem:[%s293 + $0xe4] sm:$0xf]
        %v399 = vld [vmem:[%s293 + $0xe8] sm:$0xf]
        %v400 = vld [vmem:[%s293 + $0xec] sm:$0xf]
        %v401 = vld [vmem:[%s293 + $0xf0] sm:$0xf]
        %v402 = vld [vmem:[%s293 + $0xf4] sm:$0xf]
        %v403 = vld [vmem:[%s293 + $0xf8] sm:$0xf]
        %v404 = vld [vmem:[%s293 + $0xfc] sm:$0xf]
        %v405 = vld [vmem:[%s293 + $0x100] sm:$0xf]
        %v406 = vld [vmem:[%s293 + $0x104] sm:$0xf]
        %v407 = vld [vmem:[%s293 + $0x108] sm:$0xf]
        %v408 = vld [vmem:[%s293 + $0x10c] sm:$0xf]
        %v409 = vld [vmem:[%s293 + $0x110] sm:$0xf]
        %v410 = vld [vmem:[%s293 + $0x114] sm:$0xf]
        %v411 = vld [vmem:[%s293 + $0x118] sm:$0xf]
        %v412 = vld [vmem:[%s293 + $0x11c] sm:$0xf]
        %v413 = vld [vmem:[%s293 + $0x120] sm:$0xf]
        %v414 = vld [vmem:[%s293 + $0x124] sm:$0xf]
        %v415 = vld [vmem:[%s293 + $0x128] sm:$0xf]
        %v416 = vld [vmem:[%s293 + $0x12c] sm:$0xf]
        %v417 = vld [vmem:[%s293 + $0x130] sm:$0xf]
        %v418 = vld [vmem:[%s293 + $0x134] sm:$0xf]
        %v419 = vld [vmem:[%s293 + $0x138] sm:$0xf]
        %v420 = vld [vmem:[%s293 + $0x13c] sm:$0xf]
        %v421 = vld [vmem:[%s293 + $0x140] sm:$0xf]
        %v422 = vld [vmem:[%s293 + $0x144] sm:$0xf]
        %v423 = vld [vmem:[%s293 + $0x148] sm:$0xf]
        %v424 = vld [vmem:[%s293 + $0x14c] sm:$0xf]
        %v425 = vld [vmem:[%s293 + $0x150] sm:$0xf]
        %v426 = vld [vmem:[%s293 + $0x154] sm:$0xf]
        %v427 = vld [vmem:[%s293 + $0x158] sm:$0xf]
        %v428 = vld [vmem:[%s293 + $0x15c] sm:$0xf]
        %v429 = vld [vmem:[%s293 + $0x160] sm:$0xf]
        %v430 = vld [vmem:[%s293 + $0x164] sm:$0xf]
        %v431 = vld [vmem:[%s293 + $0x168] sm:$0xf]
        %v432 = vld [vmem:[%s293 + $0x16c] sm:$0xf]
        %v433 = vld [vmem:[%s293 + $0x170] sm:$0xf]
        %v434 = vld [vmem:[%s293 + $0x174] sm:$0xf]
        %v435 = vld [vmem:[%s293 + $0x178] sm:$0xf]
        %v436 = vld [vmem:[%s293 + $0x17c] sm:$0xf]
        %v437 = vld [vmem:[%s293 + $0x180] sm:$0xf]
        %v438 = vld [vmem:[%s293 + $0x184] sm:$0xf]
        %v439 = vld [vmem:[%s293 + $0x188] sm:$0xf]
        %v440 = vld [vmem:[%s293 + $0x18c] sm:$0xf]
        %v441 = vld [vmem:[%s293 + $0x190] sm:$0xf]
        %v442 = vld [vmem:[%s293 + $0x194] sm:$0xf]
        %v443 = vld [vmem:[%s293 + $0x198] sm:$0xf]
        %v444 = vld [vmem:[%s293 + $0x19c] sm:$0xf]
        %v445 = vld [vmem:[%s293 + $0x1a0] sm:$0xf]
        %v446 = vld [vmem:[%s293 + $0x1a4] sm:$0xf]
        %v447 = vld [vmem:[%s293 + $0x1a8] sm:$0xf]
        %v448 = vld [vmem:[%s293 + $0x1ac] sm:$0xf]
        %v449 = vld [vmem:[%s293 + $0x1b0] sm:$0xf]
        %v450 = vld [vmem:[%s293 + $0x1b4] sm:$0xf]
        %v451 = vld [vmem:[%s293 + $0x1b8] sm:$0xf]
        %v452 = vld [vmem:[%s293 + $0x1bc] sm:$0xf]
        %v453 = vld [vmem:[%s293 + $0x1c0] sm:$0xf]
        %v454 = vld [vmem:[%s293 + $0x1c4] sm:$0xf]
        %v455 = vld [vmem:[%s293 + $0x1c8] sm:$0xf]
        %v456 = vld [vmem:[%s293 + $0x1cc] sm:$0xf]
        %v457 = vld [vmem:[%s293 + $0x1d0] sm:$0xf]
        %v458 = vld [vmem:[%s293 + $0x1d4] sm:$0xf]
        %v459 = vld [vmem:[%s293 + $0x1d8] sm:$0xf]
        %v460 = vld [vmem:[%s293 + $0x1dc] sm:$0xf]
        %v461 = vld [vmem:[%s293 + $0x1e0] sm:$0xf]
        %v462 = vld [vmem:[%s293 + $0x1e4] sm:$0xf]
        %v463 = vld [vmem:[%s293 + $0x1e8] sm:$0xf]
        %v464 = vld [vmem:[%s293 + $0x1ec] sm:$0xf]
        %v465 = vld [vmem:[%s293 + $0x1f0] sm:$0xf]
        %v466 = vld [vmem:[%s293 + $0x1f4] sm:$0xf]
        %v467 = vld [vmem:[%s293 + $0x1f8] sm:$0xf]
        %v468 = vld [vmem:[%s293 + $0x1fc] sm:$0xf]
        %v469 = vld [vmem:[%s293 + $0x200] sm:$0xf]
        %v470 = vld [vmem:[%s293 + $0x204] sm:$0xf]
        %v471 = vld [vmem:[%s293 + $0x208] sm:$0xf]
        %v472 = vld [vmem:[%s293 + $0x20c] sm:$0xf]
        %v473 = vld [vmem:[%s293 + $0x210] sm:$0xf]
        %v474 = vld [vmem:[%s293 + $0x214] sm:$0xf]
        %v475 = vld [vmem:[%s293 + $0x218] sm:$0xf]
        %v476 = vld [vmem:[%s293 + $0x21c] sm:$0xf]
        %v477 = vld [vmem:[%s293 + $0x220] sm:$0xf]
        %v478 = vld [vmem:[%s293 + $0x224] sm:$0xf]
        %v479 = vld [vmem:[%s293 + $0x228] sm:$0xf]
        %v480 = vld [vmem:[%s293 + $0x22c] sm:$0xf]
        %v481 = vld [vmem:[%s293 + $0x230] sm:$0xf]
        %v482 = vld [vmem:[%s293 + $0x234] sm:$0xf]
        %v483 = vld [vmem:[%s293 + $0x238] sm:$0xf]
        %v484 = vld [vmem:[%s293 + $0x23c] sm:$0xf]
        %v485 = vld [vmem:[%s293 + $0x240] sm:$0xf]
        %v486 = vld [vmem:[%s293 + $0x244] sm:$0xf]
        %v487 = vld [vmem:[%s293 + $0x248] sm:$0xf]
        %v488 = vld [vmem:[%s293 + $0x24c] sm:$0xf]
        %v489 = vld [vmem:[%s293 + $0x250] sm:$0xf]
        %v490 = vld [vmem:[%s293 + $0x254] sm:$0xf]
        %v491 = vld [vmem:[%s293 + $0x258] sm:$0xf]
        %v492 = vld [vmem:[%s293 + $0x25c] sm:$0xf]
        %v493 = vld [vmem:[%s293 + $0x260] sm:$0xf]
        %v494 = vld [vmem:[%s293 + $0x264] sm:$0xf]
        %v495 = vld [vmem:[%s293 + $0x268] sm:$0xf]
        %v496 = vld [vmem:[%s293 + $0x26c] sm:$0xf]
        %v497 = vld [vmem:[%s293 + $0x270] sm:$0xf]
        %v498 = vld [vmem:[%s293 + $0x274] sm:$0xf]
        %v499 = vld [vmem:[%s293 + $0x278] sm:$0xf]
        %v500 = vld [vmem:[%s293 + $0x27c] sm:$0xf]
        %v501 = vld [vmem:[%s293 + $0x280] sm:$0xf]
        %v502 = vld [vmem:[%s293 + $0x284] sm:$0xf]
        %v503 = vld [vmem:[%s293 + $0x288] sm:$0xf]
        %v504 = vld [vmem:[%s293 + $0x28c] sm:$0xf]
        %v505 = vld [vmem:[%s293 + $0x290] sm:$0xf]
        %v506 = vld [vmem:[%s293 + $0x294] sm:$0xf]
        %v507 = vld [vmem:[%s293 + $0x298] sm:$0xf]
        %v508 = vld [vmem:[%s293 + $0x29c] sm:$0xf]
        %v509 = vld [vmem:[%s293 + $0x2a0] sm:$0xf]
        %v510 = vld [vmem:[%s293 + $0x2a4] sm:$0xf]
        %v511 = vld [vmem:[%s293 + $0x2a8] sm:$0xf]
        %v512 = vld [vmem:[%s293 + $0x2ac] sm:$0xf]
        %v513 = vld [vmem:[%s293 + $0x2b0] sm:$0xf]
        %v514 = vld [vmem:[%s293 + $0x2b4] sm:$0xf]
        %v515 = vld [vmem:[%s293 + $0x2b8] sm:$0xf]
        %v516 = vld [vmem:[%s293 + $0x2bc] sm:$0xf]
        %v517 = vld [vmem:[%s293 + $0x2c0] sm:$0xf]
        %v518 = vld [vmem:[%s293 + $0x2c4] sm:$0xf]
        %v519 = vld [vmem:[%s293 + $0x2c8] sm:$0xf]
        %v520 = vld [vmem:[%s293 + $0x2cc] sm:$0xf]
        %v521 = vld [vmem:[%s293 + $0x2d0] sm:$0xf]
        %v522 = vld [vmem:[%s293 + $0x2d4] sm:$0xf]
        %v523 = vld [vmem:[%s293 + $0x2d8] sm:$0xf]
        %v524 = vld [vmem:[%s293 + $0x2dc] sm:$0xf]
        %v525 = vld [vmem:[%s293 + $0x2e0] sm:$0xf]
        %v526 = vld [vmem:[%s293 + $0x2e4] sm:$0xf]
        %v527 = vld [vmem:[%s293 + $0x2e8] sm:$0xf]
        %v528 = vld [vmem:[%s293 + $0x2ec] sm:$0xf]
        %v529 = vld [vmem:[%s293 + $0x2f0] sm:$0xf]
        %v530 = vld [vmem:[%s293 + $0x2f4] sm:$0xf]
        %v531 = vld [vmem:[%s293 + $0x2f8] sm:$0xf]
        %v532 = vld [vmem:[%s293 + $0x2fc] sm:$0xf]
        %v533 = vld [vmem:[%s293 + $0x300] sm:$0xf]
        %v534 = vld [vmem:[%s293 + $0x304] sm:$0xf]
        %v535 = vld [vmem:[%s293 + $0x308] sm:$0xf]
        %v536 = vld [vmem:[%s293 + $0x30c] sm:$0xf]
        %v537 = vld [vmem:[%s293 + $0x310] sm:$0xf]
        %v538 = vld [vmem:[%s293 + $0x314] sm:$0xf]
        %v539 = vld [vmem:[%s293 + $0x318] sm:$0xf]
        %v540 = vld [vmem:[%s293 + $0x31c] sm:$0xf]
        %v541 = vld [vmem:[%s293 + $0x320] sm:$0xf]
        %v542 = vld [vmem:[%s293 + $0x324] sm:$0xf]
        %v543 = vld [vmem:[%s293 + $0x328] sm:$0xf]
        %v544 = vld [vmem:[%s293 + $0x32c] sm:$0xf]
        %v545 = vld [vmem:[%s293 + $0x330] sm:$0xf]
        %v546 = vld [vmem:[%s293 + $0x334] sm:$0xf]
        %v547 = vld [vmem:[%s293 + $0x338] sm:$0xf]
        %v548 = vld [vmem:[%s293 + $0x33c] sm:$0xf]
        %v549 = vld [vmem:[%s293 + $0x340] sm:$0xf]
        %v550 = vld [vmem:[%s293 + $0x344] sm:$0xf]
        %v551 = vld [vmem:[%s293 + $0x348] sm:$0xf]
        %v552 = vld [vmem:[%s293 + $0x34c] sm:$0xf]
        %v553 = vld [vmem:[%s293 + $0x350] sm:$0xf]
        %v554 = vld [vmem:[%s293 + $0x354] sm:$0xf]
        %v555 = vld [vmem:[%s293 + $0x358] sm:$0xf]
        %v556 = vld [vmem:[%s293 + $0x35c] sm:$0xf]
        %v557 = vld [vmem:[%s293 + $0x360] sm:$0xf]
        %v558 = vld [vmem:[%s293 + $0x364] sm:$0xf]
        %v559 = vld [vmem:[%s293 + $0x368] sm:$0xf]
        %v560 = vld [vmem:[%s293 + $0x36c] sm:$0xf]
        %v561 = vld [vmem:[%s293 + $0x370] sm:$0xf]
        %v562 = vld [vmem:[%s293 + $0x374] sm:$0xf]
        %v563 = vld [vmem:[%s293 + $0x378] sm:$0xf]
        %v564 = vld [vmem:[%s293 + $0x37c] sm:$0xf]
        %v565 = vld [vmem:[%s293 + $0x380] sm:$0xf]
        %v566 = vld [vmem:[%s293 + $0x384] sm:$0xf]
        %v567 = vld [vmem:[%s293 + $0x388] sm:$0xf]
        %v568 = vld [vmem:[%s293 + $0x38c] sm:$0xf]
        %v569 = vld [vmem:[%s293 + $0x390] sm:$0xf]
        %v570 = vld [vmem:[%s293 + $0x394] sm:$0xf]
        %v571 = vld [vmem:[%s293 + $0x398] sm:$0xf]
        %v572 = vld [vmem:[%s293 + $0x39c] sm:$0xf]
        %v573 = vld [vmem:[%s293 + $0x3a0] sm:$0xf]
        %v574 = vld [vmem:[%s293 + $0x3a4] sm:$0xf]
        %v575 = vld [vmem:[%s293 + $0x3a8] sm:$0xf]
        %v576 = vld [vmem:[%s293 + $0x3ac] sm:$0xf]
        %v577 = vld [vmem:[%s293 + $0x3b0] sm:$0xf]
        %v578 = vld [vmem:[%s293 + $0x3b4] sm:$0xf]
        %v579 = vld [vmem:[%s293 + $0x3b8] sm:$0xf]
        %v580 = vld [vmem:[%s293 + $0x3bc] sm:$0xf]
        %v581 = vld [vmem:[%s293 + $0x3c0] sm:$0xf]
        %v582 = vld [vmem:[%s293 + $0x3c4] sm:$0xf]
        %v583 = vld [vmem:[%s293 + $0x3c8] sm:$0xf]
        %v584 = vld [vmem:[%s293 + $0x3cc] sm:$0xf]
        %v585 = vld [vmem:[%s293 + $0x3d0] sm:$0xf]
        %v586 = vld [vmem:[%s293 + $0x3d4] sm:$0xf]
        %v587 = vld [vmem:[%s293 + $0x3d8] sm:$0xf]
        %v588 = vld [vmem:[%s293 + $0x3dc] sm:$0xf]
        %v589 = vld [vmem:[%s293 + $0x3e0] sm:$0xf]
        %v590 = vld [vmem:[%s293 + $0x3e4] sm:$0xf]
        %v591 = vld [vmem:[%s293 + $0x3e8] sm:$0xf]
        %v592 = vld [vmem:[%s293 + $0x3ec] sm:$0xf]
        %v593 = vld [vmem:[%s293 + $0x3f0] sm:$0xf]
        %v594 = vld [vmem:[%s293 + $0x3f4] sm:$0xf]
        %v595 = vld [vmem:[%s293 + $0x3f8] sm:$0xf]
        %v596 = vld [vmem:[%s293 + $0x3fc] sm:$0xf]
        %v597 = vld [vmem:[%s293 + $0x400] sm:$0xf]
        %v598 = vld [vmem:[%s293 + $0x404] sm:$0xf]
        %v599 = vld [vmem:[%s293 + $0x408] sm:$0xf]
        %v600 = vld [vmem:[%s293 + $0x40c] sm:$0xf]
        %v601 = vld [vmem:[%s293 + $0x410] sm:$0xf]
        %v602 = vld [vmem:[%s293 + $0x414] sm:$0xf]
        %v603 = vld [vmem:[%s293 + $0x418] sm:$0xf]
        %v604 = vld [vmem:[%s293 + $0x41c] sm:$0xf]
        %v605 = vld [vmem:[%s293 + $0x420] sm:$0xf]
        %v606 = vld [vmem:[%s293 + $0x424] sm:$0xf]
        %v607 = vld [vmem:[%s293 + $0x428] sm:$0xf]
        %v608 = vld [vmem:[%s293 + $0x42c] sm:$0xf]
        %v609 = vld [vmem:[%s293 + $0x430] sm:$0xf]
        %v610 = vld [vmem:[%s293 + $0x434] sm:$0xf]
        %v611 = vld [vmem:[%s293 + $0x438] sm:$0xf]
        %v612 = vld [vmem:[%s293 + $0x43c] sm:$0xf]
        %v613 = vld [vmem:[%s293 + $0x440] sm:$0xf]
        %v614 = vld [vmem:[%s293 + $0x444] sm:$0xf]
        %v615 = vld [vmem:[%s293 + $0x448] sm:$0xf]
        %v616 = vld [vmem:[%s293 + $0x44c] sm:$0xf]
        %v617 = vld [vmem:[%s293 + $0x450] sm:$0xf]
        %v618 = vld [vmem:[%s293 + $0x454] sm:$0xf]
        %v619 = vld [vmem:[%s293 + $0x458] sm:$0xf]
        %v620 = vld [vmem:[%s293 + $0x45c] sm:$0xf]
        %v621 = vld [vmem:[%s293 + $0x460] sm:$0xf]
        %v622 = vld [vmem:[%s293 + $0x464] sm:$0xf]
        %v623 = vld [vmem:[%s293 + $0x468] sm:$0xf]
        %v624 = vld [vmem:[%s293 + $0x46c] sm:$0xf]
        %v625 = vld [vmem:[%s293 + $0x470] sm:$0xf]
        %v626 = vld [vmem:[%s293 + $0x474] sm:$0xf]
        %v627 = vld [vmem:[%s293 + $0x478] sm:$0xf]
        %v628 = vld [vmem:[%s293 + $0x47c] sm:$0xf]
        %v629 = vld [vmem:[%s293 + $0x480] sm:$0xf]
        %v630 = vld [vmem:[%s293 + $0x484] sm:$0xf]
        %v631 = vld [vmem:[%s293 + $0x488] sm:$0xf]
        %v632 = vld [vmem:[%s293 + $0x48c] sm:$0xf]
        %v633 = vld [vmem:[%s293 + $0x490] sm:$0xf]
        %v634 = vld [vmem:[%s293 + $0x494] sm:$0xf]
        %v635 = vld [vmem:[%s293 + $0x498] sm:$0xf]
        %v636 = vld [vmem:[%s293 + $0x49c] sm:$0xf]
        %v637 = vld [vmem:[%s293 + $0x4a0] sm:$0xf]
        %v638 = vld [vmem:[%s293 + $0x4a4] sm:$0xf]
        %v639 = vld [vmem:[%s293 + $0x4a8] sm:$0xf]
        %v640 = vld [vmem:[%s293 + $0x4ac] sm:$0xf]
        %v641 = vld [vmem:[%s293 + $0x4b0] sm:$0xf]
        %v642 = vld [vmem:[%s293 + $0x4b4] sm:$0xf]
        %v643 = vld [vmem:[%s293 + $0x4b8] sm:$0xf]
        %v644 = vld [vmem:[%s293 + $0x4bc] sm:$0xf]
        %v645 = vld [vmem:[%s293 + $0x4c0] sm:$0xf]
        %v646 = vld [vmem:[%s293 + $0x4c4] sm:$0xf]
        %v647 = vld [vmem:[%s293 + $0x4c8] sm:$0xf]
        %v648 = vld [vmem:[%s293 + $0x4cc] sm:$0xf]
        %v649 = vld [vmem:[%s293 + $0x4d0] sm:$0xf]
        %v650 = vld [vmem:[%s293 + $0x4d4] sm:$0xf]
        %v651 = vld [vmem:[%s293 + $0x4d8] sm:$0xf]
        %v652 = vld [vmem:[%s293 + $0x4dc] sm:$0xf]
        %v653 = vld [vmem:[%s293 + $0x4e0] sm:$0xf]
        %v654 = vld [vmem:[%s293 + $0x4e4] sm:$0xf]
        %v655 = vld [vmem:[%s293 + $0x4e8] sm:$0xf]
        %v656 = vld [vmem:[%s293 + $0x4ec] sm:$0xf]
        %v657 = vld [vmem:[%s293 + $0x4f0] sm:$0xf]
        %v658 = vld [vmem:[%s293 + $0x4f4] sm:$0xf]
        %v659 = vld [vmem:[%s293 + $0x4f8] sm:$0xf]
        %v660 = vld [vmem:[%s293 + $0x4fc] sm:$0xf]
        %v661 = vld [vmem:[%s293 + $0x500] sm:$0xf]
        %v662 = vld [vmem:[%s293 + $0x504] sm:$0xf]
        %v663 = vld [vmem:[%s293 + $0x508] sm:$0xf]
        %v664 = vld [vmem:[%s293 + $0x50c] sm:$0xf]
        %v665 = vld [vmem:[%s293 + $0x510] sm:$0xf]
        %v666 = vld [vmem:[%s293 + $0x514] sm:$0xf]
        %v667 = vld [vmem:[%s293 + $0x518] sm:$0xf]
        %v668 = vld [vmem:[%s293 + $0x51c] sm:$0xf]
        %v669 = vld [vmem:[%s293 + $0x520] sm:$0xf]
        %v670 = vld [vmem:[%s293 + $0x524] sm:$0xf]
        %v671 = vld [vmem:[%s293 + $0x528] sm:$0xf]
        %v672 = vld [vmem:[%s293 + $0x52c] sm:$0xf]
        %v673 = vld [vmem:[%s293 + $0x530] sm:$0xf]
        %v674 = vld [vmem:[%s293 + $0x534] sm:$0xf]
        %v675 = vld [vmem:[%s293 + $0x538] sm:$0xf]
        %v676 = vld [vmem:[%s293 + $0x53c] sm:$0xf]
        %v677 = vld [vmem:[%s293 + $0x540] sm:$0xf]
        %v678 = vld [vmem:[%s293 + $0x544] sm:$0xf]
        %v679 = vld [vmem:[%s293 + $0x548] sm:$0xf]
        %v680 = vld [vmem:[%s293 + $0x54c] sm:$0xf]
        %v681 = vld [vmem:[%s293 + $0x550] sm:$0xf]
        %v682 = vld [vmem:[%s293 + $0x554] sm:$0xf]
        %v683 = vld [vmem:[%s293 + $0x558] sm:$0xf]
        %v684 = vld [vmem:[%s293 + $0x55c] sm:$0xf]
        %v685 = vld [vmem:[%s293 + $0x560] sm:$0xf]
        %v686 = vld [vmem:[%s293 + $0x564] sm:$0xf]
        %v687 = vld [vmem:[%s293 + $0x568] sm:$0xf]
        %v688 = vld [vmem:[%s293 + $0x56c] sm:$0xf]
        %v689 = vld [vmem:[%s293 + $0x570] sm:$0xf]
        %v690 = vld [vmem:[%s293 + $0x574] sm:$0xf]
        %v691 = vld [vmem:[%s293 + $0x578] sm:$0xf]
        %v692 = vld [vmem:[%s293 + $0x57c] sm:$0xf]
        %v693 = vld [vmem:[%s293 + $0x580] sm:$0xf]
        %v694 = vld [vmem:[%s293 + $0x584] sm:$0xf]
        %v695 = vld [vmem:[%s293 + $0x588] sm:$0xf]
        %v696 = vld [vmem:[%s293 + $0x58c] sm:$0xf]
        %v697 = vld [vmem:[%s293 + $0x590] sm:$0xf]
        %v698 = vld [vmem:[%s293 + $0x594] sm:$0xf]
        %v699 = vld [vmem:[%s293 + $0x598] sm:$0xf]
        %v700 = vld [vmem:[%s293 + $0x59c] sm:$0xf]
        %v701 = vld [vmem:[%s293 + $0x5a0] sm:$0xf]
        %v702 = vld [vmem:[%s293 + $0x5a4] sm:$0xf]
        %v703 = vld [vmem:[%s293 + $0x5a8] sm:$0xf]
        %v704 = vld [vmem:[%s293 + $0x5ac] sm:$0xf]
        %v705 = vld [vmem:[%s293 + $0x5b0] sm:$0xf]
        %v706 = vld [vmem:[%s293 + $0x5b4] sm:$0xf]
        %v707 = vld [vmem:[%s293 + $0x5b8] sm:$0xf]
        %v708 = vld [vmem:[%s293 + $0x5bc] sm:$0xf]
        %v709 = vld [vmem:[%s293 + $0x5c0] sm:$0xf]
        %v710 = vld [vmem:[%s293 + $0x5c4] sm:$0xf]
        %v711 = vld [vmem:[%s293 + $0x5c8] sm:$0xf]
        %v712 = vld [vmem:[%s293 + $0x5cc] sm:$0xf]
        %v713 = vld [vmem:[%s293 + $0x5d0] sm:$0xf]
        %v714 = vld [vmem:[%s293 + $0x5d4] sm:$0xf]
        %v715 = vld [vmem:[%s293 + $0x5d8] sm:$0xf]
        %v716 = vld [vmem:[%s293 + $0x5dc] sm:$0xf]
        %v717 = vld [vmem:[%s293 + $0x5e0] sm:$0xf]
        %v718 = vld [vmem:[%s293 + $0x5e4] sm:$0xf]
        %v719 = vld [vmem:[%s293 + $0x5e8] sm:$0xf]
        %v720 = vld [vmem:[%s293 + $0x5ec] sm:$0xf]
        %v721 = vld [vmem:[%s293 + $0x5f0] sm:$0xf]
        %v722 = vld [vmem:[%s293 + $0x5f4] sm:$0xf]
        %v723 = vld [vmem:[%s293 + $0x5f8] sm:$0xf]
        %v724 = vld [vmem:[%s293 + $0x5fc] sm:$0xf]
        %v725 = vld [vmem:[%s293 + $0x600] sm:$0xf]
        %v726 = vld [vmem:[%s293 + $0x604] sm:$0xf]
        %v727 = vld [vmem:[%s293 + $0x608] sm:$0xf]
        %v728 = vld [vmem:[%s293 + $0x60c] sm:$0xf]
        %v729 = vld [vmem:[%s293 + $0x610] sm:$0xf]
        %v730 = vld [vmem:[%s293 + $0x614] sm:$0xf]
        %v731 = vld [vmem:[%s293 + $0x618] sm:$0xf]
        %v732 = vld [vmem:[%s293 + $0x61c] sm:$0xf]
        %v733 = vld [vmem:[%s293 + $0x620] sm:$0xf]
        %v734 = vld [vmem:[%s293 + $0x624] sm:$0xf]
        %v735 = vld [vmem:[%s293 + $0x628] sm:$0xf]
        %v736 = vld [vmem:[%s293 + $0x62c] sm:$0xf]
        %v737 = vld [vmem:[%s293 + $0x630] sm:$0xf]
        %v738 = vld [vmem:[%s293 + $0x634] sm:$0xf]
        %v739 = vld [vmem:[%s293 + $0x638] sm:$0xf]
        %v740 = vld [vmem:[%s293 + $0x63c] sm:$0xf]
        %v741 = vld [vmem:[%s293 + $0x640] sm:$0xf]
        %v742 = vld [vmem:[%s293 + $0x644] sm:$0xf]
        %v743 = vld [vmem:[%s293 + $0x648] sm:$0xf]
        %v744 = vld [vmem:[%s293 + $0x64c] sm:$0xf]
        %v745 = vld [vmem:[%s293 + $0x650] sm:$0xf]
        %v746 = vld [vmem:[%s293 + $0x654] sm:$0xf]
        %v747 = vld [vmem:[%s293 + $0x658] sm:$0xf]
        %v748 = vld [vmem:[%s293 + $0x65c] sm:$0xf]
        %v749 = vld [vmem:[%s293 + $0x660] sm:$0xf]
        %v750 = vld [vmem:[%s293 + $0x664] sm:$0xf]
        %v751 = vld [vmem:[%s293 + $0x668] sm:$0xf]
        %v752 = vld [vmem:[%s293 + $0x66c] sm:$0xf]
        %v753 = vld [vmem:[%s293 + $0x670] sm:$0xf]
        %v754 = vld [vmem:[%s293 + $0x674] sm:$0xf]
        %v755 = vld [vmem:[%s293 + $0x678] sm:$0xf]
        %v756 = vld [vmem:[%s293 + $0x67c] sm:$0xf]
        %v757 = vld [vmem:[%s293 + $0x680] sm:$0xf]
        %v758 = vld [vmem:[%s293 + $0x684] sm:$0xf]
        %v759 = vld [vmem:[%s293 + $0x688] sm:$0xf]
        %v760 = vld [vmem:[%s293 + $0x68c] sm:$0xf]
        %v761 = vld [vmem:[%s293 + $0x690] sm:$0xf]
        %v762 = vld [vmem:[%s293 + $0x694] sm:$0xf]
        %v763 = vld [vmem:[%s293 + $0x698] sm:$0xf]
        %v764 = vld [vmem:[%s293 + $0x69c] sm:$0xf]
        %v765 = vld [vmem:[%s293 + $0x6a0] sm:$0xf]
        %v766 = vld [vmem:[%s293 + $0x6a4] sm:$0xf]
        %v767 = vld [vmem:[%s293 + $0x6a8] sm:$0xf]
        %v768 = vld [vmem:[%s293 + $0x6ac] sm:$0xf]
        %v769 = vld [vmem:[%s293 + $0x6b0] sm:$0xf]
        %v770 = vld [vmem:[%s293 + $0x6b4] sm:$0xf]
        %v771 = vld [vmem:[%s293 + $0x6b8] sm:$0xf]
        %v772 = vld [vmem:[%s293 + $0x6bc] sm:$0xf]
        %v773 = vld [vmem:[%s293 + $0x6c0] sm:$0xf]
        %v774 = vld [vmem:[%s293 + $0x6c4] sm:$0xf]
        %v775 = vld [vmem:[%s293 + $0x6c8] sm:$0xf]
        %v776 = vld [vmem:[%s293 + $0x6cc] sm:$0xf]
        %v777 = vld [vmem:[%s293 + $0x6d0] sm:$0xf]
        %v778 = vld [vmem:[%s293 + $0x6d4] sm:$0xf]
        %v779 = vld [vmem:[%s293 + $0x6d8] sm:$0xf]
        %v780 = vld [vmem:[%s293 + $0x6dc] sm:$0xf]
        %v781 = vld [vmem:[%s293 + $0x6e0] sm:$0xf]
        %v782 = vld [vmem:[%s293 + $0x6e4] sm:$0xf]
        %v783 = vld [vmem:[%s293 + $0x6e8] sm:$0xf]
        %v784 = vld [vmem:[%s293 + $0x6ec] sm:$0xf]
        %v785 = vld [vmem:[%s293 + $0x6f0] sm:$0xf]
        %v786 = vld [vmem:[%s293 + $0x6f4] sm:$0xf]
        %v787 = vld [vmem:[%s293 + $0x6f8] sm:$0xf]
        %v788 = vld [vmem:[%s293 + $0x6fc] sm:$0xf]
        %v789 = vld [vmem:[%s293 + $0x700] sm:$0xf]
        %v790 = vld [vmem:[%s293 + $0x704] sm:$0xf]
        %v791 = vld [vmem:[%s293 + $0x708] sm:$0xf]
        %v792 = vld [vmem:[%s293 + $0x70c] sm:$0xf]
        %v793 = vld [vmem:[%s293 + $0x710] sm:$0xf]
        %v794 = vld [vmem:[%s293 + $0x714] sm:$0xf]
        %v795 = vld [vmem:[%s293 + $0x718] sm:$0xf]
        %v796 = vld [vmem:[%s293 + $0x71c] sm:$0xf]
        %v797 = vld [vmem:[%s293 + $0x720] sm:$0xf]
        %v798 = vld [vmem:[%s293 + $0x724] sm:$0xf]
        %v799 = vld [vmem:[%s293 + $0x728] sm:$0xf]
        %v800 = vld [vmem:[%s293 + $0x72c] sm:$0xf]
        %v801 = vld [vmem:[%s293 + $0x730] sm:$0xf]
        %v802 = vld [vmem:[%s293 + $0x734] sm:$0xf]
        %v803 = vld [vmem:[%s293 + $0x738] sm:$0xf]
        %v804 = vld [vmem:[%s293 + $0x73c] sm:$0xf]
        %v805 = vld [vmem:[%s293 + $0x740] sm:$0xf]
        %v806 = vld [vmem:[%s293 + $0x744] sm:$0xf]
        %v807 = vld [vmem:[%s293 + $0x748] sm:$0xf]
        %v808 = vld [vmem:[%s293 + $0x74c] sm:$0xf]
        %v809 = vld [vmem:[%s293 + $0x750] sm:$0xf]
        %v810 = vld [vmem:[%s293 + $0x754] sm:$0xf]
        %v811 = vld [vmem:[%s293 + $0x758] sm:$0xf]
        %v812 = vld [vmem:[%s293 + $0x75c] sm:$0xf]
        %v813 = vld [vmem:[%s293 + $0x760] sm:$0xf]
        %v814 = vld [vmem:[%s293 + $0x764] sm:$0xf]
        %v815 = vld [vmem:[%s293 + $0x768] sm:$0xf]
        %v816 = vld [vmem:[%s293 + $0x76c] sm:$0xf]
        %v817 = vld [vmem:[%s293 + $0x770] sm:$0xf]
        %v818 = vld [vmem:[%s293 + $0x774] sm:$0xf]
        %v819 = vld [vmem:[%s293 + $0x778] sm:$0xf]
        %v820 = vld [vmem:[%s293 + $0x77c] sm:$0xf]
        %v821 = vld [vmem:[%s293 + $0x780] sm:$0xf]
        %v822 = vld [vmem:[%s293 + $0x784] sm:$0xf]
        %v823 = vld [vmem:[%s293 + $0x788] sm:$0xf]
        %v824 = vld [vmem:[%s293 + $0x78c] sm:$0xf]
        %v825 = vld [vmem:[%s293 + $0x790] sm:$0xf]
        %v826 = vld [vmem:[%s293 + $0x794] sm:$0xf]
        %v827 = vld [vmem:[%s293 + $0x798] sm:$0xf]
        %v828 = vld [vmem:[%s293 + $0x79c] sm:$0xf]
        %v829 = vld [vmem:[%s293 + $0x7a0] sm:$0xf]
        %v830 = vld [vmem:[%s293 + $0x7a4] sm:$0xf]
        %v831 = vld [vmem:[%s293 + $0x7a8] sm:$0xf]
        %v832 = vld [vmem:[%s293 + $0x7ac] sm:$0xf]
        %v833 = vld [vmem:[%s293 + $0x7b0] sm:$0xf]
        %v834 = vld [vmem:[%s293 + $0x7b4] sm:$0xf]
        %v835 = vld [vmem:[%s293 + $0x7b8] sm:$0xf]
        %v836 = vld [vmem:[%s293 + $0x7bc] sm:$0xf]
        %v837 = vld [vmem:[%s293 + $0x7c0] sm:$0xf]
        %v838 = vld [vmem:[%s293 + $0x7c4] sm:$0xf]
        %v839 = vld [vmem:[%s293 + $0x7c8] sm:$0xf]
        %v840 = vld [vmem:[%s293 + $0x7cc] sm:$0xf]
        %v841 = vld [vmem:[%s293 + $0x7d0] sm:$0xf]
        %v842 = vld [vmem:[%s293 + $0x7d4] sm:$0xf]
        %v843 = vld [vmem:[%s293 + $0x7d8] sm:$0xf]
        %v844 = vld [vmem:[%s293 + $0x7dc] sm:$0xf]
        %v845 = vld [vmem:[%s293 + $0x7e0] sm:$0xf]
        %v846 = vld [vmem:[%s293 + $0x7e4] sm:$0xf]
        %v847 = vld [vmem:[%s293 + $0x7e8] sm:$0xf]
        %v848 = vld [vmem:[%s293 + $0x7ec] sm:$0xf]
        %v849 = vld [vmem:[%s293 + $0x7f0] sm:$0xf]
        %v850 = vld [vmem:[%s293 + $0x7f4] sm:$0xf]
        %v851 = vld [vmem:[%s293 + $0x7f8] sm:$0xf]
        %v852 = vld [vmem:[%s293 + $0x7fc] sm:$0xf]
        %v853 = vld [vmem:[%s293 + $0x800] sm:$0xf]
        %v854 = vld [vmem:[%s293 + $0x804] sm:$0xf]
        %v855 = vld [vmem:[%s293 + $0x808] sm:$0xf]
        %v856 = vld [vmem:[%s293 + $0x80c] sm:$0xf]
        %v857 = vld [vmem:[%s293 + $0x810] sm:$0xf]
        %v858 = vld [vmem:[%s293 + $0x814] sm:$0xf]
        %v859 = vld [vmem:[%s293 + $0x818] sm:$0xf]
        %v860 = vld [vmem:[%s293 + $0x81c] sm:$0xf]
        %v861 = vld [vmem:[%s293 + $0x820] sm:$0xf]
        %v862 = vld [vmem:[%s293 + $0x824] sm:$0xf]
        %v863 = vld [vmem:[%s293 + $0x828] sm:$0xf]
        %v864 = vld [vmem:[%s293 + $0x82c] sm:$0xf]
        %v865 = vld [vmem:[%s293 + $0x830] sm:$0xf]
        %v866 = vld [vmem:[%s293 + $0x834] sm:$0xf]
        %v867 = vld [vmem:[%s293 + $0x838] sm:$0xf]
        %v868 = vld [vmem:[%s293 + $0x83c] sm:$0xf]
        %v869 = vld [vmem:[%s293 + $0x840] sm:$0xf]
        %v870 = vld [vmem:[%s293 + $0x844] sm:$0xf]
        %v871 = vld [vmem:[%s293 + $0x848] sm:$0xf]
        %v872 = vld [vmem:[%s293 + $0x84c] sm:$0xf]
        %v873 = vld [vmem:[%s293 + $0x850] sm:$0xf]
        %v874 = vld [vmem:[%s293 + $0x854] sm:$0xf]
        %v875 = vld [vmem:[%s293 + $0x858] sm:$0xf]
        %v876 = vld [vmem:[%s293 + $0x85c] sm:$0xf]
        %v877 = vld [vmem:[%s293 + $0x860] sm:$0xf]
        %v878 = vld [vmem:[%s293 + $0x864] sm:$0xf]
        %v879 = vld [vmem:[%s293 + $0x868] sm:$0xf]
        %v880 = vld [vmem:[%s293 + $0x86c] sm:$0xf]
        %v881 = vld [vmem:[%s293 + $0x870] sm:$0xf]
        %v882 = vld [vmem:[%s293 + $0x874] sm:$0xf]
        %v883 = vld [vmem:[%s293 + $0x878] sm:$0xf]
        %v884 = vld [vmem:[%s293 + $0x87c] sm:$0xf]
        %v885 = vld [vmem:[%s293 + $0x880] sm:$0xf]
        %v886 = vld [vmem:[%s293 + $0x884] sm:$0xf]
        %v887 = vld [vmem:[%s293 + $0x888] sm:$0xf]
        %v888 = vld [vmem:[%s293 + $0x88c] sm:$0xf]
        %v889 = vld [vmem:[%s293 + $0x890] sm:$0xf]
        %v890 = vld [vmem:[%s293 + $0x894] sm:$0xf]
        %v891 = vld [vmem:[%s293 + $0x898] sm:$0xf]
        %v892 = vld [vmem:[%s293 + $0x89c] sm:$0xf]
        %v893 = vld [vmem:[%s293 + $0x8a0] sm:$0xf]
        %v894 = vld [vmem:[%s293 + $0x8a4] sm:$0xf]
        %v895 = vld [vmem:[%s293 + $0x8a8] sm:$0xf]
        %v896 = vld [vmem:[%s293 + $0x8ac] sm:$0xf]
        %v897 = vld [vmem:[%s293 + $0x8b0] sm:$0xf]
        %v898 = vld [vmem:[%s293 + $0x8b4] sm:$0xf]
        %v899 = vld [vmem:[%s293 + $0x8b8] sm:$0xf]
        %v900 = vld [vmem:[%s293 + $0x8bc] sm:$0xf]
        %v901 = vld [vmem:[%s293 + $0x8c0] sm:$0xf]
        %v902 = vld [vmem:[%s293 + $0x8c4] sm:$0xf]
        %v903 = vld [vmem:[%s293 + $0x8c8] sm:$0xf]
        %v904 = vld [vmem:[%s293 + $0x8cc] sm:$0xf]
        %v905 = vld [vmem:[%s293 + $0x8d0] sm:$0xf]
        %v906 = vld [vmem:[%s293 + $0x8d4] sm:$0xf]
        %v907 = vld [vmem:[%s293 + $0x8d8] sm:$0xf]
        %v908 = vld [vmem:[%s293 + $0x8dc] sm:$0xf]
        %v909 = vld [vmem:[%s293 + $0x8e0] sm:$0xf]
        %v910 = vld [vmem:[%s293 + $0x8e4] sm:$0xf]
        %v911 = vld [vmem:[%s293 + $0x8e8] sm:$0xf]
        %v912 = vld [vmem:[%s293 + $0x8ec] sm:$0xf]
        %v913 = vld [vmem:[%s293 + $0x8f0] sm:$0xf]
        %v914 = vld [vmem:[%s293 + $0x8f4] sm:$0xf]
        %v915 = vld [vmem:[%s293 + $0x8f8] sm:$0xf]
        %v916 = vld [vmem:[%s293 + $0x8fc] sm:$0xf]
        %v917 = vld [vmem:[%s293 + $0x900] sm:$0xf]
        %v918 = vld [vmem:[%s293 + $0x904] sm:$0xf]
        %v919 = vld [vmem:[%s293 + $0x908] sm:$0xf]
        %v920 = vld [vmem:[%s293 + $0x90c] sm:$0xf]
        %v921 = vld [vmem:[%s293 + $0x910] sm:$0xf]
        %v922 = vld [vmem:[%s293 + $0x914] sm:$0xf]
        %v923 = vld [vmem:[%s293 + $0x918] sm:$0xf]
        %v924 = vld [vmem:[%s293 + $0x91c] sm:$0xf]
        %v925 = vld [vmem:[%s293 + $0x920] sm:$0xf]
        %v926 = vld [vmem:[%s293 + $0x924] sm:$0xf]
        %v927 = vld [vmem:[%s293 + $0x928] sm:$0xf]
        %v928 = vld [vmem:[%s293 + $0x92c] sm:$0xf]
        %v929 = vld [vmem:[%s293 + $0x930] sm:$0xf]
        %v930 = vld [vmem:[%s293 + $0x934] sm:$0xf]
        %v931 = vld [vmem:[%s293 + $0x938] sm:$0xf]
        %v932 = vld [vmem:[%s293 + $0x93c] sm:$0xf]
        %v933 = vld [vmem:[%s293 + $0x940] sm:$0xf]
        %v934 = vld [vmem:[%s293 + $0x944] sm:$0xf]
        %v935 = vld [vmem:[%s293 + $0x948] sm:$0xf]
        %v936 = vld [vmem:[%s293 + $0x94c] sm:$0xf]
        %v937 = vld [vmem:[%s293 + $0x950] sm:$0xf]
        %v938 = vld [vmem:[%s293 + $0x954] sm:$0xf]
        %v939 = vld [vmem:[%s293 + $0x958] sm:$0xf]
        %v940 = vld [vmem:[%s293 + $0x95c] sm:$0xf]
        %v941 = vld [vmem:[%s293 + $0x960] sm:$0xf]
        %v942 = vld [vmem:[%s293 + $0x964] sm:$0xf]
        %v943 = vld [vmem:[%s293 + $0x968] sm:$0xf]
        %v944 = vld [vmem:[%s293 + $0x96c] sm:$0xf]
        %v945 = vld [vmem:[%s293 + $0x970] sm:$0xf]
        %v946 = vld [vmem:[%s293 + $0x974] sm:$0xf]
        %v947 = vld [vmem:[%s293 + $0x978] sm:$0xf]
        %v948 = vld [vmem:[%s293 + $0x97c] sm:$0xf]
        %v949 = vld [vmem:[%s293 + $0x980] sm:$0xf]
        %v950 = vld [vmem:[%s293 + $0x984] sm:$0xf]
        %v951 = vld [vmem:[%s293 + $0x988] sm:$0xf]
        %v952 = vld [vmem:[%s293 + $0x98c] sm:$0xf]
        %v953 = vld [vmem:[%s293 + $0x990] sm:$0xf]
        %v954 = vld [vmem:[%s293 + $0x994] sm:$0xf]
        %v955 = vld [vmem:[%s293 + $0x998] sm:$0xf]
        %v956 = vld [vmem:[%s293 + $0x99c] sm:$0xf]
        %v957 = vld [vmem:[%s293 + $0x9a0] sm:$0xf]
        %v958 = vld [vmem:[%s293 + $0x9a4] sm:$0xf]
        %v959 = vld [vmem:[%s293 + $0x9a8] sm:$0xf]
        %v960 = vld [vmem:[%s293 + $0x9ac] sm:$0xf]
        %v961 = vld [vmem:[%s293 + $0x9b0] sm:$0xf]
        %v962 = vld [vmem:[%s293 + $0x9b4] sm:$0xf]
        %v963 = vld [vmem:[%s293 + $0x9b8] sm:$0xf]
        %v964 = vld [vmem:[%s293 + $0x9bc] sm:$0xf]
        %v965 = vld [vmem:[%s293 + $0x9c0] sm:$0xf]
        %v966 = vld [vmem:[%s293 + $0x9c4] sm:$0xf]
        %v967 = vld [vmem:[%s293 + $0x9c8] sm:$0xf]
        %v968 = vld [vmem:[%s293 + $0x9cc] sm:$0xf]
        %v969 = vld [vmem:[%s293 + $0x9d0] sm:$0xf]
        %v970 = vld [vmem:[%s293 + $0x9d4] sm:$0xf]
        %v971 = vld [vmem:[%s293 + $0x9d8] sm:$0xf]
        %v972 = vld [vmem:[%s293 + $0x9dc] sm:$0xf]
        %v973 = vld [vmem:[%s293 + $0x9e0] sm:$0xf]
        %v974 = vld [vmem:[%s293 + $0x9e4] sm:$0xf]
        %v975 = vld [vmem:[%s293 + $0x9e8] sm:$0xf]
        %v976 = vld [vmem:[%s293 + $0x9ec] sm:$0xf]
        %v977 = vld [vmem:[%s293 + $0x9f0] sm:$0xf]
        %v978 = vld [vmem:[%s293 + $0x9f4] sm:$0xf]
        %v979 = vld [vmem:[%s293 + $0x9f8] sm:$0xf]
        %v980 = vld [vmem:[%s293 + $0x9fc] sm:$0xf]
        %v981 = vld [vmem:[%s293 + $0xa00] sm:$0xf]
        %v982 = vld [vmem:[%s293 + $0xa04] sm:$0xf]
        %v983 = vld [vmem:[%s293 + $0xa08] sm:$0xf]
        %v984 = vld [vmem:[%s293 + $0xa0c] sm:$0xf]
        %v985 = vld [vmem:[%s293 + $0xa10] sm:$0xf]
        %v986 = vld [vmem:[%s293 + $0xa14] sm:$0xf]
        %v987 = vld [vmem:[%s293 + $0xa18] sm:$0xf]
        %v988 = vld [vmem:[%s293 + $0xa1c] sm:$0xf]
        %v989 = vld [vmem:[%s293 + $0xa20] sm:$0xf]
        %v990 = vld [vmem:[%s293 + $0xa24] sm:$0xf]
        %v991 = vld [vmem:[%s293 + $0xa28] sm:$0xf]
        %v992 = vld [vmem:[%s293 + $0xa2c] sm:$0xf]
        %v993 = vld [vmem:[%s293 + $0xa30] sm:$0xf]
        %v994 = vld [vmem:[%s293 + $0xa34] sm:$0xf]
        %v995 = vld [vmem:[%s293 + $0xa38] sm:$0xf]
        %v996 = vld [vmem:[%s293 + $0xa3c] sm:$0xf]
        %v997 = vld [vmem:[%s293 + $0xa40] sm:$0xf]
        %v998 = vld [vmem:[%s293 + $0xa44] sm:$0xf]
        %v999 = vld [vmem:[%s293 + $0xa48] sm:$0xf]
        %v1000 = vld [vmem:[%s293 + $0xa4c] sm:$0xf]
        %v1001 = vld [vmem:[%s293 + $0xa50] sm:$0xf]
        %v1002 = vld [vmem:[%s293 + $0xa54] sm:$0xf]
        %v1003 = vld [vmem:[%s293 + $0xa58] sm:$0xf]
        %v1004 = vld [vmem:[%s293 + $0xa5c] sm:$0xf]
        %v1005 = vld [vmem:[%s293 + $0xa60] sm:$0xf]
        %v1006 = vld [vmem:[%s293 + $0xa64] sm:$0xf]
        %v1007 = vld [vmem:[%s293 + $0xa68] sm:$0xf]
        %v1008 = vld [vmem:[%s293 + $0xa6c] sm:$0xf]
        %v1009 = vld [vmem:[%s293 + $0xa70] sm:$0xf]
        %v1010 = vld [vmem:[%s293 + $0xa74] sm:$0xf]
        %v1011 = vld [vmem:[%s293 + $0xa78] sm:$0xf]
        %v1012 = vld [vmem:[%s293 + $0xa7c] sm:$0xf]
        %v1013 = vld [vmem:[%s293 + $0xa80] sm:$0xf]
        %v1014 = vld [vmem:[%s293 + $0xa84] sm:$0xf]
        %v1015 = vld [vmem:[%s293 + $0xa88] sm:$0xf]
        %v1016 = vld [vmem:[%s293 + $0xa8c] sm:$0xf]
        %v1017 = vld [vmem:[%s293 + $0xa90] sm:$0xf]
        %v1018 = vld [vmem:[%s293 + $0xa94] sm:$0xf]
        %v1019 = vld [vmem:[%s293 + $0xa98] sm:$0xf]
        %v1020 = vld [vmem:[%s293 + $0xa9c] sm:$0xf]
        %v1021 = vld [vmem:[%s293 + $0xaa0] sm:$0xf]
        %v1022 = vld [vmem:[%s293 + $0xaa4] sm:$0xf]
        %v1023 = vld [vmem:[%s293 + $0xaa8] sm:$0xf]
        %v1024 = vld [vmem:[%s293 + $0xaac] sm:$0xf]
        %v1025 = vld [vmem:[%s293 + $0xab0] sm:$0xf]
        %v1026 = vld [vmem:[%s293 + $0xab4] sm:$0xf]
        %v1027 = vld [vmem:[%s293 + $0xab8] sm:$0xf]
        %v1028 = vld [vmem:[%s293 + $0xabc] sm:$0xf]
        %v1029 = vld [vmem:[%s293 + $0xac0] sm:$0xf]
        %v1030 = vld [vmem:[%s293 + $0xac4] sm:$0xf]
        %v1031 = vld [vmem:[%s293 + $0xac8] sm:$0xf]
        %v1032 = vld [vmem:[%s293 + $0xacc] sm:$0xf]
        %v1033 = vld [vmem:[%s293 + $0xad0] sm:$0xf]
        %v1034 = vld [vmem:[%s293 + $0xad4] sm:$0xf]
        %v1035 = vld [vmem:[%s293 + $0xad8] sm:$0xf]
        %v1036 = vld [vmem:[%s293 + $0xadc] sm:$0xf]
        %v1037 = vld [vmem:[%s293 + $0xae0] sm:$0xf]
        %v1038 = vld [vmem:[%s293 + $0xae4] sm:$0xf]
        %v1039 = vld [vmem:[%s293 + $0xae8] sm:$0xf]
        %v1040 = vld [vmem:[%s293 + $0xaec] sm:$0xf]
        %v1041 = vld [vmem:[%s293 + $0xaf0] sm:$0xf]
        %v1042 = vld [vmem:[%s293 + $0xaf4] sm:$0xf]
        %v1043 = vld [vmem:[%s293 + $0xaf8] sm:$0xf]
        %v1044 = vld [vmem:[%s293 + $0xafc] sm:$0xf]
        %v1045 = vld [vmem:[%s293 + $0xb00] sm:$0xf]
        %v1046 = vld [vmem:[%s293 + $0xb04] sm:$0xf]
        %v1047 = vld [vmem:[%s293 + $0xb08] sm:$0xf]
        %v1048 = vld [vmem:[%s293 + $0xb0c] sm:$0xf]
        %v1049 = vld [vmem:[%s293 + $0xb10] sm:$0xf]
        %v1050 = vld [vmem:[%s293 + $0xb14] sm:$0xf]
        %v1051 = vld [vmem:[%s293 + $0xb18] sm:$0xf]
        %v1052 = vld [vmem:[%s293 + $0xb1c] sm:$0xf]
        %v1053 = vld [vmem:[%s293 + $0xb20] sm:$0xf]
        %v1054 = vld [vmem:[%s293 + $0xb24] sm:$0xf]
        %v1055 = vld [vmem:[%s293 + $0xb28] sm:$0xf]
        %v1056 = vld [vmem:[%s293 + $0xb2c] sm:$0xf]
        %v1057 = vld [vmem:[%s293 + $0xb30] sm:$0xf]
        %v1058 = vld [vmem:[%s293 + $0xb34] sm:$0xf]
        %v1059 = vld [vmem:[%s293 + $0xb38] sm:$0xf]
        %v1060 = vld [vmem:[%s293 + $0xb3c] sm:$0xf]
        %v1061 = vld [vmem:[%s293 + $0xb40] sm:$0xf]
        %v1062 = vld [vmem:[%s293 + $0xb44] sm:$0xf]
        %v1063 = vld [vmem:[%s293 + $0xb48] sm:$0xf]
        %v1064 = vld [vmem:[%s293 + $0xb4c] sm:$0xf]
        %v1065 = vld [vmem:[%s293 + $0xb50] sm:$0xf]
        %v1066 = vld [vmem:[%s293 + $0xb54] sm:$0xf]
        %v1067 = vld [vmem:[%s293 + $0xb58] sm:$0xf]
        %v1068 = vld [vmem:[%s293 + $0xb5c] sm:$0xf]
        %v1069 = vld [vmem:[%s293 + $0xb60] sm:$0xf]
        %v1070 = vld [vmem:[%s293 + $0xb64] sm:$0xf]
        %v1071 = vld [vmem:[%s293 + $0xb68] sm:$0xf]
        %v1072 = vld [vmem:[%s293 + $0xb6c] sm:$0xf]
        %v1073 = vld [vmem:[%s293 + $0xb70] sm:$0xf]
        %v1074 = vld [vmem:[%s293 + $0xb74] sm:$0xf]
        %v1075 = vld [vmem:[%s293 + $0xb78] sm:$0xf]
        %v1076 = vld [vmem:[%s293 + $0xb7c] sm:$0xf]
        %v1077 = vld [vmem:[%s293 + $0xb80] sm:$0xf]
        %v1078 = vld [vmem:[%s293 + $0xb84] sm:$0xf]
        %v1079 = vld [vmem:[%s293 + $0xb88] sm:$0xf]
        %v1080 = vld [vmem:[%s293 + $0xb8c] sm:$0xf]
        %v1081 = vld [vmem:[%s293 + $0xb90] sm:$0xf]
        %v1082 = vld [vmem:[%s293 + $0xb94] sm:$0xf]
        %v1083 = vld [vmem:[%s293 + $0xb98] sm:$0xf]
        %v1084 = vld [vmem:[%s293 + $0xb9c] sm:$0xf]
        %v1085 = vld [vmem:[%s293 + $0xba0] sm:$0xf]
        %v1086 = vld [vmem:[%s293 + $0xba4] sm:$0xf]
        %v1087 = vld [vmem:[%s293 + $0xba8] sm:$0xf]
        %v1088 = vld [vmem:[%s293 + $0xbac] sm:$0xf]
        %v1089 = vld [vmem:[%s293 + $0xbb0] sm:$0xf]
        %v1090 = vld [vmem:[%s293 + $0xbb4] sm:$0xf]
        %v1091 = vld [vmem:[%s293 + $0xbb8] sm:$0xf]
        %v1092 = vld [vmem:[%s293 + $0xbbc] sm:$0xf]
        %v1093 = vld [vmem:[%s293 + $0xbc0] sm:$0xf]
        %v1094 = vld [vmem:[%s293 + $0xbc4] sm:$0xf]
        %v1095 = vld [vmem:[%s293 + $0xbc8] sm:$0xf]
        %v1096 = vld [vmem:[%s293 + $0xbcc] sm:$0xf]
        %v1097 = vld [vmem:[%s293 + $0xbd0] sm:$0xf]
        %v1098 = vld [vmem:[%s293 + $0xbd4] sm:$0xf]
        %v1099 = vld [vmem:[%s293 + $0xbd8] sm:$0xf]
        %v1100 = vld [vmem:[%s293 + $0xbdc] sm:$0xf]
        %v1101 = vld [vmem:[%s293 + $0xbe0] sm:$0xf]
        %v1102 = vld [vmem:[%s293 + $0xbe4] sm:$0xf]
        %v1103 = vld [vmem:[%s293 + $0xbe8] sm:$0xf]
        %v1104 = vld [vmem:[%s293 + $0xbec] sm:$0xf]
        %v1105 = vld [vmem:[%s293 + $0xbf0] sm:$0xf]
        %v1106 = vld [vmem:[%s293 + $0xbf4] sm:$0xf]
        %v1107 = vld [vmem:[%s293 + $0xbf8] sm:$0xf]
        %v1108 = vld [vmem:[%s293 + $0xbfc] sm:$0xf]
        %v1109 = vld [vmem:[%s293 + $0xc00] sm:$0xf]
        %v1110 = vld [vmem:[%s293 + $0xc04] sm:$0xf]
        %v1111 = vld [vmem:[%s293 + $0xc08] sm:$0xf]
        %v1112 = vld [vmem:[%s293 + $0xc0c] sm:$0xf]
        %v1113 = vld [vmem:[%s293 + $0xc10] sm:$0xf]
        %v1114 = vld [vmem:[%s293 + $0xc14] sm:$0xf]
        %v1115 = vld [vmem:[%s293 + $0xc18] sm:$0xf]
        %v1116 = vld [vmem:[%s293 + $0xc1c] sm:$0xf]
        %v1117 = vld [vmem:[%s293 + $0xc20] sm:$0xf]
        %v1118 = vld [vmem:[%s293 + $0xc24] sm:$0xf]
        %v1119 = vld [vmem:[%s293 + $0xc28] sm:$0xf]
        %v1120 = vld [vmem:[%s293 + $0xc2c] sm:$0xf]
        %v1121 = vld [vmem:[%s293 + $0xc30] sm:$0xf]
        %v1122 = vld [vmem:[%s293 + $0xc34] sm:$0xf]
        %v1123 = vld [vmem:[%s293 + $0xc38] sm:$0xf]
        %v1124 = vld [vmem:[%s293 + $0xc3c] sm:$0xf]
        %v1125 = vld [vmem:[%s293 + $0xc40] sm:$0xf]
        %v1126 = vld [vmem:[%s293 + $0xc44] sm:$0xf]
        %v1127 = vld [vmem:[%s293 + $0xc48] sm:$0xf]
        %v1128 = vld [vmem:[%s293 + $0xc4c] sm:$0xf]
        %v1129 = vld [vmem:[%s293 + $0xc50] sm:$0xf]
        %v1130 = vld [vmem:[%s293 + $0xc54] sm:$0xf]
        %v1131 = vld [vmem:[%s293 + $0xc58] sm:$0xf]
        %v1132 = vld [vmem:[%s293 + $0xc5c] sm:$0xf]
        %v1133 = vld [vmem:[%s293 + $0xc60] sm:$0xf]
        %v1134 = vld [vmem:[%s293 + $0xc64] sm:$0xf]
        %v1135 = vld [vmem:[%s293 + $0xc68] sm:$0xf]
        %v1136 = vld [vmem:[%s293 + $0xc6c] sm:$0xf]
        %v1137 = vld [vmem:[%s293 + $0xc70] sm:$0xf]
        %v1138 = vld [vmem:[%s293 + $0xc74] sm:$0xf]
        %v1139 = vld [vmem:[%s293 + $0xc78] sm:$0xf]
        %v1140 = vld [vmem:[%s293 + $0xc7c] sm:$0xf]
        %v1141 = vld [vmem:[%s293 + $0xc80] sm:$0xf]
        %v1142 = vld [vmem:[%s293 + $0xc84] sm:$0xf]
        %v1143 = vld [vmem:[%s293 + $0xc88] sm:$0xf]
        %v1144 = vld [vmem:[%s293 + $0xc8c] sm:$0xf]
        %v1145 = vld [vmem:[%s293 + $0xc90] sm:$0xf]
        %v1146 = vld [vmem:[%s293 + $0xc94] sm:$0xf]
        %v1147 = vld [vmem:[%s293 + $0xc98] sm:$0xf]
        %v1148 = vld [vmem:[%s293 + $0xc9c] sm:$0xf]
        %v1149 = vld [vmem:[%s293 + $0xca0] sm:$0xf]
        %v1150 = vld [vmem:[%s293 + $0xca4] sm:$0xf]
        %v1151 = vld [vmem:[%s293 + $0xca8] sm:$0xf]
        %v1152 = vld [vmem:[%s293 + $0xcac] sm:$0xf]
        %v1153 = vld [vmem:[%s293 + $0xcb0] sm:$0xf]
        %v1154 = vld [vmem:[%s293 + $0xcb4] sm:$0xf]
        %v1155 = vld [vmem:[%s293 + $0xcb8] sm:$0xf]
        %v1156 = vld [vmem:[%s293 + $0xcbc] sm:$0xf]
        %v1157 = vld [vmem:[%s293 + $0xcc0] sm:$0xf]
        %v1158 = vld [vmem:[%s293 + $0xcc4] sm:$0xf]
        %v1159 = vld [vmem:[%s293 + $0xcc8] sm:$0xf]
        %v1160 = vld [vmem:[%s293 + $0xccc] sm:$0xf]
        %v1161 = vld [vmem:[%s293 + $0xcd0] sm:$0xf]
        %v1162 = vld [vmem:[%s293 + $0xcd4] sm:$0xf]
        %v1163 = vld [vmem:[%s293 + $0xcd8] sm:$0xf]
        %v1164 = vld [vmem:[%s293 + $0xcdc] sm:$0xf]
        %v1165 = vld [vmem:[%s293 + $0xce0] sm:$0xf]
        %v1166 = vld [vmem:[%s293 + $0xce4] sm:$0xf]
        %v1167 = vld [vmem:[%s293 + $0xce8] sm:$0xf]
        %v1168 = vld [vmem:[%s293 + $0xcec] sm:$0xf]
        %v1169 = vld [vmem:[%s293 + $0xcf0] sm:$0xf]
        %v1170 = vld [vmem:[%s293 + $0xcf4] sm:$0xf]
        %v1171 = vld [vmem:[%s293 + $0xcf8] sm:$0xf]
        %v1172 = vld [vmem:[%s293 + $0xcfc] sm:$0xf]
        %v1173 = vld [vmem:[%s293 + $0xd00] sm:$0xf]
        %v1174 = vld [vmem:[%s293 + $0xd04] sm:$0xf]
        %v1175 = vld [vmem:[%s293 + $0xd08] sm:$0xf]
        %v1176 = vld [vmem:[%s293 + $0xd0c] sm:$0xf]
        %v1177 = vld [vmem:[%s293 + $0xd10] sm:$0xf]
        %v1178 = vld [vmem:[%s293 + $0xd14] sm:$0xf]
        %v1179 = vld [vmem:[%s293 + $0xd18] sm:$0xf]
        %v1180 = vld [vmem:[%s293 + $0xd1c] sm:$0xf]
        %v1181 = vld [vmem:[%s293 + $0xd20] sm:$0xf]
        %v1182 = vld [vmem:[%s293 + $0xd24] sm:$0xf]
        %v1183 = vld [vmem:[%s293 + $0xd28] sm:$0xf]
        %v1184 = vld [vmem:[%s293 + $0xd2c] sm:$0xf]
        %v1185 = vld [vmem:[%s293 + $0xd30] sm:$0xf]
        %v1186 = vld [vmem:[%s293 + $0xd34] sm:$0xf]
        %v1187 = vld [vmem:[%s293 + $0xd38] sm:$0xf]
        %v1188 = vld [vmem:[%s293 + $0xd3c] sm:$0xf]
        %v1189 = vld [vmem:[%s293 + $0xd40] sm:$0xf]
        %v1190 = vld [vmem:[%s293 + $0xd44] sm:$0xf]
        %v1191 = vld [vmem:[%s293 + $0xd48] sm:$0xf]
        %v1192 = vld [vmem:[%s293 + $0xd4c] sm:$0xf]
        %v1193 = vld [vmem:[%s293 + $0xd50] sm:$0xf]
        %v1194 = vld [vmem:[%s293 + $0xd54] sm:$0xf]
        %v1195 = vld [vmem:[%s293 + $0xd58] sm:$0xf]
        %v1196 = vld [vmem:[%s293 + $0xd5c] sm:$0xf]
        %v1197 = vld [vmem:[%s293 + $0xd60] sm:$0xf]
        %v1198 = vld [vmem:[%s293 + $0xd64] sm:$0xf]
        %v1199 = vld [vmem:[%s293 + $0xd68] sm:$0xf]
        %v1200 = vld [vmem:[%s293 + $0xd6c] sm:$0xf]
        %v1201 = vld [vmem:[%s293 + $0xd70] sm:$0xf]
        %v1202 = vld [vmem:[%s293 + $0xd74] sm:$0xf]
        %v1203 = vld [vmem:[%s293 + $0xd78] sm:$0xf]
        %v1204 = vld [vmem:[%s293 + $0xd7c] sm:$0xf]
        %v1205 = vld [vmem:[%s293 + $0xd80] sm:$0xf]
        %v1206 = vld [vmem:[%s293 + $0xd84] sm:$0xf]
        %v1207 = vld [vmem:[%s293 + $0xd88] sm:$0xf]
        %v1208 = vld [vmem:[%s293 + $0xd8c] sm:$0xf]
        %v1209 = vld [vmem:[%s293 + $0xd90] sm:$0xf]
        %v1210 = vld [vmem:[%s293 + $0xd94] sm:$0xf]
        %v1211 = vld [vmem:[%s293 + $0xd98] sm:$0xf]
        %v1212 = vld [vmem:[%s293 + $0xd9c] sm:$0xf]
        %v1213 = vld [vmem:[%s293 + $0xda0] sm:$0xf]
        %v1214 = vld [vmem:[%s293 + $0xda4] sm:$0xf]
        %v1215 = vld [vmem:[%s293 + $0xda8] sm:$0xf]
        %v1216 = vld [vmem:[%s293 + $0xdac] sm:$0xf]
        %v1217 = vld [vmem:[%s293 + $0xdb0] sm:$0xf]
        %v1218 = vld [vmem:[%s293 + $0xdb4] sm:$0xf]
        %v1219 = vld [vmem:[%s293 + $0xdb8] sm:$0xf]
        %v1220 = vld [vmem:[%s293 + $0xdbc] sm:$0xf]
        %v1221 = vld [vmem:[%s293 + $0xdc0] sm:$0xf]
        %v1222 = vld [vmem:[%s293 + $0xdc4] sm:$0xf]
        %v1223 = vld [vmem:[%s293 + $0xdc8] sm:$0xf]
        %v1224 = vld [vmem:[%s293 + $0xdcc] sm:$0xf]
        %v1225 = vld [vmem:[%s293 + $0xdd0] sm:$0xf]
        %v1226 = vld [vmem:[%s293 + $0xdd4] sm:$0xf]
        %v1227 = vld [vmem:[%s293 + $0xdd8] sm:$0xf]
        %v1228 = vld [vmem:[%s293 + $0xddc] sm:$0xf]
        %v1229 = vld [vmem:[%s293 + $0xde0] sm:$0xf]
        %v1230 = vld [vmem:[%s293 + $0xde4] sm:$0xf]
        %v1231 = vld [vmem:[%s293 + $0xde8] sm:$0xf]
        %v1232 = vld [vmem:[%s293 + $0xdec] sm:$0xf]
        %v1233 = vld [vmem:[%s293 + $0xdf0] sm:$0xf]
        %v1234 = vld [vmem:[%s293 + $0xdf4] sm:$0xf]
        %v1235 = vld [vmem:[%s293 + $0xdf8] sm:$0xf]
        %v1236 = vld [vmem:[%s293 + $0xdfc] sm:$0xf]
        %v1237 = vld [vmem:[%s293 + $0xe00] sm:$0xf]
        %v1238 = vld [vmem:[%s293 + $0xe04] sm:$0xf]
        %v1239 = vld [vmem:[%s293 + $0xe08] sm:$0xf]
        %v1240 = vld [vmem:[%s293 + $0xe0c] sm:$0xf]
        %v1241 = vld [vmem:[%s293 + $0xe10] sm:$0xf]
        %v1242 = vld [vmem:[%s293 + $0xe14] sm:$0xf]
        %v1243 = vld [vmem:[%s293 + $0xe18] sm:$0xf]
        %v1244 = vld [vmem:[%s293 + $0xe1c] sm:$0xf]
        %v1245 = vld [vmem:[%s293 + $0xe20] sm:$0xf]
        %v1246 = vld [vmem:[%s293 + $0xe24] sm:$0xf]
        %v1247 = vld [vmem:[%s293 + $0xe28] sm:$0xf]
        %v1248 = vld [vmem:[%s293 + $0xe2c] sm:$0xf]
        %v1249 = vld [vmem:[%s293 + $0xe30] sm:$0xf]
        %v1250 = vld [vmem:[%s293 + $0xe34] sm:$0xf]
        %v1251 = vld [vmem:[%s293 + $0xe38] sm:$0xf]
        %v1252 = vld [vmem:[%s293 + $0xe3c] sm:$0xf]
        %v1253 = vld [vmem:[%s293 + $0xe40] sm:$0xf]
        %v1254 = vld [vmem:[%s293 + $0xe44] sm:$0xf]
        %v1255 = vld [vmem:[%s293 + $0xe48] sm:$0xf]
        %v1256 = vld [vmem:[%s293 + $0xe4c] sm:$0xf]
        %v1257 = vld [vmem:[%s293 + $0xe50] sm:$0xf]
        %v1258 = vld [vmem:[%s293 + $0xe54] sm:$0xf]
        %v1259 = vld [vmem:[%s293 + $0xe58] sm:$0xf]
        %v1260 = vld [vmem:[%s293 + $0xe5c] sm:$0xf]
        %v1261 = vld [vmem:[%s293 + $0xe60] sm:$0xf]
        %v1262 = vld [vmem:[%s293 + $0xe64] sm:$0xf]
        %v1263 = vld [vmem:[%s293 + $0xe68] sm:$0xf]
        %v1264 = vld [vmem:[%s293 + $0xe6c] sm:$0xf]
        %v1265 = vld [vmem:[%s293 + $0xe70] sm:$0xf]
        %v1266 = vld [vmem:[%s293 + $0xe74] sm:$0xf]
        %v1267 = vld [vmem:[%s293 + $0xe78] sm:$0xf]
        %v1268 = vld [vmem:[%s293 + $0xe7c] sm:$0xf]
        %v1269 = vld [vmem:[%s293 + $0xe80] sm:$0xf]
        %v1270 = vld [vmem:[%s293 + $0xe84] sm:$0xf]
        %v1271 = vld [vmem:[%s293 + $0xe88] sm:$0xf]
        %v1272 = vld [vmem:[%s293 + $0xe8c] sm:$0xf]
        %v1273 = vld [vmem:[%s293 + $0xe90] sm:$0xf]
        %v1274 = vld [vmem:[%s293 + $0xe94] sm:$0xf]
        %v1275 = vld [vmem:[%s293 + $0xe98] sm:$0xf]
        %v1276 = vld [vmem:[%s293 + $0xe9c] sm:$0xf]
        %v1277 = vld [vmem:[%s293 + $0xea0] sm:$0xf]
        %v1278 = vld [vmem:[%s293 + $0xea4] sm:$0xf]
        %v1279 = vld [vmem:[%s293 + $0xea8] sm:$0xf]
        %v1280 = vld [vmem:[%s293 + $0xeac] sm:$0xf]
        %v1281 = vld [vmem:[%s293 + $0xeb0] sm:$0xf]
        %v1282 = vld [vmem:[%s293 + $0xeb4] sm:$0xf]
        %v1283 = vld [vmem:[%s293 + $0xeb8] sm:$0xf]
        %v1284 = vld [vmem:[%s293 + $0xebc] sm:$0xf]
        %v1285 = vld [vmem:[%s293 + $0xec0] sm:$0xf]
        %v1286 = vld [vmem:[%s293 + $0xec4] sm:$0xf]
        %v1287 = vld [vmem:[%s293 + $0xec8] sm:$0xf]
        %v1288 = vld [vmem:[%s293 + $0xecc] sm:$0xf]
        %v1289 = vld [vmem:[%s293 + $0xed0] sm:$0xf]
        %v1290 = vld [vmem:[%s293 + $0xed4] sm:$0xf]
        %v1291 = vld [vmem:[%s293 + $0xed8] sm:$0xf]
        %v1292 = vld [vmem:[%s293 + $0xedc] sm:$0xf]
        %v1293 = vld [vmem:[%s293 + $0xee0] sm:$0xf]
        %v1294 = vld [vmem:[%s293 + $0xee4] sm:$0xf]
        %v1295 = vld [vmem:[%s293 + $0xee8] sm:$0xf]
        %v1296 = vld [vmem:[%s293 + $0xeec] sm:$0xf]
        %v1297 = vld [vmem:[%s293 + $0xef0] sm:$0xf]
        %v1298 = vld [vmem:[%s293 + $0xef4] sm:$0xf]
        %v1299 = vld [vmem:[%s293 + $0xef8] sm:$0xf]
        %v1300 = vld [vmem:[%s293 + $0xefc] sm:$0xf]
        %v1301 = vld [vmem:[%s293 + $0xf00] sm:$0xf]
        %v1302 = vld [vmem:[%s293 + $0xf04] sm:$0xf]
        %v1303 = vld [vmem:[%s293 + $0xf08] sm:$0xf]
        %v1304 = vld [vmem:[%s293 + $0xf0c] sm:$0xf]
        %v1305 = vld [vmem:[%s293 + $0xf10] sm:$0xf]
        %v1306 = vld [vmem:[%s293 + $0xf14] sm:$0xf]
        %v1307 = vld [vmem:[%s293 + $0xf18] sm:$0xf]
        %v1308 = vld [vmem:[%s293 + $0xf1c] sm:$0xf]
        %v1309 = vld [vmem:[%s293 + $0xf20] sm:$0xf]
        %v1310 = vld [vmem:[%s293 + $0xf24] sm:$0xf]
        %v1311 = vld [vmem:[%s293 + $0xf28] sm:$0xf]
        %v1312 = vld [vmem:[%s293 + $0xf2c] sm:$0xf]
        %v1313 = vld [vmem:[%s293 + $0xf30] sm:$0xf]
        %v1314 = vld [vmem:[%s293 + $0xf34] sm:$0xf]
        %v1315 = vld [vmem:[%s293 + $0xf38] sm:$0xf]
        %v1316 = vld [vmem:[%s293 + $0xf3c] sm:$0xf]
        %v1317 = vld [vmem:[%s293 + $0xf40] sm:$0xf]
        %v1318 = vld [vmem:[%s293 + $0xf44] sm:$0xf]
        %v1319 = vld [vmem:[%s293 + $0xf48] sm:$0xf]
        %v1320 = vld [vmem:[%s293 + $0xf4c] sm:$0xf]
        %v1321 = vld [vmem:[%s293 + $0xf50] sm:$0xf]
        %v1322 = vld [vmem:[%s293 + $0xf54] sm:$0xf]
        %v1323 = vld [vmem:[%s293 + $0xf58] sm:$0xf]
        %v1324 = vld [vmem:[%s293 + $0xf5c] sm:$0xf]
        %v1325 = vld [vmem:[%s293 + $0xf60] sm:$0xf]
        %v1326 = vld [vmem:[%s293 + $0xf64] sm:$0xf]
        %v1327 = vld [vmem:[%s293 + $0xf68] sm:$0xf]
        %v1328 = vld [vmem:[%s293 + $0xf6c] sm:$0xf]
        %v1329 = vld [vmem:[%s293 + $0xf70] sm:$0xf]
        %v1330 = vld [vmem:[%s293 + $0xf74] sm:$0xf]
        %v1331 = vld [vmem:[%s293 + $0xf78] sm:$0xf]
        %v1332 = vld [vmem:[%s293 + $0xf7c] sm:$0xf]
        %v1333 = vld [vmem:[%s293 + $0xf80] sm:$0xf]
        %v1334 = vld [vmem:[%s293 + $0xf84] sm:$0xf]
        %v1335 = vld [vmem:[%s293 + $0xf88] sm:$0xf]
        %v1336 = vld [vmem:[%s293 + $0xf8c] sm:$0xf]
        %v1337 = vld [vmem:[%s293 + $0xf90] sm:$0xf]
        %v1338 = vld [vmem:[%s293 + $0xf94] sm:$0xf]
        %v1339 = vld [vmem:[%s293 + $0xf98] sm:$0xf]
        %v1340 = vld [vmem:[%s293 + $0xf9c] sm:$0xf]
        %v1341 = vld [vmem:[%s293 + $0xfa0] sm:$0xf]
        %v1342 = vld [vmem:[%s293 + $0xfa4] sm:$0xf]
        %v1343 = vld [vmem:[%s293 + $0xfa8] sm:$0xf]
        %v1344 = vld [vmem:[%s293 + $0xfac] sm:$0xf]
        %v1345 = vld [vmem:[%s293 + $0xfb0] sm:$0xf]
        %v1346 = vld [vmem:[%s293 + $0xfb4] sm:$0xf]
        %v1347 = vld [vmem:[%s293 + $0xfb8] sm:$0xf]
        %v1348 = vld [vmem:[%s293 + $0xfbc] sm:$0xf]
        %v1349 = vld [vmem:[%s293 + $0xfc0] sm:$0xf]
        %v1350 = vld [vmem:[%s293 + $0xfc4] sm:$0xf]
        %v1351 = vld [vmem:[%s293 + $0xfc8] sm:$0xf]
        %v1352 = vld [vmem:[%s293 + $0xfcc] sm:$0xf]
        %v1353 = vld [vmem:[%s293 + $0xfd0] sm:$0xf]
        %v1354 = vld [vmem:[%s293 + $0xfd4] sm:$0xf]
        %v1355 = vld [vmem:[%s293 + $0xfd8] sm:$0xf]
        %v1356 = vld [vmem:[%s293 + $0xfdc] sm:$0xf]
        %v1357 = vld [vmem:[%s293 + $0xfe0] sm:$0xf]
        %v1358 = vld [vmem:[%s293 + $0xfe4] sm:$0xf]
        %v1359 = vld [vmem:[%s293 + $0xfe8] sm:$0xf]
        %v1360 = vld [vmem:[%s293 + $0xfec] sm:$0xf]
        %v1361 = vld [vmem:[%s293 + $0xff0] sm:$0xf]
        %v1362 = vld [vmem:[%s293 + $0xff4] sm:$0xf]
        %v1363 = vld [vmem:[%s293 + $0xff8] sm:$0xf]
        %v1364 = vld [vmem:[%s293 + $0xffc] sm:$0xf]
        %v1366 = vcombine.high %v333, %v333
        %v1368 = vunpack.c.l.s4 1966171168
        %v1369 = vunpack.c.0.s8 %v1368
        %v1370 = vlaneseq
        %v1371 = vshrl.u32 %v1370, 7
        %v1372 = vsub.s32 %v1369, %v1371
        %v1373 = vrot.slane %v333, %v1372
        %v1375 = vunpack.c.l.s4 1966171168
        %v1376 = vunpack.c.0.s8 %v1375
        %v1377 = vlaneseq
        %v1378 = vshrl.u32 %v1377, 7
        %v1379 = vsub.s32 %v1376, %v1378
        %v1380 = vrot.slane %v1366, %v1379
        %v1381 = vcombine.high %v1373, %v1373
        %v1382 = vcombine.high %v1380, %v1380
        %v1384 = vunpack.c.l.s4 1966171168
        %v1385 = vunpack.c.0.s8 %v1384
        %v1386 = vlaneseq
        %v1387 = vshrl.u32 %v1386, 7
        %v1388 = vsub.s32 %v1385, %v1387
        %v1389 = vrot.slane %v1373, %v1388
        %v1391 = vunpack.c.l.s4 1966171168
        %v1392 = vunpack.c.0.s8 %v1391
        %v1393 = vlaneseq
        %v1394 = vshrl.u32 %v1393, 7
        %v1395 = vsub.s32 %v1392, %v1394
        %v1396 = vrot.slane %v1380, %v1395
        %v1398 = vunpack.c.l.s4 1966171168
        %v1399 = vunpack.c.0.s8 %v1398
        %v1400 = vlaneseq
        %v1401 = vshrl.u32 %v1400, 7
        %v1402 = vsub.s32 %v1399, %v1401
        %v1403 = vrot.slane %v1381, %v1402
        %v1405 = vunpack.c.l.s4 1966171168
        %v1406 = vunpack.c.0.s8 %v1405
        %v1407 = vlaneseq
        %v1408 = vshrl.u32 %v1407, 7
        %v1409 = vsub.s32 %v1406, %v1408
        %v1410 = vrot.slane %v1382, %v1409
        %v1411 = vcombine.high %v1389, %v1389
        %v1412 = vcombine.high %v1396, %v1396
        %v1413 = vcombine.high %v1403, %v1403
        %v1414 = vcombine.high %v1410, %v1410
        %v1551 = vunpack.c.l.b16 %v341
        %v1552 = vunpack.c.l.b16 %v342
        %v1553 = vunpack.c.l.b16 %v343
        %v1554 = vunpack.c.l.b16 %v344
        %v1555 = vunpack.c.l.b16 %v345
        %v1556 = vunpack.c.l.b16 %v346
        %v1557 = vunpack.c.l.b16 %v347
        %v1558 = vunpack.c.l.b16 %v348
        %v1559 = vunpack.c.l.b16 %v349
        %v1560 = vunpack.c.l.b16 %v350
        %v1561 = vunpack.c.l.b16 %v351
        %v1562 = vunpack.c.l.b16 %v352
        %v1563 = vunpack.c.l.b16 %v353
        %v1564 = vunpack.c.l.b16 %v354
        %v1565 = vunpack.c.l.b16 %v355
        %v1566 = vunpack.c.l.b16 %v356
        %v1567 = vunpack.c.l.b16 %v357
        %v1568 = vunpack.c.l.b16 %v358
        %v1569 = vunpack.c.l.b16 %v359
        %v1570 = vunpack.c.l.b16 %v360
        %v1571 = vunpack.c.l.b16 %v361
        %v1572 = vunpack.c.l.b16 %v362
        %v1573 = vunpack.c.l.b16 %v363
        %v1574 = vunpack.c.l.b16 %v364
        %v1575 = vunpack.c.l.b16 %v365
        %v1576 = vunpack.c.l.b16 %v366
        %v1577 = vunpack.c.l.b16 %v367
        %v1578 = vunpack.c.l.b16 %v368
        %v1579 = vunpack.c.l.b16 %v369
        %v1580 = vunpack.c.l.b16 %v370
        %v1581 = vunpack.c.l.b16 %v371
        %v1582 = vunpack.c.l.b16 %v372
        %v1583 = vunpack.c.l.b16 %v373
        %v1584 = vunpack.c.l.b16 %v374
        %v1585 = vunpack.c.l.b16 %v375
        %v1586 = vunpack.c.l.b16 %v376
        %v1587 = vunpack.c.l.b16 %v377
        %v1588 = vunpack.c.l.b16 %v378
        %v1589 = vunpack.c.l.b16 %v379
        %v1590 = vunpack.c.l.b16 %v380
        %v1591 = vunpack.c.l.b16 %v381
        %v1592 = vunpack.c.l.b16 %v382
        %v1593 = vunpack.c.l.b16 %v383
        %v1594 = vunpack.c.l.b16 %v384
        %v1595 = vunpack.c.l.b16 %v385
        %v1596 = vunpack.c.l.b16 %v386
        %v1597 = vunpack.c.l.b16 %v387
        %v1598 = vunpack.c.l.b16 %v388
        %v1599 = vunpack.c.l.b16 %v389
        %v1600 = vunpack.c.l.b16 %v390
        %v1601 = vunpack.c.l.b16 %v391
        %v1602 = vunpack.c.l.b16 %v392
        %v1603 = vunpack.c.l.b16 %v393
        %v1604 = vunpack.c.l.b16 %v394
        %v1605 = vunpack.c.l.b16 %v395
        %v1606 = vunpack.c.l.b16 %v396
        %v1607 = vunpack.c.l.b16 %v397
        %v1608 = vunpack.c.l.b16 %v398
        %v1609 = vunpack.c.l.b16 %v399
        %v1610 = vunpack.c.l.b16 %v400
        %v1611 = vunpack.c.l.b16 %v401
        %v1612 = vunpack.c.l.b16 %v402
        %v1613 = vunpack.c.l.b16 %v403
        %v1614 = vunpack.c.l.b16 %v404
        %v1615 = vunpack.c.l.b16 %v405
        %v1616 = vunpack.c.l.b16 %v406
        %v1617 = vunpack.c.l.b16 %v407
        %v1618 = vunpack.c.l.b16 %v408
        %v1619 = vunpack.c.l.b16 %v409
        %v1620 = vunpack.c.l.b16 %v410
        %v1621 = vunpack.c.l.b16 %v411
        %v1622 = vunpack.c.l.b16 %v412
        %v1623 = vunpack.c.l.b16 %v413
        %v1624 = vunpack.c.l.b16 %v414
        %v1625 = vunpack.c.l.b16 %v415
        %v1626 = vunpack.c.l.b16 %v416
        %v1627 = vunpack.c.l.b16 %v417
        %v1628 = vunpack.c.l.b16 %v418
        %v1629 = vunpack.c.l.b16 %v419
        %v1630 = vunpack.c.l.b16 %v420
        %v1631 = vunpack.c.l.b16 %v421
        %v1632 = vunpack.c.l.b16 %v422
        %v1633 = vunpack.c.l.b16 %v423
        %v1634 = vunpack.c.l.b16 %v424
        %v1635 = vunpack.c.l.b16 %v425
        %v1636 = vunpack.c.l.b16 %v426
        %v1637 = vunpack.c.l.b16 %v427
        %v1638 = vunpack.c.l.b16 %v428
        %v1639 = vunpack.c.l.b16 %v429
        %v1640 = vunpack.c.l.b16 %v430
        %v1641 = vunpack.c.l.b16 %v431
        %v1642 = vunpack.c.l.b16 %v432
        %v1643 = vunpack.c.l.b16 %v433
        %v1644 = vunpack.c.l.b16 %v434
        %v1645 = vunpack.c.l.b16 %v435
        %v1646 = vunpack.c.l.b16 %v436
        %v1647 = vunpack.c.l.b16 %v437
        %v1648 = vunpack.c.l.b16 %v438
        %v1649 = vunpack.c.l.b16 %v439
        %v1650 = vunpack.c.l.b16 %v440
        %v1651 = vunpack.c.l.b16 %v441
        %v1652 = vunpack.c.l.b16 %v442
        %v1653 = vunpack.c.l.b16 %v443
        %v1654 = vunpack.c.l.b16 %v444
        %v1655 = vunpack.c.l.b16 %v445
        %v1656 = vunpack.c.l.b16 %v446
        %v1657 = vunpack.c.l.b16 %v447
        %v1658 = vunpack.c.l.b16 %v448
        %v1659 = vunpack.c.l.b16 %v449
        %v1660 = vunpack.c.l.b16 %v450
        %v1661 = vunpack.c.l.b16 %v451
        %v1662 = vunpack.c.l.b16 %v452
        %v1663 = vunpack.c.l.b16 %v453
        %v1664 = vunpack.c.l.b16 %v454
        %v1665 = vunpack.c.l.b16 %v455
        %v1666 = vunpack.c.l.b16 %v456
        %v1667 = vunpack.c.l.b16 %v457
        %v1668 = vunpack.c.l.b16 %v458
        %v1669 = vunpack.c.l.b16 %v459
        %v1670 = vunpack.c.l.b16 %v460
        %v1671 = vunpack.c.l.b16 %v461
        %v1672 = vunpack.c.l.b16 %v462
        %v1673 = vunpack.c.l.b16 %v463
        %v1674 = vunpack.c.l.b16 %v464
        %v1675 = vunpack.c.l.b16 %v465
        %v1676 = vunpack.c.l.b16 %v466
        %v1677 = vunpack.c.l.b16 %v467
        %v1678 = vunpack.c.l.b16 %v468
        %v1679 = vpack.c.b16 %v1552, %v1551
        %v1680 = vpack.c.b16 %v1554, %v1553
        %v1681 = vpack.c.b16 %v1556, %v1555
        %v1682 = vpack.c.b16 %v1558, %v1557
        %v1683 = vpack.c.b16 %v1560, %v1559
        %v1684 = vpack.c.b16 %v1562, %v1561
        %v1685 = vpack.c.b16 %v1564, %v1563
        %v1686 = vpack.c.b16 %v1566, %v1565
        %v1687 = vpack.c.b16 %v1568, %v1567
        %v1688 = vpack.c.b16 %v1570, %v1569
        %v1689 = vpack.c.b16 %v1572, %v1571
        %v1690 = vpack.c.b16 %v1574, %v1573
        %v1691 = vpack.c.b16 %v1576, %v1575
        %v1692 = vpack.c.b16 %v1578, %v1577
        %v1693 = vpack.c.b16 %v1580, %v1579
        %v1694 = vpack.c.b16 %v1582, %v1581
        %v1695 = vpack.c.b16 %v1584, %v1583
        %v1696 = vpack.c.b16 %v1586, %v1585
        %v1697 = vpack.c.b16 %v1588, %v1587
        %v1698 = vpack.c.b16 %v1590, %v1589
        %v1699 = vpack.c.b16 %v1592, %v1591
        %v1700 = vpack.c.b16 %v1594, %v1593
        %v1701 = vpack.c.b16 %v1596, %v1595
        %v1702 = vpack.c.b16 %v1598, %v1597
        %v1703 = vpack.c.b16 %v1600, %v1599
        %v1704 = vpack.c.b16 %v1602, %v1601
        %v1705 = vpack.c.b16 %v1604, %v1603
        %v1706 = vpack.c.b16 %v1606, %v1605
        %v1707 = vpack.c.b16 %v1608, %v1607
        %v1708 = vpack.c.b16 %v1610, %v1609
        %v1709 = vpack.c.b16 %v1612, %v1611
        %v1710 = vpack.c.b16 %v1614, %v1613
        %v1711 = vpack.c.b16 %v1616, %v1615
        %v1712 = vpack.c.b16 %v1618, %v1617
        %v1713 = vpack.c.b16 %v1620, %v1619
        %v1714 = vpack.c.b16 %v1622, %v1621
        %v1715 = vpack.c.b16 %v1624, %v1623
        %v1716 = vpack.c.b16 %v1626, %v1625
        %v1717 = vpack.c.b16 %v1628, %v1627
        %v1718 = vpack.c.b16 %v1630, %v1629
        %v1719 = vpack.c.b16 %v1632, %v1631
        %v1720 = vpack.c.b16 %v1634, %v1633
        %v1721 = vpack.c.b16 %v1636, %v1635
        %v1722 = vpack.c.b16 %v1638, %v1637
        %v1723 = vpack.c.b16 %v1640, %v1639
        %v1724 = vpack.c.b16 %v1642, %v1641
        %v1725 = vpack.c.b16 %v1644, %v1643
        %v1726 = vpack.c.b16 %v1646, %v1645
        %v1727 = vpack.c.b16 %v1648, %v1647
        %v1728 = vpack.c.b16 %v1650, %v1649
        %v1729 = vpack.c.b16 %v1652, %v1651
        %v1730 = vpack.c.b16 %v1654, %v1653
        %v1731 = vpack.c.b16 %v1656, %v1655
        %v1732 = vpack.c.b16 %v1658, %v1657
        %v1733 = vpack.c.b16 %v1660, %v1659
        %v1734 = vpack.c.b16 %v1662, %v1661
        %v1735 = vpack.c.b16 %v1664, %v1663
        %v1736 = vpack.c.b16 %v1666, %v1665
        %v1737 = vpack.c.b16 %v1668, %v1667
        %v1738 = vpack.c.b16 %v1670, %v1669
        %v1739 = vpack.c.b16 %v1672, %v1671
        %v1740 = vpack.c.b16 %v1674, %v1673
        %v1741 = vpack.c.b16 %v1676, %v1675
        %v1742 = vpack.c.b16 %v1678, %v1677
        %1807 = vmatprep.subr.bf16.mxu0 0
        %1808 = vmatpush1.bf16.msra.mxu0 %v1679
        %1809 = vmatprep.subr.bf16.mxu0 0
        %1810 = vmatpush1.bf16.msra.mxu0 %v1680
        %1811 = vmatprep.subr.bf16.mxu0 0
        %1812 = vmatpush1.bf16.msra.mxu0 %v1681
        %1813 = vmatprep.subr.bf16.mxu0 0
        %1814 = vmatpush1.bf16.msra.mxu0 %v1682
        %1815 = vmatprep.subr.bf16.mxu0 0
        %1816 = vmatpush1.bf16.msra.mxu0 %v1683
        %1817 = vmatprep.subr.bf16.mxu0 0
        %1818 = vmatpush1.bf16.msra.mxu0 %v1684
        %1819 = vmatprep.subr.bf16.mxu0 0
        %1820 = vmatpush1.bf16.msra.mxu0 %v1685
        %1821 = vmatprep.subr.bf16.mxu0 0
        %1822 = vmatpush1.bf16.msra.mxu0 %v1686
        %1823 = vmatprep.subr.bf16.mxu0 0
        %1824 = vmatpush1.bf16.msra.mxu0 %v1687
        %1825 = vmatprep.subr.bf16.mxu0 0
        %1826 = vmatpush1.bf16.msra.mxu0 %v1688
        %1827 = vmatprep.subr.bf16.mxu0 0
        %1828 = vmatpush1.bf16.msra.mxu0 %v1689
        %1829 = vmatprep.subr.bf16.mxu0 0
        %1830 = vmatpush1.bf16.msra.mxu0 %v1690
        %1831 = vmatprep.subr.bf16.mxu0 0
        %1832 = vmatpush1.bf16.msra.mxu0 %v1691
        %1833 = vmatprep.subr.bf16.mxu0 0
        %1834 = vmatpush1.bf16.msra.mxu0 %v1692
        %1835 = vmatprep.subr.bf16.mxu0 0
        %1836 = vmatpush1.bf16.msra.mxu0 %v1693
        %1837 = vmatprep.subr.bf16.mxu0 0
        %1838 = vmatpush1.bf16.msra.mxu0 %v1694
        %1839 = vmatprep.mubr.bf16.mxu0 %v1403
        %1840 = vmatmul.mubr.bf16.gmra.mrb[0].mxu0 %v1389
        %v1841 = vpop.f32.mrb[0].mxu0
        %v1842 = vadd.f32 0.0, %v1841
        %v1843 = vpop.f32.mrb[0].mxu0
        %v1844 = vpop.f32.mrb[0].mxu0
        %v1845 = vpop.f32.mrb[0].mxu0
        %1846 = vdwg.mxu0
        %1847 = vmatprep.subr.bf16.mxu0 0
        %1848 = vmatpush1.bf16.msra.mxu0 %v1695
        %1849 = vmatprep.subr.bf16.mxu0 0
        %1850 = vmatpush1.bf16.msra.mxu0 %v1696
        %1851 = vmatprep.subr.bf16.mxu0 0
        %1852 = vmatpush1.bf16.msra.mxu0 %v1697
        %1853 = vmatprep.subr.bf16.mxu0 0
        %1854 = vmatpush1.bf16.msra.mxu0 %v1698
        %1855 = vmatprep.subr.bf16.mxu0 0
        %1856 = vmatpush1.bf16.msra.mxu0 %v1699
        %1857 = vmatprep.subr.bf16.mxu0 0
        %1858 = vmatpush1.bf16.msra.mxu0 %v1700
        %1859 = vmatprep.subr.bf16.mxu0 0
        %1860 = vmatpush1.bf16.msra.mxu0 %v1701
        %1861 = vmatprep.subr.bf16.mxu0 0
        %1862 = vmatpush1.bf16.msra.mxu0 %v1702
        %1863 = vmatprep.subr.bf16.mxu0 0
        %1864 = vmatpush1.bf16.msra.mxu0 %v1703
        %1865 = vmatprep.subr.bf16.mxu0 0
        %1866 = vmatpush1.bf16.msra.mxu0 %v1704
        %1867 = vmatprep.subr.bf16.mxu0 0
        %1868 = vmatpush1.bf16.msra.mxu0 %v1705
        %1869 = vmatprep.subr.bf16.mxu0 0
        %1870 = vmatpush1.bf16.msra.mxu0 %v1706
        %1871 = vmatprep.subr.bf16.mxu0 0
        %1872 = vmatpush1.bf16.msra.mxu0 %v1707
        %1873 = vmatprep.subr.bf16.mxu0 0
        %1874 = vmatpush1.bf16.msra.mxu0 %v1708
        %1875 = vmatprep.subr.bf16.mxu0 0
        %1876 = vmatpush1.bf16.msra.mxu0 %v1709
        %1877 = vmatprep.subr.bf16.mxu0 0
        %1878 = vmatpush1.bf16.msra.mxu0 %v1710
        %1879 = vmatprep.mubr.bf16.mxu0 %v1413
        %1880 = vmatmul.mubr.bf16.gmra.mrb[0].mxu0 %v1411
        %v1881 = vpop.f32.mrb[0].mxu0
        %v1882 = vadd.f32 %v1842, %v1881
        %v1883 = vpop.f32.mrb[0].mxu0
        %v1884 = vpop.f32.mrb[0].mxu0
        %v1885 = vpop.f32.mrb[0].mxu0
        %1886 = vdwg.mxu0
        %1887 = vmatprep.subr.bf16.mxu0 0
        %1888 = vmatpush1.bf16.msra.mxu0 %v1711
        %1889 = vmatprep.subr.bf16.mxu0 0
        %1890 = vmatpush1.bf16.msra.mxu0 %v1712
        %1891 = vmatprep.subr.bf16.mxu0 0
        %1892 = vmatpush1.bf16.msra.mxu0 %v1713
        %1893 = vmatprep.subr.bf16.mxu0 0
        %1894 = vmatpush1.bf16.msra.mxu0 %v1714
        %1895 = vmatprep.subr.bf16.mxu0 0
        %1896 = vmatpush1.bf16.msra.mxu0 %v1715
        %1897 = vmatprep.subr.bf16.mxu0 0
        %1898 = vmatpush1.bf16.msra.mxu0 %v1716
        %1899 = vmatprep.subr.bf16.mxu0 0
        %1900 = vmatpush1.bf16.msra.mxu0 %v1717
        %1901 = vmatprep.subr.bf16.mxu0 0
        %1902 = vmatpush1.bf16.msra.mxu0 %v1718
        %1903 = vmatprep.subr.bf16.mxu0 0
        %1904 = vmatpush1.bf16.msra.mxu0 %v1719
        %1905 = vmatprep.subr.bf16.mxu0 0
        %1906 = vmatpush1.bf16.msra.mxu0 %v1720
        %1907 = vmatprep.subr.bf16.mxu0 0
        %1908 = vmatpush1.bf16.msra.mxu0 %v1721
        %1909 = vmatprep.subr.bf16.mxu0 0
        %1910 = vmatpush1.bf16.msra.mxu0 %v1722
        %1911 = vmatprep.subr.bf16.mxu0 0
        %1912 = vmatpush1.bf16.msra.mxu0 %v1723
        %1913 = vmatprep.subr.bf16.mxu0 0
        %1914 = vmatpush1.bf16.msra.mxu0 %v1724
        %1915 = vmatprep.subr.bf16.mxu0 0
        %1916 = vmatpush1.bf16.msra.mxu0 %v1725
        %1917 = vmatprep.subr.bf16.mxu0 0
        %1918 = vmatpush1.bf16.msra.mxu0 %v1726
        %1919 = vmatprep.mubr.bf16.mxu0 %v1410
        %1920 = vmatmul.mubr.bf16.gmra.mrb[0].mxu0 %v1396
        %v1921 = vpop.f32.mrb[0].mxu0
        %v1922 = vadd.f32 %v1882, %v1921
        %v1923 = vpop.f32.mrb[0].mxu0
        %v1924 = vpop.f32.mrb[0].mxu0
        %v1925 = vpop.f32.mrb[0].mxu0
        %1926 = vdwg.mxu0
        %1927 = vmatprep.subr.bf16.mxu0 0
        %1928 = vmatpush1.bf16.msra.mxu0 %v1727
        %1929 = vmatprep.subr.bf16.mxu0 0
        %1930 = vmatpush1.bf16.msra.mxu0 %v1728
        %1931 = vmatprep.subr.bf16.mxu0 0
        %1932 = vmatpush1.bf16.msra.mxu0 %v1729
        %1933 = vmatprep.subr.bf16.mxu0 0
        %1934 = vmatpush1.bf16.msra.mxu0 %v1730
        %1935 = vmatprep.subr.bf16.mxu0 0
        %1936 = vmatpush1.bf16.msra.mxu0 %v1731
        %1937 = vmatprep.subr.bf16.mxu0 0
        %1938 = vmatpush1.bf16.msra.mxu0 %v1732
        %1939 = vmatprep.subr.bf16.mxu0 0
        %1940 = vmatpush1.bf16.msra.mxu0 %v1733
        %1941 = vmatprep.subr.bf16.mxu0 0
        %1942 = vmatpush1.bf16.msra.mxu0 %v1734
        %1943 = vmatprep.subr.bf16.mxu0 0
        %1944 = vmatpush1.bf16.msra.mxu0 %v1735
        %1945 = vmatprep.subr.bf16.mxu0 0
        %1946 = vmatpush1.bf16.msra.mxu0 %v1736
        %1947 = vmatprep.subr.bf16.mxu0 0
        %1948 = vmatpush1.bf16.msra.mxu0 %v1737
        %1949 = vmatprep.subr.bf16.mxu0 0
        %1950 = vmatpush1.bf16.msra.mxu0 %v1738
        %1951 = vmatprep.subr.bf16.mxu0 0
        %1952 = vmatpush1.bf16.msra.mxu0 %v1739
        %1953 = vmatprep.subr.bf16.mxu0 0
        %1954 = vmatpush1.bf16.msra.mxu0 %v1740
        %1955 = vmatprep.subr.bf16.mxu0 0
        %1956 = vmatpush1.bf16.msra.mxu0 %v1741
        %1957 = vmatprep.subr.bf16.mxu0 0
        %1958 = vmatpush1.bf16.msra.mxu0 %v1742
        %1959 = vmatprep.mubr.bf16.mxu0 %v1414
        %1960 = vmatmul.mubr.bf16.gmra.mrb[0].mxu0 %v1412
        %v1961 = vpop.f32.mrb[0].mxu0
        %v1962 = vadd.f32 %v1922, %v1961
        %v1963 = vpop.f32.mrb[0].mxu0
        %v1964 = vpop.f32.mrb[0].mxu0
        %v1965 = vpop.f32.mrb[0].mxu0
        %1966 = vdwg.mxu0
        %v1968 = vcombine.high %v334, %v334
        %v1970 = vunpack.c.l.s4 1966171168
        %v1971 = vunpack.c.0.s8 %v1970
        %v1972 = vlaneseq
        %v1973 = vshrl.u32 %v1972, 7
        %v1974 = vsub.s32 %v1971, %v1973
        %v1975 = vrot.slane %v334, %v1974
        %v1977 = vunpack.c.l.s4 1966171168
        %v1978 = vunpack.c.0.s8 %v1977
        %v1979 = vlaneseq
        %v1980 = vshrl.u32 %v1979, 7
        %v1981 = vsub.s32 %v1978, %v1980
        %v1982 = vrot.slane %v1968, %v1981
        %v1983 = vcombine.high %v1975, %v1975
        %v1984 = vcombine.high %v1982, %v1982
        %v1986 = vunpack.c.l.s4 1966171168
        %v1987 = vunpack.c.0.s8 %v1986
        %v1988 = vlaneseq
        %v1989 = vshrl.u32 %v1988, 7
        %v1990 = vsub.s32 %v1987, %v1989
        %v1991 = vrot.slane %v1975, %v1990
        %v1993 = vunpack.c.l.s4 1966171168
        %v1994 = vunpack.c.0.s8 %v1993
        %v1995 = vlaneseq
        %v1996 = vshrl.u32 %v1995, 7
        %v1997 = vsub.s32 %v1994, %v1996
        %v1998 = vrot.slane %v1982, %v1997
        %v2000 = vunpack.c.l.s4 1966171168
        %v2001 = vunpack.c.0.s8 %v2000
        %v2002 = vlaneseq
        %v2003 = vshrl.u32 %v2002, 7
        %v2004 = vsub.s32 %v2001, %v2003
        %v2005 = vrot.slane %v1983, %v2004
        %v2007 = vunpack.c.l.s4 1966171168
        %v2008 = vunpack.c.0.s8 %v2007
        %v2009 = vlaneseq
        %v2010 = vshrl.u32 %v2009, 7
        %v2011 = vsub.s32 %v2008, %v2010
        %v2012 = vrot.slane %v1984, %v2011
        %v2013 = vcombine.high %v1991, %v1991
        %v2014 = vcombine.high %v1998, %v1998
        %v2015 = vcombine.high %v2005, %v2005
        %v2016 = vcombine.high %v2012, %v2012
        %v2153 = vunpack.c.l.b16 %v469
        %v2154 = vunpack.c.l.b16 %v470
        %v2155 = vunpack.c.l.b16 %v471
        %v2156 = vunpack.c.l.b16 %v472
        %v2157 = vunpack.c.l.b16 %v473
        %v2158 = vunpack.c.l.b16 %v474
        %v2159 = vunpack.c.l.b16 %v475
        %v2160 = vunpack.c.l.b16 %v476
        %v2161 = vunpack.c.l.b16 %v477
        %v2162 = vunpack.c.l.b16 %v478
        %v2163 = vunpack.c.l.b16 %v479
        %v2164 = vunpack.c.l.b16 %v480
        %v2165 = vunpack.c.l.b16 %v481
        %v2166 = vunpack.c.l.b16 %v482
        %v2167 = vunpack.c.l.b16 %v483
        %v2168 = vunpack.c.l.b16 %v484
        %v2169 = vunpack.c.l.b16 %v485
        %v2170 = vunpack.c.l.b16 %v486
        %v2171 = vunpack.c.l.b16 %v487
        %v2172 = vunpack.c.l.b16 %v488
        %v2173 = vunpack.c.l.b16 %v489
        %v2174 = vunpack.c.l.b16 %v490
        %v2175 = vunpack.c.l.b16 %v491
        %v2176 = vunpack.c.l.b16 %v492
        %v2177 = vunpack.c.l.b16 %v493
        %v2178 = vunpack.c.l.b16 %v494
        %v2179 = vunpack.c.l.b16 %v495
        %v2180 = vunpack.c.l.b16 %v496
        %v2181 = vunpack.c.l.b16 %v497
        %v2182 = vunpack.c.l.b16 %v498
        %v2183 = vunpack.c.l.b16 %v499
        %v2184 = vunpack.c.l.b16 %v500
        %v2185 = vunpack.c.l.b16 %v501
        %v2186 = vunpack.c.l.b16 %v502
        %v2187 = vunpack.c.l.b16 %v503
        %v2188 = vunpack.c.l.b16 %v504
        %v2189 = vunpack.c.l.b16 %v505
        %v2190 = vunpack.c.l.b16 %v506
        %v2191 = vunpack.c.l.b16 %v507
        %v2192 = vunpack.c.l.b16 %v508
        %v2193 = vunpack.c.l.b16 %v509
        %v2194 = vunpack.c.l.b16 %v510
        %v2195 = vunpack.c.l.b16 %v511
        %v2196 = vunpack.c.l.b16 %v512
        %v2197 = vunpack.c.l.b16 %v513
        %v2198 = vunpack.c.l.b16 %v514
        %v2199 = vunpack.c.l.b16 %v515
        %v2200 = vunpack.c.l.b16 %v516
        %v2201 = vunpack.c.l.b16 %v517
        %v2202 = vunpack.c.l.b16 %v518
        %v2203 = vunpack.c.l.b16 %v519
        %v2204 = vunpack.c.l.b16 %v520
        %v2205 = vunpack.c.l.b16 %v521
        %v2206 = vunpack.c.l.b16 %v522
        %v2207 = vunpack.c.l.b16 %v523
        %v2208 = vunpack.c.l.b16 %v524
        %v2209 = vunpack.c.l.b16 %v525
        %v2210 = vunpack.c.l.b16 %v526
        %v2211 = vunpack.c.l.b16 %v527
        %v2212 = vunpack.c.l.b16 %v528
        %v2213 = vunpack.c.l.b16 %v529
        %v2214 = vunpack.c.l.b16 %v530
        %v2215 = vunpack.c.l.b16 %v531
        %v2216 = vunpack.c.l.b16 %v532
        %v2217 = vunpack.c.l.b16 %v533
        %v2218 = vunpack.c.l.b16 %v534
        %v2219 = vunpack.c.l.b16 %v535
        %v2220 = vunpack.c.l.b16 %v536
        %v2221 = vunpack.c.l.b16 %v537
        %v2222 = vunpack.c.l.b16 %v538
        %v2223 = vunpack.c.l.b16 %v539
        %v2224 = vunpack.c.l.b16 %v540
        %v2225 = vunpack.c.l.b16 %v541
        %v2226 = vunpack.c.l.b16 %v542
        %v2227 = vunpack.c.l.b16 %v543
        %v2228 = vunpack.c.l.b16 %v544
        %v2229 = vunpack.c.l.b16 %v545
        %v2230 = vunpack.c.l.b16 %v546
        %v2231 = vunpack.c.l.b16 %v547
        %v2232 = vunpack.c.l.b16 %v548
        %v2233 = vunpack.c.l.b16 %v549
        %v2234 = vunpack.c.l.b16 %v550
        %v2235 = vunpack.c.l.b16 %v551
        %v2236 = vunpack.c.l.b16 %v552
        %v2237 = vunpack.c.l.b16 %v553
        %v2238 = vunpack.c.l.b16 %v554
        %v2239 = vunpack.c.l.b16 %v555
        %v2240 = vunpack.c.l.b16 %v556
        %v2241 = vunpack.c.l.b16 %v557
        %v2242 = vunpack.c.l.b16 %v558
        %v2243 = vunpack.c.l.b16 %v559
        %v2244 = vunpack.c.l.b16 %v560
        %v2245 = vunpack.c.l.b16 %v561
        %v2246 = vunpack.c.l.b16 %v562
        %v2247 = vunpack.c.l.b16 %v563
        %v2248 = vunpack.c.l.b16 %v564
        %v2249 = vunpack.c.l.b16 %v565
        %v2250 = vunpack.c.l.b16 %v566
        %v2251 = vunpack.c.l.b16 %v567
        %v2252 = vunpack.c.l.b16 %v568
        %v2253 = vunpack.c.l.b16 %v569
        %v2254 = vunpack.c.l.b16 %v570
        %v2255 = vunpack.c.l.b16 %v571
        %v2256 = vunpack.c.l.b16 %v572
        %v2257 = vunpack.c.l.b16 %v573
        %v2258 = vunpack.c.l.b16 %v574
        %v2259 = vunpack.c.l.b16 %v575
        %v2260 = vunpack.c.l.b16 %v576
        %v2261 = vunpack.c.l.b16 %v577
        %v2262 = vunpack.c.l.b16 %v578
        %v2263 = vunpack.c.l.b16 %v579
        %v2264 = vunpack.c.l.b16 %v580
        %v2265 = vunpack.c.l.b16 %v581
        %v2266 = vunpack.c.l.b16 %v582
        %v2267 = vunpack.c.l.b16 %v583
        %v2268 = vunpack.c.l.b16 %v584
        %v2269 = vunpack.c.l.b16 %v585
        %v2270 = vunpack.c.l.b16 %v586
        %v2271 = vunpack.c.l.b16 %v587
        %v2272 = vunpack.c.l.b16 %v588
        %v2273 = vunpack.c.l.b16 %v589
        %v2274 = vunpack.c.l.b16 %v590
        %v2275 = vunpack.c.l.b16 %v591
        %v2276 = vunpack.c.l.b16 %v592
        %v2277 = vunpack.c.l.b16 %v593
        %v2278 = vunpack.c.l.b16 %v594
        %v2279 = vunpack.c.l.b16 %v595
        %v2280 = vunpack.c.l.b16 %v596
        %v2281 = vpack.c.b16 %v2154, %v2153
        %v2282 = vpack.c.b16 %v2156, %v2155
        %v2283 = vpack.c.b16 %v2158, %v2157
        %v2284 = vpack.c.b16 %v2160, %v2159
        %v2285 = vpack.c.b16 %v2162, %v2161
        %v2286 = vpack.c.b16 %v2164, %v2163
        %v2287 = vpack.c.b16 %v2166, %v2165
        %v2288 = vpack.c.b16 %v2168, %v2167
        %v2289 = vpack.c.b16 %v2170, %v2169
        %v2290 = vpack.c.b16 %v2172, %v2171
        %v2291 = vpack.c.b16 %v2174, %v2173
        %v2292 = vpack.c.b16 %v2176, %v2175
        %v2293 = vpack.c.b16 %v2178, %v2177
        %v2294 = vpack.c.b16 %v2180, %v2179
        %v2295 = vpack.c.b16 %v2182, %v2181
        %v2296 = vpack.c.b16 %v2184, %v2183
        %v2297 = vpack.c.b16 %v2186, %v2185
        %v2298 = vpack.c.b16 %v2188, %v2187
        %v2299 = vpack.c.b16 %v2190, %v2189
        %v2300 = vpack.c.b16 %v2192, %v2191
        %v2301 = vpack.c.b16 %v2194, %v2193
        %v2302 = vpack.c.b16 %v2196, %v2195
        %v2303 = vpack.c.b16 %v2198, %v2197
        %v2304 = vpack.c.b16 %v2200, %v2199
        %v2305 = vpack.c.b16 %v2202, %v2201
        %v2306 = vpack.c.b16 %v2204, %v2203
        %v2307 = vpack.c.b16 %v2206, %v2205
        %v2308 = vpack.c.b16 %v2208, %v2207
        %v2309 = vpack.c.b16 %v2210, %v2209
        %v2310 = vpack.c.b16 %v2212, %v2211
        %v2311 = vpack.c.b16 %v2214, %v2213
        %v2312 = vpack.c.b16 %v2216, %v2215
        %v2313 = vpack.c.b16 %v2218, %v2217
        %v2314 = vpack.c.b16 %v2220, %v2219
        %v2315 = vpack.c.b16 %v2222, %v2221
        %v2316 = vpack.c.b16 %v2224, %v2223
        %v2317 = vpack.c.b16 %v2226, %v2225
        %v2318 = vpack.c.b16 %v2228, %v2227
        %v2319 = vpack.c.b16 %v2230, %v2229
        %v2320 = vpack.c.b16 %v2232, %v2231
        %v2321 = vpack.c.b16 %v2234, %v2233
        %v2322 = vpack.c.b16 %v2236, %v2235
        %v2323 = vpack.c.b16 %v2238, %v2237
        %v2324 = vpack.c.b16 %v2240, %v2239
        %v2325 = vpack.c.b16 %v2242, %v2241
        %v2326 = vpack.c.b16 %v2244, %v2243
        %v2327 = vpack.c.b16 %v2246, %v2245
        %v2328 = vpack.c.b16 %v2248, %v2247
        %v2329 = vpack.c.b16 %v2250, %v2249
        %v2330 = vpack.c.b16 %v2252, %v2251
        %v2331 = vpack.c.b16 %v2254, %v2253
        %v2332 = vpack.c.b16 %v2256, %v2255
        %v2333 = vpack.c.b16 %v2258, %v2257
        %v2334 = vpack.c.b16 %v2260, %v2259
        %v2335 = vpack.c.b16 %v2262, %v2261
        %v2336 = vpack.c.b16 %v2264, %v2263
        %v2337 = vpack.c.b16 %v2266, %v2265
        %v2338 = vpack.c.b16 %v2268, %v2267
        %v2339 = vpack.c.b16 %v2270, %v2269
        %v2340 = vpack.c.b16 %v2272, %v2271
        %v2341 = vpack.c.b16 %v2274, %v2273
        %v2342 = vpack.c.b16 %v2276, %v2275
        %v2343 = vpack.c.b16 %v2278, %v2277
        %v2344 = vpack.c.b16 %v2280, %v2279
        %2409 = vmatprep.subr.bf16.mxu0 0
        %2410 = vmatpush1.bf16.msra.mxu0 %v2281
        %2411 = vmatprep.subr.bf16.mxu0 0
        %2412 = vmatpush1.bf16.msra.mxu0 %v2282
        %2413 = vmatprep.subr.bf16.mxu0 0
        %2414 = vmatpush1.bf16.msra.mxu0 %v2283
        %2415 = vmatprep.subr.bf16.mxu0 0
        %2416 = vmatpush1.bf16.msra.mxu0 %v2284
        %2417 = vmatprep.subr.bf16.mxu0 0
        %2418 = vmatpush1.bf16.msra.mxu0 %v2285
        %2419 = vmatprep.subr.bf16.mxu0 0
        %2420 = vmatpush1.bf16.msra.mxu0 %v2286
        %2421 = vmatprep.subr.bf16.mxu0 0
        %2422 = vmatpush1.bf16.msra.mxu0 %v2287
        %2423 = vmatprep.subr.bf16.mxu0 0
        %2424 = vmatpush1.bf16.msra.mxu0 %v2288
        %2425 = vmatprep.subr.bf16.mxu0 0
        %2426 = vmatpush1.bf16.msra.mxu0 %v2289
        %2427 = vmatprep.subr.bf16.mxu0 0
        %2428 = vmatpush1.bf16.msra.mxu0 %v2290
        %2429 = vmatprep.subr.bf16.mxu0 0
        %2430 = vmatpush1.bf16.msra.mxu0 %v2291
        %2431 = vmatprep.subr.bf16.mxu0 0
        %2432 = vmatpush1.bf16.msra.mxu0 %v2292
        %2433 = vmatprep.subr.bf16.mxu0 0
        %2434 = vmatpush1.bf16.msra.mxu0 %v2293
        %2435 = vmatprep.subr.bf16.mxu0 0
        %2436 = vmatpush1.bf16.msra.mxu0 %v2294
        %2437 = vmatprep.subr.bf16.mxu0 0
        %2438 = vmatpush1.bf16.msra.mxu0 %v2295
        %2439 = vmatprep.subr.bf16.mxu0 0
        %2440 = vmatpush1.bf16.msra.mxu0 %v2296
        %2441 = vmatprep.mubr.bf16.mxu0 %v2005
        %2442 = vmatmul.mubr.bf16.gmra.mrb[0].mxu0 %v1991
        %v2443 = vpop.f32.mrb[0].mxu0
        %v2444 = vadd.f32 0.0, %v2443
        %v2445 = vpop.f32.mrb[0].mxu0
        %v2446 = vpop.f32.mrb[0].mxu0
        %v2447 = vpop.f32.mrb[0].mxu0
        %2448 = vdwg.mxu0
        %2449 = vmatprep.subr.bf16.mxu0 0
        %2450 = vmatpush1.bf16.msra.mxu0 %v2297
        %2451 = vmatprep.subr.bf16.mxu0 0
        %2452 = vmatpush1.bf16.msra.mxu0 %v2298
        %2453 = vmatprep.subr.bf16.mxu0 0
        %2454 = vmatpush1.bf16.msra.mxu0 %v2299
        %2455 = vmatprep.subr.bf16.mxu0 0
        %2456 = vmatpush1.bf16.msra.mxu0 %v2300
        %2457 = vmatprep.subr.bf16.mxu0 0
        %2458 = vmatpush1.bf16.msra.mxu0 %v2301
        %2459 = vmatprep.subr.bf16.mxu0 0
        %2460 = vmatpush1.bf16.msra.mxu0 %v2302
        %2461 = vmatprep.subr.bf16.mxu0 0
        %2462 = vmatpush1.bf16.msra.mxu0 %v2303
        %2463 = vmatprep.subr.bf16.mxu0 0
        %2464 = vmatpush1.bf16.msra.mxu0 %v2304
        %2465 = vmatprep.subr.bf16.mxu0 0
        %2466 = vmatpush1.bf16.msra.mxu0 %v2305
        %2467 = vmatprep.subr.bf16.mxu0 0
        %2468 = vmatpush1.bf16.msra.mxu0 %v2306
        %2469 = vmatprep.subr.bf16.mxu0 0
        %2470 = vmatpush1.bf16.msra.mxu0 %v2307
        %2471 = vmatprep.subr.bf16.mxu0 0
        %2472 = vmatpush1.bf16.msra.mxu0 %v2308
        %2473 = vmatprep.subr.bf16.mxu0 0
        %2474 = vmatpush1.bf16.msra.mxu0 %v2309
        %2475 = vmatprep.subr.bf16.mxu0 0
        %2476 = vmatpush1.bf16.msra.mxu0 %v2310
        %2477 = vmatprep.subr.bf16.mxu0 0
        %2478 = vmatpush1.bf16.msra.mxu0 %v2311
        %2479 = vmatprep.subr.bf16.mxu0 0
        %2480 = vmatpush1.bf16.msra.mxu0 %v2312
        %2481 = vmatprep.mubr.bf16.mxu0 %v2015
        %2482 = vmatmul.mubr.bf16.gmra.mrb[0].mxu0 %v2013
        %v2483 = vpop.f32.mrb[0].mxu0
        %v2484 = vadd.f32 %v2444, %v2483
        %v2485 = vpop.f32.mrb[0].mxu0
        %v2486 = vpop.f32.mrb[0].mxu0
        %v2487 = vpop.f32.mrb[0].mxu0
        %2488 = vdwg.mxu0
        %2489 = vmatprep.subr.bf16.mxu0 0
        %2490 = vmatpush1.bf16.msra.mxu0 %v2313
        %2491 = vmatprep.subr.bf16.mxu0 0
        %2492 = vmatpush1.bf16.msra.mxu0 %v2314
        %2493 = vmatprep.subr.bf16.mxu0 0
        %2494 = vmatpush1.bf16.msra.mxu0 %v2315
        %2495 = vmatprep.subr.bf16.mxu0 0
        %2496 = vmatpush1.bf16.msra.mxu0 %v2316
        %2497 = vmatprep.subr.bf16.mxu0 0
        %2498 = vmatpush1.bf16.msra.mxu0 %v2317
        %2499 = vmatprep.subr.bf16.mxu0 0
        %2500 = vmatpush1.bf16.msra.mxu0 %v2318
        %2501 = vmatprep.subr.bf16.mxu0 0
        %2502 = vmatpush1.bf16.msra.mxu0 %v2319
        %2503 = vmatprep.subr.bf16.mxu0 0
        %2504 = vmatpush1.bf16.msra.mxu0 %v2320
        %2505 = vmatprep.subr.bf16.mxu0 0
        %2506 = vmatpush1.bf16.msra.mxu0 %v2321
        %2507 = vmatprep.subr.bf16.mxu0 0
        %2508 = vmatpush1.bf16.msra.mxu0 %v2322
        %2509 = vmatprep.subr.bf16.mxu0 0
        %2510 = vmatpush1.bf16.msra.mxu0 %v2323
        %2511 = vmatprep.subr.bf16.mxu0 0
        %2512 = vmatpush1.bf16.msra.mxu0 %v2324
        %2513 = vmatprep.subr.bf16.mxu0 0
        %2514 = vmatpush1.bf16.msra.mxu0 %v2325
        %2515 = vmatprep.subr.bf16.mxu0 0
        %2516 = vmatpush1.bf16.msra.mxu0 %v2326
        %2517 = vmatprep.subr.bf16.mxu0 0
        %2518 = vmatpush1.bf16.msra.mxu0 %v2327
        %2519 = vmatprep.subr.bf16.mxu0 0
        %2520 = vmatpush1.bf16.msra.mxu0 %v2328
        %2521 = vmatprep.mubr.bf16.mxu0 %v2012
        %2522 = vmatmul.mubr.bf16.gmra.mrb[0].mxu0 %v1998
        %v2523 = vpop.f32.mrb[0].mxu0
        %v2524 = vadd.f32 %v2484, %v2523
        %v2525 = vpop.f32.mrb[0].mxu0
        %v2526 = vpop.f32.mrb[0].mxu0
        %v2527 = vpop.f32.mrb[0].mxu0
        %2528 = vdwg.mxu0
        %2529 = vmatprep.subr.bf16.mxu0 0
        %2530 = vmatpush1.bf16.msra.mxu0 %v2329
        %2531 = vmatprep.subr.bf16.mxu0 0
        %2532 = vmatpush1.bf16.msra.mxu0 %v2330
        %2533 = vmatprep.subr.bf16.mxu0 0
        %2534 = vmatpush1.bf16.msra.mxu0 %v2331
        %2535 = vmatprep.subr.bf16.mxu0 0
        %2536 = vmatpush1.bf16.msra.mxu0 %v2332
        %2537 = vmatprep.subr.bf16.mxu0 0
        %2538 = vmatpush1.bf16.msra.mxu0 %v2333
        %2539 = vmatprep.subr.bf16.mxu0 0
        %2540 = vmatpush1.bf16.msra.mxu0 %v2334
        %2541 = vmatprep.subr.bf16.mxu0 0
        %2542 = vmatpush1.bf16.msra.mxu0 %v2335
        %2543 = vmatprep.subr.bf16.mxu0 0
        %2544 = vmatpush1.bf16.msra.mxu0 %v2336
        %2545 = vmatprep.subr.bf16.mxu0 0
        %2546 = vmatpush1.bf16.msra.mxu0 %v2337
        %2547 = vmatprep.subr.bf16.mxu0 0
        %2548 = vmatpush1.bf16.msra.mxu0 %v2338
        %2549 = vmatprep.subr.bf16.mxu0 0
        %2550 = vmatpush1.bf16.msra.mxu0 %v2339
        %2551 = vmatprep.subr.bf16.mxu0 0
        %2552 = vmatpush1.bf16.msra.mxu0 %v2340
        %2553 = vmatprep.subr.bf16.mxu0 0
        %2554 = vmatpush1.bf16.msra.mxu0 %v2341
        %2555 = vmatprep.subr.bf16.mxu0 0
        %2556 = vmatpush1.bf16.msra.mxu0 %v2342
        %2557 = vmatprep.subr.bf16.mxu0 0
        %2558 = vmatpush1.bf16.msra.mxu0 %v2343
        %2559 = vmatprep.subr.bf16.mxu0 0
        %2560 = vmatpush1.bf16.msra.mxu0 %v2344
        %2561 = vmatprep.mubr.bf16.mxu0 %v2016
        %2562 = vmatmul.mubr.bf16.gmra.mrb[0].mxu0 %v2014
        %v2563 = vpop.f32.mrb[0].mxu0
        %v2564 = vadd.f32 %v2524, %v2563
        %v2565 = vpop.f32.mrb[0].mxu0
        %v2566 = vpop.f32.mrb[0].mxu0
        %v2567 = vpop.f32.mrb[0].mxu0
        %2568 = vdwg.mxu0
        %v2570 = vcombine.high %v335, %v335
        %v2572 = vunpack.c.l.s4 1966171168
        %v2573 = vunpack.c.0.s8 %v2572
        %v2574 = vlaneseq
        %v2575 = vshrl.u32 %v2574, 7
        %v2576 = vsub.s32 %v2573, %v2575
        %v2577 = vrot.slane %v335, %v2576
        %v2579 = vunpack.c.l.s4 1966171168
        %v2580 = vunpack.c.0.s8 %v2579
        %v2581 = vlaneseq
        %v2582 = vshrl.u32 %v2581, 7
        %v2583 = vsub.s32 %v2580, %v2582
        %v2584 = vrot.slane %v2570, %v2583
        %v2585 = vcombine.high %v2577, %v2577
        %v2586 = vcombine.high %v2584, %v2584
        %v2588 = vunpack.c.l.s4 1966171168
        %v2589 = vunpack.c.0.s8 %v2588
        %v2590 = vlaneseq
        %v2591 = vshrl.u32 %v2590, 7
        %v2592 = vsub.s32 %v2589, %v2591
        %v2593 = vrot.slane %v2577, %v2592
        %v2595 = vunpack.c.l.s4 1966171168
        %v2596 = vunpack.c.0.s8 %v2595
        %v2597 = vlaneseq
        %v2598 = vshrl.u32 %v2597, 7
        %v2599 = vsub.s32 %v2596, %v2598
        %v2600 = vrot.slane %v2584, %v2599
        %v2602 = vunpack.c.l.s4 1966171168
        %v2603 = vunpack.c.0.s8 %v2602
        %v2604 = vlaneseq
        %v2605 = vshrl.u32 %v2604, 7
        %v2606 = vsub.s32 %v2603, %v2605
        %v2607 = vrot.slane %v2585, %v2606
        %v2609 = vunpack.c.l.s4 1966171168
        %v2610 = vunpack.c.0.s8 %v2609
        %v2611 = vlaneseq
        %v2612 = vshrl.u32 %v2611, 7
        %v2613 = vsub.s32 %v2610, %v2612
        %v2614 = vrot.slane %v2586, %v2613
        %v2615 = vcombine.high %v2593, %v2593
        %v2616 = vcombine.high %v2600, %v2600
        %v2617 = vcombine.high %v2607, %v2607
        %v2618 = vcombine.high %v2614, %v2614
        %v2755 = vunpack.c.l.b16 %v597
        %v2756 = vunpack.c.l.b16 %v598
        %v2757 = vunpack.c.l.b16 %v599
        %v2758 = vunpack.c.l.b16 %v600
        %v2759 = vunpack.c.l.b16 %v601
        %v2760 = vunpack.c.l.b16 %v602
        %v2761 = vunpack.c.l.b16 %v603
        %v2762 = vunpack.c.l.b16 %v604
        %v2763 = vunpack.c.l.b16 %v605
        %v2764 = vunpack.c.l.b16 %v606
        %v2765 = vunpack.c.l.b16 %v607
        %v2766 = vunpack.c.l.b16 %v608
        %v2767 = vunpack.c.l.b16 %v609
        %v2768 = vunpack.c.l.b16 %v610
        %v2769 = vunpack.c.l.b16 %v611
        %v2770 = vunpack.c.l.b16 %v612
        %v2771 = vunpack.c.l.b16 %v613
        %v2772 = vunpack.c.l.b16 %v614
        %v2773 = vunpack.c.l.b16 %v615
        %v2774 = vunpack.c.l.b16 %v616
        %v2775 = vunpack.c.l.b16 %v617
        %v2776 = vunpack.c.l.b16 %v618
        %v2777 = vunpack.c.l.b16 %v619
        %v2778 = vunpack.c.l.b16 %v620
        %v2779 = vunpack.c.l.b16 %v621
        %v2780 = vunpack.c.l.b16 %v622
        %v2781 = vunpack.c.l.b16 %v623
        %v2782 = vunpack.c.l.b16 %v624
        %v2783 = vunpack.c.l.b16 %v625
        %v2784 = vunpack.c.l.b16 %v626
        %v2785 = vunpack.c.l.b16 %v627
        %v2786 = vunpack.c.l.b16 %v628
        %v2787 = vunpack.c.l.b16 %v629
        %v2788 = vunpack.c.l.b16 %v630
        %v2789 = vunpack.c.l.b16 %v631
        %v2790 = vunpack.c.l.b16 %v632
        %v2791 = vunpack.c.l.b16 %v633
        %v2792 = vunpack.c.l.b16 %v634
        %v2793 = vunpack.c.l.b16 %v635
        %v2794 = vunpack.c.l.b16 %v636
        %v2795 = vunpack.c.l.b16 %v637
        %v2796 = vunpack.c.l.b16 %v638
        %v2797 = vunpack.c.l.b16 %v639
        %v2798 = vunpack.c.l.b16 %v640
        %v2799 = vunpack.c.l.b16 %v641
        %v2800 = vunpack.c.l.b16 %v642
        %v2801 = vunpack.c.l.b16 %v643
        %v2802 = vunpack.c.l.b16 %v644
        %v2803 = vunpack.c.l.b16 %v645
        %v2804 = vunpack.c.l.b16 %v646
        %v2805 = vunpack.c.l.b16 %v647
        %v2806 = vunpack.c.l.b16 %v648
        %v2807 = vunpack.c.l.b16 %v649
        %v2808 = vunpack.c.l.b16 %v650
        %v2809 = vunpack.c.l.b16 %v651
        %v2810 = vunpack.c.l.b16 %v652
        %v2811 = vunpack.c.l.b16 %v653
        %v2812 = vunpack.c.l.b16 %v654
        %v2813 = vunpack.c.l.b16 %v655
        %v2814 = vunpack.c.l.b16 %v656
        %v2815 = vunpack.c.l.b16 %v657
        %v2816 = vunpack.c.l.b16 %v658
        %v2817 = vunpack.c.l.b16 %v659
        %v2818 = vunpack.c.l.b16 %v660
        %v2819 = vunpack.c.l.b16 %v661
        %v2820 = vunpack.c.l.b16 %v662
        %v2821 = vunpack.c.l.b16 %v663
        %v2822 = vunpack.c.l.b16 %v664
        %v2823 = vunpack.c.l.b16 %v665
        %v2824 = vunpack.c.l.b16 %v666
        %v2825 = vunpack.c.l.b16 %v667
        %v2826 = vunpack.c.l.b16 %v668
        %v2827 = vunpack.c.l.b16 %v669
        %v2828 = vunpack.c.l.b16 %v670
        %v2829 = vunpack.c.l.b16 %v671
        %v2830 = vunpack.c.l.b16 %v672
        %v2831 = vunpack.c.l.b16 %v673
        %v2832 = vunpack.c.l.b16 %v674
        %v2833 = vunpack.c.l.b16 %v675
        %v2834 = vunpack.c.l.b16 %v676
        %v2835 = vunpack.c.l.b16 %v677
        %v2836 = vunpack.c.l.b16 %v678
        %v2837 = vunpack.c.l.b16 %v679
        %v2838 = vunpack.c.l.b16 %v680
        %v2839 = vunpack.c.l.b16 %v681
        %v2840 = vunpack.c.l.b16 %v682
        %v2841 = vunpack.c.l.b16 %v683
        %v2842 = vunpack.c.l.b16 %v684
        %v2843 = vunpack.c.l.b16 %v685
        %v2844 = vunpack.c.l.b16 %v686
        %v2845 = vunpack.c.l.b16 %v687
        %v2846 = vunpack.c.l.b16 %v688
        %v2847 = vunpack.c.l.b16 %v689
        %v2848 = vunpack.c.l.b16 %v690
        %v2849 = vunpack.c.l.b16 %v691
        %v2850 = vunpack.c.l.b16 %v692
        %v2851 = vunpack.c.l.b16 %v693
        %v2852 = vunpack.c.l.b16 %v694
        %v2853 = vunpack.c.l.b16 %v695
        %v2854 = vunpack.c.l.b16 %v696
        %v2855 = vunpack.c.l.b16 %v697
        %v2856 = vunpack.c.l.b16 %v698
        %v2857 = vunpack.c.l.b16 %v699
        %v2858 = vunpack.c.l.b16 %v700
        %v2859 = vunpack.c.l.b16 %v701
        %v2860 = vunpack.c.l.b16 %v702
        %v2861 = vunpack.c.l.b16 %v703
        %v2862 = vunpack.c.l.b16 %v704
        %v2863 = vunpack.c.l.b16 %v705
        %v2864 = vunpack.c.l.b16 %v706
        %v2865 = vunpack.c.l.b16 %v707
        %v2866 = vunpack.c.l.b16 %v708
        %v2867 = vunpack.c.l.b16 %v709
        %v2868 = vunpack.c.l.b16 %v710
        %v2869 = vunpack.c.l.b16 %v711
        %v2870 = vunpack.c.l.b16 %v712
        %v2871 = vunpack.c.l.b16 %v713
        %v2872 = vunpack.c.l.b16 %v714
        %v2873 = vunpack.c.l.b16 %v715
        %v2874 = vunpack.c.l.b16 %v716
        %v2875 = vunpack.c.l.b16 %v717
        %v2876 = vunpack.c.l.b16 %v718
        %v2877 = vunpack.c.l.b16 %v719
        %v2878 = vunpack.c.l.b16 %v720
        %v2879 = vunpack.c.l.b16 %v721
        %v2880 = vunpack.c.l.b16 %v722
        %v2881 = vunpack.c.l.b16 %v723
        %v2882 = vunpack.c.l.b16 %v724
        %v2883 = vpack.c.b16 %v2756, %v2755
        %v2884 = vpack.c.b16 %v2758, %v2757
        %v2885 = vpack.c.b16 %v2760, %v2759
        %v2886 = vpack.c.b16 %v2762, %v2761
        %v2887 = vpack.c.b16 %v2764, %v2763
        %v2888 = vpack.c.b16 %v2766, %v2765
        %v2889 = vpack.c.b16 %v2768, %v2767
        %v2890 = vpack.c.b16 %v2770, %v2769
        %v2891 = vpack.c.b16 %v2772, %v2771
        %v2892 = vpack.c.b16 %v2774, %v2773
        %v2893 = vpack.c.b16 %v2776, %v2775
        %v2894 = vpack.c.b16 %v2778, %v2777
        %v2895 = vpack.c.b16 %v2780, %v2779
        %v2896 = vpack.c.b16 %v2782, %v2781
        %v2897 = vpack.c.b16 %v2784, %v2783
        %v2898 = vpack.c.b16 %v2786, %v2785
        %v2899 = vpack.c.b16 %v2788, %v2787
        %v2900 = vpack.c.b16 %v2790, %v2789
        %v2901 = vpack.c.b16 %v2792, %v2791
        %v2902 = vpack.c.b16 %v2794, %v2793
        %v2903 = vpack.c.b16 %v2796, %v2795
        %v2904 = vpack.c.b16 %v2798, %v2797
        %v2905 = vpack.c.b16 %v2800, %v2799
        %v2906 = vpack.c.b16 %v2802, %v2801
        %v2907 = vpack.c.b16 %v2804, %v2803
        %v2908 = vpack.c.b16 %v2806, %v2805
        %v2909 = vpack.c.b16 %v2808, %v2807
        %v2910 = vpack.c.b16 %v2810, %v2809
        %v2911 = vpack.c.b16 %v2812, %v2811
        %v2912 = vpack.c.b16 %v2814, %v2813
        %v2913 = vpack.c.b16 %v2816, %v2815
        %v2914 = vpack.c.b16 %v2818, %v2817
        %v2915 = vpack.c.b16 %v2820, %v2819
        %v2916 = vpack.c.b16 %v2822, %v2821
        %v2917 = vpack.c.b16 %v2824, %v2823
        %v2918 = vpack.c.b16 %v2826, %v2825
        %v2919 = vpack.c.b16 %v2828, %v2827
        %v2920 = vpack.c.b16 %v2830, %v2829
        %v2921 = vpack.c.b16 %v2832, %v2831
        %v2922 = vpack.c.b16 %v2834, %v2833
        %v2923 = vpack.c.b16 %v2836, %v2835
        %v2924 = vpack.c.b16 %v2838, %v2837
        %v2925 = vpack.c.b16 %v2840, %v2839
        %v2926 = vpack.c.b16 %v2842, %v2841
        %v2927 = vpack.c.b16 %v2844, %v2843
        %v2928 = vpack.c.b16 %v2846, %v2845
        %v2929 = vpack.c.b16 %v2848, %v2847
        %v2930 = vpack.c.b16 %v2850, %v2849
        %v2931 = vpack.c.b16 %v2852, %v2851
        %v2932 = vpack.c.b16 %v2854, %v2853
        %v2933 = vpack.c.b16 %v2856, %v2855
        %v2934 = vpack.c.b16 %v2858, %v2857
        %v2935 = vpack.c.b16 %v2860, %v2859
        %v2936 = vpack.c.b16 %v2862, %v2861
        %v2937 = vpack.c.b16 %v2864, %v2863
        %v2938 = vpack.c.b16 %v2866, %v2865
        %v2939 = vpack.c.b16 %v2868, %v2867
        %v2940 = vpack.c.b16 %v2870, %v2869
        %v2941 = vpack.c.b16 %v2872, %v2871
        %v2942 = vpack.c.b16 %v2874, %v2873
        %v2943 = vpack.c.b16 %v2876, %v2875
        %v2944 = vpack.c.b16 %v2878, %v2877
        %v2945 = vpack.c.b16 %v2880, %v2879
        %v2946 = vpack.c.b16 %v2882, %v2881
        %3011 = vmatprep.subr.bf16.mxu0 0
        %3012 = vmatpush1.bf16.msra.mxu0 %v2883
        %3013 = vmatprep.subr.bf16.mxu0 0
        %3014 = vmatpush1.bf16.msra.mxu0 %v2884
        %3015 = vmatprep.subr.bf16.mxu0 0
        %3016 = vmatpush1.bf16.msra.mxu0 %v2885
        %3017 = vmatprep.subr.bf16.mxu0 0
        %3018 = vmatpush1.bf16.msra.mxu0 %v2886
        %3019 = vmatprep.subr.bf16.mxu0 0
        %3020 = vmatpush1.bf16.msra.mxu0 %v2887
        %3021 = vmatprep.subr.bf16.mxu0 0
        %3022 = vmatpush1.bf16.msra.mxu0 %v2888
        %3023 = vmatprep.subr.bf16.mxu0 0
        %3024 = vmatpush1.bf16.msra.mxu0 %v2889
        %3025 = vmatprep.subr.bf16.mxu0 0
        %3026 = vmatpush1.bf16.msra.mxu0 %v2890
        %3027 = vmatprep.subr.bf16.mxu0 0
        %3028 = vmatpush1.bf16.msra.mxu0 %v2891
        %3029 = vmatprep.subr.bf16.mxu0 0
        %3030 = vmatpush1.bf16.msra.mxu0 %v2892
        %3031 = vmatprep.subr.bf16.mxu0 0
        %3032 = vmatpush1.bf16.msra.mxu0 %v2893
        %3033 = vmatprep.subr.bf16.mxu0 0
        %3034 = vmatpush1.bf16.msra.mxu0 %v2894
        %3035 = vmatprep.subr.bf16.mxu0 0
        %3036 = vmatpush1.bf16.msra.mxu0 %v2895
        %3037 = vmatprep.subr.bf16.mxu0 0
        %3038 = vmatpush1.bf16.msra.mxu0 %v2896
        %3039 = vmatprep.subr.bf16.mxu0 0
        %3040 = vmatpush1.bf16.msra.mxu0 %v2897
        %3041 = vmatprep.subr.bf16.mxu0 0
        %3042 = vmatpush1.bf16.msra.mxu0 %v2898
        %3043 = vmatprep.mubr.bf16.mxu0 %v2607
        %3044 = vmatmul.mubr.bf16.gmra.mrb[0].mxu0 %v2593
        %v3045 = vpop.f32.mrb[0].mxu0
        %v3046 = vadd.f32 0.0, %v3045
        %v3047 = vpop.f32.mrb[0].mxu0
        %v3048 = vpop.f32.mrb[0].mxu0
        %v3049 = vpop.f32.mrb[0].mxu0
        %3050 = vdwg.mxu0
        %3051 = vmatprep.subr.bf16.mxu0 0
        %3052 = vmatpush1.bf16.msra.mxu0 %v2899
        %3053 = vmatprep.subr.bf16.mxu0 0
        %3054 = vmatpush1.bf16.msra.mxu0 %v2900
        %3055 = vmatprep.subr.bf16.mxu0 0
        %3056 = vmatpush1.bf16.msra.mxu0 %v2901
        %3057 = vmatprep.subr.bf16.mxu0 0
        %3058 = vmatpush1.bf16.msra.mxu0 %v2902
        %3059 = vmatprep.subr.bf16.mxu0 0
        %3060 = vmatpush1.bf16.msra.mxu0 %v2903
        %3061 = vmatprep.subr.bf16.mxu0 0
        %3062 = vmatpush1.bf16.msra.mxu0 %v2904
        %3063 = vmatprep.subr.bf16.mxu0 0
        %3064 = vmatpush1.bf16.msra.mxu0 %v2905
        %3065 = vmatprep.subr.bf16.mxu0 0
        %3066 = vmatpush1.bf16.msra.mxu0 %v2906
        %3067 = vmatprep.subr.bf16.mxu0 0
        %3068 = vmatpush1.bf16.msra.mxu0 %v2907
        %3069 = vmatprep.subr.bf16.mxu0 0
        %3070 = vmatpush1.bf16.msra.mxu0 %v2908
        %3071 = vmatprep.subr.bf16.mxu0 0
        %3072 = vmatpush1.bf16.msra.mxu0 %v2909
        %3073 = vmatprep.subr.bf16.mxu0 0
        %3074 = vmatpush1.bf16.msra.mxu0 %v2910
        %3075 = vmatprep.subr.bf16.mxu0 0
        %3076 = vmatpush1.bf16.msra.mxu0 %v2911
        %3077 = vmatprep.subr.bf16.mxu0 0
        %3078 = vmatpush1.bf16.msra.mxu0 %v2912
        %3079 = vmatprep.subr.bf16.mxu0 0
        %3080 = vmatpush1.bf16.msra.mxu0 %v2913
        %3081 = vmatprep.subr.bf16.mxu0 0
        %3082 = vmatpush1.bf16.msra.mxu0 %v2914
        %3083 = vmatprep.mubr.bf16.mxu0 %v2617
        %3084 = vmatmul.mubr.bf16.gmra.mrb[0].mxu0 %v2615
        %v3085 = vpop.f32.mrb[0].mxu0
        %v3086 = vadd.f32 %v3046, %v3085
        %v3087 = vpop.f32.mrb[0].mxu0
        %v3088 = vpop.f32.mrb[0].mxu0
        %v3089 = vpop.f32.mrb[0].mxu0
        %3090 = vdwg.mxu0
        %3091 = vmatprep.subr.bf16.mxu0 0
        %3092 = vmatpush1.bf16.msra.mxu0 %v2915
        %3093 = vmatprep.subr.bf16.mxu0 0
        %3094 = vmatpush1.bf16.msra.mxu0 %v2916
        %3095 = vmatprep.subr.bf16.mxu0 0
        %3096 = vmatpush1.bf16.msra.mxu0 %v2917
        %3097 = vmatprep.subr.bf16.mxu0 0
        %3098 = vmatpush1.bf16.msra.mxu0 %v2918
        %3099 = vmatprep.subr.bf16.mxu0 0
        %3100 = vmatpush1.bf16.msra.mxu0 %v2919
        %3101 = vmatprep.subr.bf16.mxu0 0
        %3102 = vmatpush1.bf16.msra.mxu0 %v2920
        %3103 = vmatprep.subr.bf16.mxu0 0
        %3104 = vmatpush1.bf16.msra.mxu0 %v2921
        %3105 = vmatprep.subr.bf16.mxu0 0
        %3106 = vmatpush1.bf16.msra.mxu0 %v2922
        %3107 = vmatprep.subr.bf16.mxu0 0
        %3108 = vmatpush1.bf16.msra.mxu0 %v2923
        %3109 = vmatprep.subr.bf16.mxu0 0
        %3110 = vmatpush1.bf16.msra.mxu0 %v2924
        %3111 = vmatprep.subr.bf16.mxu0 0
        %3112 = vmatpush1.bf16.msra.mxu0 %v2925
        %3113 = vmatprep.subr.bf16.mxu0 0
        %3114 = vmatpush1.bf16.msra.mxu0 %v2926
        %3115 = vmatprep.subr.bf16.mxu0 0
        %3116 = vmatpush1.bf16.msra.mxu0 %v2927
        %3117 = vmatprep.subr.bf16.mxu0 0
        %3118 = vmatpush1.bf16.msra.mxu0 %v2928
        %3119 = vmatprep.subr.bf16.mxu0 0
        %3120 = vmatpush1.bf16.msra.mxu0 %v2929
        %3121 = vmatprep.subr.bf16.mxu0 0
        %3122 = vmatpush1.bf16.msra.mxu0 %v2930
        %3123 = vmatprep.mubr.bf16.mxu0 %v2614
        %3124 = vmatmul.mubr.bf16.gmra.mrb[0].mxu0 %v2600
        %v3125 = vpop.f32.mrb[0].mxu0
        %v3126 = vadd.f32 %v3086, %v3125
        %v3127 = vpop.f32.mrb[0].mxu0
        %v3128 = vpop.f32.mrb[0].mxu0
        %v3129 = vpop.f32.mrb[0].mxu0
        %3130 = vdwg.mxu0
        %3131 = vmatprep.subr.bf16.mxu0 0
        %3132 = vmatpush1.bf16.msra.mxu0 %v2931
        %3133 = vmatprep.subr.bf16.mxu0 0
        %3134 = vmatpush1.bf16.msra.mxu0 %v2932
        %3135 = vmatprep.subr.bf16.mxu0 0
        %3136 = vmatpush1.bf16.msra.mxu0 %v2933
        %3137 = vmatprep.subr.bf16.mxu0 0
        %3138 = vmatpush1.bf16.msra.mxu0 %v2934
        %3139 = vmatprep.subr.bf16.mxu0 0
        %3140 = vmatpush1.bf16.msra.mxu0 %v2935
        %3141 = vmatprep.subr.bf16.mxu0 0
        %3142 = vmatpush1.bf16.msra.mxu0 %v2936
        %3143 = vmatprep.subr.bf16.mxu0 0
        %3144 = vmatpush1.bf16.msra.mxu0 %v2937
        %3145 = vmatprep.subr.bf16.mxu0 0
        %3146 = vmatpush1.bf16.msra.mxu0 %v2938
        %3147 = vmatprep.subr.bf16.mxu0 0
        %3148 = vmatpush1.bf16.msra.mxu0 %v2939
        %3149 = vmatprep.subr.bf16.mxu0 0
        %3150 = vmatpush1.bf16.msra.mxu0 %v2940
        %3151 = vmatprep.subr.bf16.mxu0 0
        %3152 = vmatpush1.bf16.msra.mxu0 %v2941
        %3153 = vmatprep.subr.bf16.mxu0 0
        %3154 = vmatpush1.bf16.msra.mxu0 %v2942
        %3155 = vmatprep.subr.bf16.mxu0 0
        %3156 = vmatpush1.bf16.msra.mxu0 %v2943
        %3157 = vmatprep.subr.bf16.mxu0 0
        %3158 = vmatpush1.bf16.msra.mxu0 %v2944
        %3159 = vmatprep.subr.bf16.mxu0 0
        %3160 = vmatpush1.bf16.msra.mxu0 %v2945
        %3161 = vmatprep.subr.bf16.mxu0 0
        %3162 = vmatpush1.bf16.msra.mxu0 %v2946
        %3163 = vmatprep.mubr.bf16.mxu0 %v2618
        %3164 = vmatmul.mubr.bf16.gmra.mrb[0].mxu0 %v2616
        %v3165 = vpop.f32.mrb[0].mxu0
        %v3166 = vadd.f32 %v3126, %v3165
        %v3167 = vpop.f32.mrb[0].mxu0
        %v3168 = vpop.f32.mrb[0].mxu0
        %v3169 = vpop.f32.mrb[0].mxu0
        %3170 = vdwg.mxu0
        %v3172 = vcombine.high %v336, %v336
        %v3174 = vunpack.c.l.s4 1966171168
        %v3175 = vunpack.c.0.s8 %v3174
        %v3176 = vlaneseq
        %v3177 = vshrl.u32 %v3176, 7
        %v3178 = vsub.s32 %v3175, %v3177
        %v3179 = vrot.slane %v336, %v3178
        %v3181 = vunpack.c.l.s4 1966171168
        %v3182 = vunpack.c.0.s8 %v3181
        %v3183 = vlaneseq
        %v3184 = vshrl.u32 %v3183, 7
        %v3185 = vsub.s32 %v3182, %v3184
        %v3186 = vrot.slane %v3172, %v3185
        %v3187 = vcombine.high %v3179, %v3179
        %v3188 = vcombine.high %v3186, %v3186
        %v3190 = vunpack.c.l.s4 1966171168
        %v3191 = vunpack.c.0.s8 %v3190
        %v3192 = vlaneseq
        %v3193 = vshrl.u32 %v3192, 7
        %v3194 = vsub.s32 %v3191, %v3193
        %v3195 = vrot.slane %v3179, %v3194
        %v3197 = vunpack.c.l.s4 1966171168
        %v3198 = vunpack.c.0.s8 %v3197
        %v3199 = vlaneseq
        %v3200 = vshrl.u32 %v3199, 7
        %v3201 = vsub.s32 %v3198, %v3200
        %v3202 = vrot.slane %v3186, %v3201
        %v3204 = vunpack.c.l.s4 1966171168
        %v3205 = vunpack.c.0.s8 %v3204
        %v3206 = vlaneseq
        %v3207 = vshrl.u32 %v3206, 7
        %v3208 = vsub.s32 %v3205, %v3207
        %v3209 = vrot.slane %v3187, %v3208
        %v3211 = vunpack.c.l.s4 1966171168
        %v3212 = vunpack.c.0.s8 %v3211
        %v3213 = vlaneseq
        %v3214 = vshrl.u32 %v3213, 7
        %v3215 = vsub.s32 %v3212, %v3214
        %v3216 = vrot.slane %v3188, %v3215
        %v3217 = vcombine.high %v3195, %v3195
        %v3218 = vcombine.high %v3202, %v3202
        %v3219 = vcombine.high %v3209, %v3209
        %v3220 = vcombine.high %v3216, %v3216
        %v3357 = vunpack.c.l.b16 %v725
        %v3358 = vunpack.c.l.b16 %v726
        %v3359 = vunpack.c.l.b16 %v727
        %v3360 = vunpack.c.l.b16 %v728
        %v3361 = vunpack.c.l.b16 %v729
        %v3362 = vunpack.c.l.b16 %v730
        %v3363 = vunpack.c.l.b16 %v731
        %v3364 = vunpack.c.l.b16 %v732
        %v3365 = vunpack.c.l.b16 %v733
        %v3366 = vunpack.c.l.b16 %v734
        %v3367 = vunpack.c.l.b16 %v735
        %v3368 = vunpack.c.l.b16 %v736
        %v3369 = vunpack.c.l.b16 %v737
        %v3370 = vunpack.c.l.b16 %v738
        %v3371 = vunpack.c.l.b16 %v739
        %v3372 = vunpack.c.l.b16 %v740
        %v3373 = vunpack.c.l.b16 %v741
        %v3374 = vunpack.c.l.b16 %v742
        %v3375 = vunpack.c.l.b16 %v743
        %v3376 = vunpack.c.l.b16 %v744
        %v3377 = vunpack.c.l.b16 %v745
        %v3378 = vunpack.c.l.b16 %v746
        %v3379 = vunpack.c.l.b16 %v747
        %v3380 = vunpack.c.l.b16 %v748
        %v3381 = vunpack.c.l.b16 %v749
        %v3382 = vunpack.c.l.b16 %v750
        %v3383 = vunpack.c.l.b16 %v751
        %v3384 = vunpack.c.l.b16 %v752
        %v3385 = vunpack.c.l.b16 %v753
        %v3386 = vunpack.c.l.b16 %v754
        %v3387 = vunpack.c.l.b16 %v755
        %v3388 = vunpack.c.l.b16 %v756
        %v3389 = vunpack.c.l.b16 %v757
        %v3390 = vunpack.c.l.b16 %v758
        %v3391 = vunpack.c.l.b16 %v759
        %v3392 = vunpack.c.l.b16 %v760
        %v3393 = vunpack.c.l.b16 %v761
        %v3394 = vunpack.c.l.b16 %v762
        %v3395 = vunpack.c.l.b16 %v763
        %v3396 = vunpack.c.l.b16 %v764
        %v3397 = vunpack.c.l.b16 %v765
        %v3398 = vunpack.c.l.b16 %v766
        %v3399 = vunpack.c.l.b16 %v767
        %v3400 = vunpack.c.l.b16 %v768
        %v3401 = vunpack.c.l.b16 %v769
        %v3402 = vunpack.c.l.b16 %v770
        %v3403 = vunpack.c.l.b16 %v771
        %v3404 = vunpack.c.l.b16 %v772
        %v3405 = vunpack.c.l.b16 %v773
        %v3406 = vunpack.c.l.b16 %v774
        %v3407 = vunpack.c.l.b16 %v775
        %v3408 = vunpack.c.l.b16 %v776
        %v3409 = vunpack.c.l.b16 %v777
        %v3410 = vunpack.c.l.b16 %v778
        %v3411 = vunpack.c.l.b16 %v779
        %v3412 = vunpack.c.l.b16 %v780
        %v3413 = vunpack.c.l.b16 %v781
        %v3414 = vunpack.c.l.b16 %v782
        %v3415 = vunpack.c.l.b16 %v783
        %v3416 = vunpack.c.l.b16 %v784
        %v3417 = vunpack.c.l.b16 %v785
        %v3418 = vunpack.c.l.b16 %v786
        %v3419 = vunpack.c.l.b16 %v787
        %v3420 = vunpack.c.l.b16 %v788
        %v3421 = vunpack.c.l.b16 %v789
        %v3422 = vunpack.c.l.b16 %v790
        %v3423 = vunpack.c.l.b16 %v791
        %v3424 = vunpack.c.l.b16 %v792
        %v3425 = vunpack.c.l.b16 %v793
        %v3426 = vunpack.c.l.b16 %v794
        %v3427 = vunpack.c.l.b16 %v795
        %v3428 = vunpack.c.l.b16 %v796
        %v3429 = vunpack.c.l.b16 %v797
        %v3430 = vunpack.c.l.b16 %v798
        %v3431 = vunpack.c.l.b16 %v799
        %v3432 = vunpack.c.l.b16 %v800
        %v3433 = vunpack.c.l.b16 %v801
        %v3434 = vunpack.c.l.b16 %v802
        %v3435 = vunpack.c.l.b16 %v803
        %v3436 = vunpack.c.l.b16 %v804
        %v3437 = vunpack.c.l.b16 %v805
        %v3438 = vunpack.c.l.b16 %v806
        %v3439 = vunpack.c.l.b16 %v807
        %v3440 = vunpack.c.l.b16 %v808
        %v3441 = vunpack.c.l.b16 %v809
        %v3442 = vunpack.c.l.b16 %v810
        %v3443 = vunpack.c.l.b16 %v811
        %v3444 = vunpack.c.l.b16 %v812
        %v3445 = vunpack.c.l.b16 %v813
        %v3446 = vunpack.c.l.b16 %v814
        %v3447 = vunpack.c.l.b16 %v815
        %v3448 = vunpack.c.l.b16 %v816
        %v3449 = vunpack.c.l.b16 %v817
        %v3450 = vunpack.c.l.b16 %v818
        %v3451 = vunpack.c.l.b16 %v819
        %v3452 = vunpack.c.l.b16 %v820
        %v3453 = vunpack.c.l.b16 %v821
        %v3454 = vunpack.c.l.b16 %v822
        %v3455 = vunpack.c.l.b16 %v823
        %v3456 = vunpack.c.l.b16 %v824
        %v3457 = vunpack.c.l.b16 %v825
        %v3458 = vunpack.c.l.b16 %v826
        %v3459 = vunpack.c.l.b16 %v827
        %v3460 = vunpack.c.l.b16 %v828
        %v3461 = vunpack.c.l.b16 %v829
        %v3462 = vunpack.c.l.b16 %v830
        %v3463 = vunpack.c.l.b16 %v831
        %v3464 = vunpack.c.l.b16 %v832
        %v3465 = vunpack.c.l.b16 %v833
        %v3466 = vunpack.c.l.b16 %v834
        %v3467 = vunpack.c.l.b16 %v835
        %v3468 = vunpack.c.l.b16 %v836
        %v3469 = vunpack.c.l.b16 %v837
        %v3470 = vunpack.c.l.b16 %v838
        %v3471 = vunpack.c.l.b16 %v839
        %v3472 = vunpack.c.l.b16 %v840
        %v3473 = vunpack.c.l.b16 %v841
        %v3474 = vunpack.c.l.b16 %v842
        %v3475 = vunpack.c.l.b16 %v843
        %v3476 = vunpack.c.l.b16 %v844
        %v3477 = vunpack.c.l.b16 %v845
        %v3478 = vunpack.c.l.b16 %v846
        %v3479 = vunpack.c.l.b16 %v847
        %v3480 = vunpack.c.l.b16 %v848
        %v3481 = vunpack.c.l.b16 %v849
        %v3482 = vunpack.c.l.b16 %v850
        %v3483 = vunpack.c.l.b16 %v851
        %v3484 = vunpack.c.l.b16 %v852
        %v3485 = vpack.c.b16 %v3358, %v3357
        %v3486 = vpack.c.b16 %v3360, %v3359
        %v3487 = vpack.c.b16 %v3362, %v3361
        %v3488 = vpack.c.b16 %v3364, %v3363
        %v3489 = vpack.c.b16 %v3366, %v3365
        %v3490 = vpack.c.b16 %v3368, %v3367
        %v3491 = vpack.c.b16 %v3370, %v3369
        %v3492 = vpack.c.b16 %v3372, %v3371
        %v3493 = vpack.c.b16 %v3374, %v3373
        %v3494 = vpack.c.b16 %v3376, %v3375
        %v3495 = vpack.c.b16 %v3378, %v3377
        %v3496 = vpack.c.b16 %v3380, %v3379
        %v3497 = vpack.c.b16 %v3382, %v3381
        %v3498 = vpack.c.b16 %v3384, %v3383
        %v3499 = vpack.c.b16 %v3386, %v3385
        %v3500 = vpack.c.b16 %v3388, %v3387
        %v3501 = vpack.c.b16 %v3390, %v3389
        %v3502 = vpack.c.b16 %v3392, %v3391
        %v3503 = vpack.c.b16 %v3394, %v3393
        %v3504 = vpack.c.b16 %v3396, %v3395
        %v3505 = vpack.c.b16 %v3398, %v3397
        %v3506 = vpack.c.b16 %v3400, %v3399
        %v3507 = vpack.c.b16 %v3402, %v3401
        %v3508 = vpack.c.b16 %v3404, %v3403
        %v3509 = vpack.c.b16 %v3406, %v3405
        %v3510 = vpack.c.b16 %v3408, %v3407
        %v3511 = vpack.c.b16 %v3410, %v3409
        %v3512 = vpack.c.b16 %v3412, %v3411
        %v3513 = vpack.c.b16 %v3414, %v3413
        %v3514 = vpack.c.b16 %v3416, %v3415
        %v3515 = vpack.c.b16 %v3418, %v3417
        %v3516 = vpack.c.b16 %v3420, %v3419
        %v3517 = vpack.c.b16 %v3422, %v3421
        %v3518 = vpack.c.b16 %v3424, %v3423
        %v3519 = vpack.c.b16 %v3426, %v3425
        %v3520 = vpack.c.b16 %v3428, %v3427
        %v3521 = vpack.c.b16 %v3430, %v3429
        %v3522 = vpack.c.b16 %v3432, %v3431
        %v3523 = vpack.c.b16 %v3434, %v3433
        %v3524 = vpack.c.b16 %v3436, %v3435
        %v3525 = vpack.c.b16 %v3438, %v3437
        %v3526 = vpack.c.b16 %v3440, %v3439
        %v3527 = vpack.c.b16 %v3442, %v3441
        %v3528 = vpack.c.b16 %v3444, %v3443
        %v3529 = vpack.c.b16 %v3446, %v3445
        %v3530 = vpack.c.b16 %v3448, %v3447
        %v3531 = vpack.c.b16 %v3450, %v3449
        %v3532 = vpack.c.b16 %v3452, %v3451
        %v3533 = vpack.c.b16 %v3454, %v3453
        %v3534 = vpack.c.b16 %v3456, %v3455
        %v3535 = vpack.c.b16 %v3458, %v3457
        %v3536 = vpack.c.b16 %v3460, %v3459
        %v3537 = vpack.c.b16 %v3462, %v3461
        %v3538 = vpack.c.b16 %v3464, %v3463
        %v3539 = vpack.c.b16 %v3466, %v3465
        %v3540 = vpack.c.b16 %v3468, %v3467
        %v3541 = vpack.c.b16 %v3470, %v3469
        %v3542 = vpack.c.b16 %v3472, %v3471
        %v3543 = vpack.c.b16 %v3474, %v3473
        %v3544 = vpack.c.b16 %v3476, %v3475
        %v3545 = vpack.c.b16 %v3478, %v3477
        %v3546 = vpack.c.b16 %v3480, %v3479
        %v3547 = vpack.c.b16 %v3482, %v3481
        %v3548 = vpack.c.b16 %v3484, %v3483
        %3613 = vmatprep.subr.bf16.mxu0 0
        %3614 = vmatpush1.bf16.msra.mxu0 %v3485
        %3615 = vmatprep.subr.bf16.mxu0 0
        %3616 = vmatpush1.bf16.msra.mxu0 %v3486
        %3617 = vmatprep.subr.bf16.mxu0 0
        %3618 = vmatpush1.bf16.msra.mxu0 %v3487
        %3619 = vmatprep.subr.bf16.mxu0 0
        %3620 = vmatpush1.bf16.msra.mxu0 %v3488
        %3621 = vmatprep.subr.bf16.mxu0 0
        %3622 = vmatpush1.bf16.msra.mxu0 %v3489
        %3623 = vmatprep.subr.bf16.mxu0 0
        %3624 = vmatpush1.bf16.msra.mxu0 %v3490
        %3625 = vmatprep.subr.bf16.mxu0 0
        %3626 = vmatpush1.bf16.msra.mxu0 %v3491
        %3627 = vmatprep.subr.bf16.mxu0 0
        %3628 = vmatpush1.bf16.msra.mxu0 %v3492
        %3629 = vmatprep.subr.bf16.mxu0 0
        %3630 = vmatpush1.bf16.msra.mxu0 %v3493
        %3631 = vmatprep.subr.bf16.mxu0 0
        %3632 = vmatpush1.bf16.msra.mxu0 %v3494
        %3633 = vmatprep.subr.bf16.mxu0 0
        %3634 = vmatpush1.bf16.msra.mxu0 %v3495
        %3635 = vmatprep.subr.bf16.mxu0 0
        %3636 = vmatpush1.bf16.msra.mxu0 %v3496
        %3637 = vmatprep.subr.bf16.mxu0 0
        %3638 = vmatpush1.bf16.msra.mxu0 %v3497
        %3639 = vmatprep.subr.bf16.mxu0 0
        %3640 = vmatpush1.bf16.msra.mxu0 %v3498
        %3641 = vmatprep.subr.bf16.mxu0 0
        %3642 = vmatpush1.bf16.msra.mxu0 %v3499
        %3643 = vmatprep.subr.bf16.mxu0 0
        %3644 = vmatpush1.bf16.msra.mxu0 %v3500
        %3645 = vmatprep.mubr.bf16.mxu0 %v3209
        %3646 = vmatmul.mubr.bf16.gmra.mrb[0].mxu0 %v3195
        %v3647 = vpop.f32.mrb[0].mxu0
        %v3648 = vadd.f32 0.0, %v3647
        %v3649 = vpop.f32.mrb[0].mxu0
        %v3650 = vpop.f32.mrb[0].mxu0
        %v3651 = vpop.f32.mrb[0].mxu0
        %3652 = vdwg.mxu0
        %3653 = vmatprep.subr.bf16.mxu0 0
        %3654 = vmatpush1.bf16.msra.mxu0 %v3501
        %3655 = vmatprep.subr.bf16.mxu0 0
        %3656 = vmatpush1.bf16.msra.mxu0 %v3502
        %3657 = vmatprep.subr.bf16.mxu0 0
        %3658 = vmatpush1.bf16.msra.mxu0 %v3503
        %3659 = vmatprep.subr.bf16.mxu0 0
        %3660 = vmatpush1.bf16.msra.mxu0 %v3504
        %3661 = vmatprep.subr.bf16.mxu0 0
        %3662 = vmatpush1.bf16.msra.mxu0 %v3505
        %3663 = vmatprep.subr.bf16.mxu0 0
        %3664 = vmatpush1.bf16.msra.mxu0 %v3506
        %3665 = vmatprep.subr.bf16.mxu0 0
        %3666 = vmatpush1.bf16.msra.mxu0 %v3507
        %3667 = vmatprep.subr.bf16.mxu0 0
        %3668 = vmatpush1.bf16.msra.mxu0 %v3508
        %3669 = vmatprep.subr.bf16.mxu0 0
        %3670 = vmatpush1.bf16.msra.mxu0 %v3509
        %3671 = vmatprep.subr.bf16.mxu0 0
        %3672 = vmatpush1.bf16.msra.mxu0 %v3510
        %3673 = vmatprep.subr.bf16.mxu0 0
        %3674 = vmatpush1.bf16.msra.mxu0 %v3511
        %3675 = vmatprep.subr.bf16.mxu0 0
        %3676 = vmatpush1.bf16.msra.mxu0 %v3512
        %3677 = vmatprep.subr.bf16.mxu0 0
        %3678 = vmatpush1.bf16.msra.mxu0 %v3513
        %3679 = vmatprep.subr.bf16.mxu0 0
        %3680 = vmatpush1.bf16.msra.mxu0 %v3514
        %3681 = vmatprep.subr.bf16.mxu0 0
        %3682 = vmatpush1.bf16.msra.mxu0 %v3515
        %3683 = vmatprep.subr.bf16.mxu0 0
        %3684 = vmatpush1.bf16.msra.mxu0 %v3516
        %3685 = vmatprep.mubr.bf16.mxu0 %v3219
        %3686 = vmatmul.mubr.bf16.gmra.mrb[0].mxu0 %v3217
        %v3687 = vpop.f32.mrb[0].mxu0
        %v3688 = vadd.f32 %v3648, %v3687
        %v3689 = vpop.f32.mrb[0].mxu0
        %v3690 = vpop.f32.mrb[0].mxu0
        %v3691 = vpop.f32.mrb[0].mxu0
        %3692 = vdwg.mxu0
        %3693 = vmatprep.subr.bf16.mxu0 0
        %3694 = vmatpush1.bf16.msra.mxu0 %v3517
        %3695 = vmatprep.subr.bf16.mxu0 0
        %3696 = vmatpush1.bf16.msra.mxu0 %v3518
        %3697 = vmatprep.subr.bf16.mxu0 0
        %3698 = vmatpush1.bf16.msra.mxu0 %v3519
        %3699 = vmatprep.subr.bf16.mxu0 0
        %3700 = vmatpush1.bf16.msra.mxu0 %v3520
        %3701 = vmatprep.subr.bf16.mxu0 0
        %3702 = vmatpush1.bf16.msra.mxu0 %v3521
        %3703 = vmatprep.subr.bf16.mxu0 0
        %3704 = vmatpush1.bf16.msra.mxu0 %v3522
        %3705 = vmatprep.subr.bf16.mxu0 0
        %3706 = vmatpush1.bf16.msra.mxu0 %v3523
        %3707 = vmatprep.subr.bf16.mxu0 0
        %3708 = vmatpush1.bf16.msra.mxu0 %v3524
        %3709 = vmatprep.subr.bf16.mxu0 0
        %3710 = vmatpush1.bf16.msra.mxu0 %v3525
        %3711 = vmatprep.subr.bf16.mxu0 0
        %3712 = vmatpush1.bf16.msra.mxu0 %v3526
        %3713 = vmatprep.subr.bf16.mxu0 0
        %3714 = vmatpush1.bf16.msra.mxu0 %v3527
        %3715 = vmatprep.subr.bf16.mxu0 0
        %3716 = vmatpush1.bf16.msra.mxu0 %v3528
        %3717 = vmatprep.subr.bf16.mxu0 0
        %3718 = vmatpush1.bf16.msra.mxu0 %v3529
        %3719 = vmatprep.subr.bf16.mxu0 0
        %3720 = vmatpush1.bf16.msra.mxu0 %v3530
        %3721 = vmatprep.subr.bf16.mxu0 0
        %3722 = vmatpush1.bf16.msra.mxu0 %v3531
        %3723 = vmatprep.subr.bf16.mxu0 0
        %3724 = vmatpush1.bf16.msra.mxu0 %v3532
        %3725 = vmatprep.mubr.bf16.mxu0 %v3216
        %3726 = vmatmul.mubr.bf16.gmra.mrb[0].mxu0 %v3202
        %v3727 = vpop.f32.mrb[0].mxu0
        %v3728 = vadd.f32 %v3688, %v3727
        %v3729 = vpop.f32.mrb[0].mxu0
        %v3730 = vpop.f32.mrb[0].mxu0
        %v3731 = vpop.f32.mrb[0].mxu0
        %3732 = vdwg.mxu0
        %3733 = vmatprep.subr.bf16.mxu0 0
        %3734 = vmatpush1.bf16.msra.mxu0 %v3533
        %3735 = vmatprep.subr.bf16.mxu0 0
        %3736 = vmatpush1.bf16.msra.mxu0 %v3534
        %3737 = vmatprep.subr.bf16.mxu0 0
        %3738 = vmatpush1.bf16.msra.mxu0 %v3535
        %3739 = vmatprep.subr.bf16.mxu0 0
        %3740 = vmatpush1.bf16.msra.mxu0 %v3536
        %3741 = vmatprep.subr.bf16.mxu0 0
        %3742 = vmatpush1.bf16.msra.mxu0 %v3537
        %3743 = vmatprep.subr.bf16.mxu0 0
        %3744 = vmatpush1.bf16.msra.mxu0 %v3538
        %3745 = vmatprep.subr.bf16.mxu0 0
        %3746 = vmatpush1.bf16.msra.mxu0 %v3539
        %3747 = vmatprep.subr.bf16.mxu0 0
        %3748 = vmatpush1.bf16.msra.mxu0 %v3540
        %3749 = vmatprep.subr.bf16.mxu0 0
        %3750 = vmatpush1.bf16.msra.mxu0 %v3541
        %3751 = vmatprep.subr.bf16.mxu0 0
        %3752 = vmatpush1.bf16.msra.mxu0 %v3542
        %3753 = vmatprep.subr.bf16.mxu0 0
        %3754 = vmatpush1.bf16.msra.mxu0 %v3543
        %3755 = vmatprep.subr.bf16.mxu0 0
        %3756 = vmatpush1.bf16.msra.mxu0 %v3544
        %3757 = vmatprep.subr.bf16.mxu0 0
        %3758 = vmatpush1.bf16.msra.mxu0 %v3545
        %3759 = vmatprep.subr.bf16.mxu0 0
        %3760 = vmatpush1.bf16.msra.mxu0 %v3546
        %3761 = vmatprep.subr.bf16.mxu0 0
        %3762 = vmatpush1.bf16.msra.mxu0 %v3547
        %3763 = vmatprep.subr.bf16.mxu0 0
        %3764 = vmatpush1.bf16.msra.mxu0 %v3548
        %3765 = vmatprep.mubr.bf16.mxu0 %v3220
        %3766 = vmatmul.mubr.bf16.gmra.mrb[0].mxu0 %v3218
        %v3767 = vpop.f32.mrb[0].mxu0
        %v3768 = vadd.f32 %v3728, %v3767
        %v3769 = vpop.f32.mrb[0].mxu0
        %v3770 = vpop.f32.mrb[0].mxu0
        %v3771 = vpop.f32.mrb[0].mxu0
        %3772 = vdwg.mxu0
        %v3774 = vcombine.high %v337, %v337
        %v3776 = vunpack.c.l.s4 1966171168
        %v3777 = vunpack.c.0.s8 %v3776
        %v3778 = vlaneseq
        %v3779 = vshrl.u32 %v3778, 7
        %v3780 = vsub.s32 %v3777, %v3779
        %v3781 = vrot.slane %v337, %v3780
        %v3783 = vunpack.c.l.s4 1966171168
        %v3784 = vunpack.c.0.s8 %v3783
        %v3785 = vlaneseq
        %v3786 = vshrl.u32 %v3785, 7
        %v3787 = vsub.s32 %v3784, %v3786
        %v3788 = vrot.slane %v3774, %v3787
        %v3789 = vcombine.high %v3781, %v3781
        %v3790 = vcombine.high %v3788, %v3788
        %v3792 = vunpack.c.l.s4 1966171168
        %v3793 = vunpack.c.0.s8 %v3792
        %v3794 = vlaneseq
        %v3795 = vshrl.u32 %v3794, 7
        %v3796 = vsub.s32 %v3793, %v3795
        %v3797 = vrot.slane %v3781, %v3796
        %v3799 = vunpack.c.l.s4 1966171168
        %v3800 = vunpack.c.0.s8 %v3799
        %v3801 = vlaneseq
        %v3802 = vshrl.u32 %v3801, 7
        %v3803 = vsub.s32 %v3800, %v3802
        %v3804 = vrot.slane %v3788, %v3803
        %v3806 = vunpack.c.l.s4 1966171168
        %v3807 = vunpack.c.0.s8 %v3806
        %v3808 = vlaneseq
        %v3809 = vshrl.u32 %v3808, 7
        %v3810 = vsub.s32 %v3807, %v3809
        %v3811 = vrot.slane %v3789, %v3810
        %v3813 = vunpack.c.l.s4 1966171168
        %v3814 = vunpack.c.0.s8 %v3813
        %v3815 = vlaneseq
        %v3816 = vshrl.u32 %v3815, 7
        %v3817 = vsub.s32 %v3814, %v3816
        %v3818 = vrot.slane %v3790, %v3817
        %v3819 = vcombine.high %v3797, %v3797
        %v3820 = vcombine.high %v3804, %v3804
        %v3821 = vcombine.high %v3811, %v3811
        %v3822 = vcombine.high %v3818, %v3818
        %v3959 = vunpack.c.l.b16 %v853
        %v3960 = vunpack.c.l.b16 %v854
        %v3961 = vunpack.c.l.b16 %v855
        %v3962 = vunpack.c.l.b16 %v856
        %v3963 = vunpack.c.l.b16 %v857
        %v3964 = vunpack.c.l.b16 %v858
        %v3965 = vunpack.c.l.b16 %v859
        %v3966 = vunpack.c.l.b16 %v860
        %v3967 = vunpack.c.l.b16 %v861
        %v3968 = vunpack.c.l.b16 %v862
        %v3969 = vunpack.c.l.b16 %v863
        %v3970 = vunpack.c.l.b16 %v864
        %v3971 = vunpack.c.l.b16 %v865
        %v3972 = vunpack.c.l.b16 %v866
        %v3973 = vunpack.c.l.b16 %v867
        %v3974 = vunpack.c.l.b16 %v868
        %v3975 = vunpack.c.l.b16 %v869
        %v3976 = vunpack.c.l.b16 %v870
        %v3977 = vunpack.c.l.b16 %v871
        %v3978 = vunpack.c.l.b16 %v872
        %v3979 = vunpack.c.l.b16 %v873
        %v3980 = vunpack.c.l.b16 %v874
        %v3981 = vunpack.c.l.b16 %v875
        %v3982 = vunpack.c.l.b16 %v876
        %v3983 = vunpack.c.l.b16 %v877
        %v3984 = vunpack.c.l.b16 %v878
        %v3985 = vunpack.c.l.b16 %v879
        %v3986 = vunpack.c.l.b16 %v880
        %v3987 = vunpack.c.l.b16 %v881
        %v3988 = vunpack.c.l.b16 %v882
        %v3989 = vunpack.c.l.b16 %v883
        %v3990 = vunpack.c.l.b16 %v884
        %v3991 = vunpack.c.l.b16 %v885
        %v3992 = vunpack.c.l.b16 %v886
        %v3993 = vunpack.c.l.b16 %v887
        %v3994 = vunpack.c.l.b16 %v888
        %v3995 = vunpack.c.l.b16 %v889
        %v3996 = vunpack.c.l.b16 %v890
        %v3997 = vunpack.c.l.b16 %v891
        %v3998 = vunpack.c.l.b16 %v892
        %v3999 = vunpack.c.l.b16 %v893
        %v4000 = vunpack.c.l.b16 %v894
        %v4001 = vunpack.c.l.b16 %v895
        %v4002 = vunpack.c.l.b16 %v896
        %v4003 = vunpack.c.l.b16 %v897
        %v4004 = vunpack.c.l.b16 %v898
        %v4005 = vunpack.c.l.b16 %v899
        %v4006 = vunpack.c.l.b16 %v900
        %v4007 = vunpack.c.l.b16 %v901
        %v4008 = vunpack.c.l.b16 %v902
        %v4009 = vunpack.c.l.b16 %v903
        %v4010 = vunpack.c.l.b16 %v904
        %v4011 = vunpack.c.l.b16 %v905
        %v4012 = vunpack.c.l.b16 %v906
        %v4013 = vunpack.c.l.b16 %v907
        %v4014 = vunpack.c.l.b16 %v908
        %v4015 = vunpack.c.l.b16 %v909
        %v4016 = vunpack.c.l.b16 %v910
        %v4017 = vunpack.c.l.b16 %v911
        %v4018 = vunpack.c.l.b16 %v912
        %v4019 = vunpack.c.l.b16 %v913
        %v4020 = vunpack.c.l.b16 %v914
        %v4021 = vunpack.c.l.b16 %v915
        %v4022 = vunpack.c.l.b16 %v916
        %v4023 = vunpack.c.l.b16 %v917
        %v4024 = vunpack.c.l.b16 %v918
        %v4025 = vunpack.c.l.b16 %v919
        %v4026 = vunpack.c.l.b16 %v920
        %v4027 = vunpack.c.l.b16 %v921
        %v4028 = vunpack.c.l.b16 %v922
        %v4029 = vunpack.c.l.b16 %v923
        %v4030 = vunpack.c.l.b16 %v924
        %v4031 = vunpack.c.l.b16 %v925
        %v4032 = vunpack.c.l.b16 %v926
        %v4033 = vunpack.c.l.b16 %v927
        %v4034 = vunpack.c.l.b16 %v928
        %v4035 = vunpack.c.l.b16 %v929
        %v4036 = vunpack.c.l.b16 %v930
        %v4037 = vunpack.c.l.b16 %v931
        %v4038 = vunpack.c.l.b16 %v932
        %v4039 = vunpack.c.l.b16 %v933
        %v4040 = vunpack.c.l.b16 %v934
        %v4041 = vunpack.c.l.b16 %v935
        %v4042 = vunpack.c.l.b16 %v936
        %v4043 = vunpack.c.l.b16 %v937
        %v4044 = vunpack.c.l.b16 %v938
        %v4045 = vunpack.c.l.b16 %v939
        %v4046 = vunpack.c.l.b16 %v940
        %v4047 = vunpack.c.l.b16 %v941
        %v4048 = vunpack.c.l.b16 %v942
        %v4049 = vunpack.c.l.b16 %v943
        %v4050 = vunpack.c.l.b16 %v944
        %v4051 = vunpack.c.l.b16 %v945
        %v4052 = vunpack.c.l.b16 %v946
        %v4053 = vunpack.c.l.b16 %v947
        %v4054 = vunpack.c.l.b16 %v948
        %v4055 = vunpack.c.l.b16 %v949
        %v4056 = vunpack.c.l.b16 %v950
        %v4057 = vunpack.c.l.b16 %v951
        %v4058 = vunpack.c.l.b16 %v952
        %v4059 = vunpack.c.l.b16 %v953
        %v4060 = vunpack.c.l.b16 %v954
        %v4061 = vunpack.c.l.b16 %v955
        %v4062 = vunpack.c.l.b16 %v956
        %v4063 = vunpack.c.l.b16 %v957
        %v4064 = vunpack.c.l.b16 %v958
        %v4065 = vunpack.c.l.b16 %v959
        %v4066 = vunpack.c.l.b16 %v960
        %v4067 = vunpack.c.l.b16 %v961
        %v4068 = vunpack.c.l.b16 %v962
        %v4069 = vunpack.c.l.b16 %v963
        %v4070 = vunpack.c.l.b16 %v964
        %v4071 = vunpack.c.l.b16 %v965
        %v4072 = vunpack.c.l.b16 %v966
        %v4073 = vunpack.c.l.b16 %v967
        %v4074 = vunpack.c.l.b16 %v968
        %v4075 = vunpack.c.l.b16 %v969
        %v4076 = vunpack.c.l.b16 %v970
        %v4077 = vunpack.c.l.b16 %v971
        %v4078 = vunpack.c.l.b16 %v972
        %v4079 = vunpack.c.l.b16 %v973
        %v4080 = vunpack.c.l.b16 %v974
        %v4081 = vunpack.c.l.b16 %v975
        %v4082 = vunpack.c.l.b16 %v976
        %v4083 = vunpack.c.l.b16 %v977
        %v4084 = vunpack.c.l.b16 %v978
        %v4085 = vunpack.c.l.b16 %v979
        %v4086 = vunpack.c.l.b16 %v980
        %v4087 = vpack.c.b16 %v3960, %v3959
        %v4088 = vpack.c.b16 %v3962, %v3961
        %v4089 = vpack.c.b16 %v3964, %v3963
        %v4090 = vpack.c.b16 %v3966, %v3965
        %v4091 = vpack.c.b16 %v3968, %v3967
        %v4092 = vpack.c.b16 %v3970, %v3969
        %v4093 = vpack.c.b16 %v3972, %v3971
        %v4094 = vpack.c.b16 %v3974, %v3973
        %v4095 = vpack.c.b16 %v3976, %v3975
        %v4096 = vpack.c.b16 %v3978, %v3977
        %v4097 = vpack.c.b16 %v3980, %v3979
        %v4098 = vpack.c.b16 %v3982, %v3981
        %v4099 = vpack.c.b16 %v3984, %v3983
        %v4100 = vpack.c.b16 %v3986, %v3985
        %v4101 = vpack.c.b16 %v3988, %v3987
        %v4102 = vpack.c.b16 %v3990, %v3989
        %v4103 = vpack.c.b16 %v3992, %v3991
        %v4104 = vpack.c.b16 %v3994, %v3993
        %v4105 = vpack.c.b16 %v3996, %v3995
        %v4106 = vpack.c.b16 %v3998, %v3997
        %v4107 = vpack.c.b16 %v4000, %v3999
        %v4108 = vpack.c.b16 %v4002, %v4001
        %v4109 = vpack.c.b16 %v4004, %v4003
        %v4110 = vpack.c.b16 %v4006, %v4005
        %v4111 = vpack.c.b16 %v4008, %v4007
        %v4112 = vpack.c.b16 %v4010, %v4009
        %v4113 = vpack.c.b16 %v4012, %v4011
        %v4114 = vpack.c.b16 %v4014, %v4013
        %v4115 = vpack.c.b16 %v4016, %v4015
        %v4116 = vpack.c.b16 %v4018, %v4017
        %v4117 = vpack.c.b16 %v4020, %v4019
        %v4118 = vpack.c.b16 %v4022, %v4021
        %v4119 = vpack.c.b16 %v4024, %v4023
        %v4120 = vpack.c.b16 %v4026, %v4025
        %v4121 = vpack.c.b16 %v4028, %v4027
        %v4122 = vpack.c.b16 %v4030, %v4029
        %v4123 = vpack.c.b16 %v4032, %v4031
        %v4124 = vpack.c.b16 %v4034, %v4033
        %v4125 = vpack.c.b16 %v4036, %v4035
        %v4126 = vpack.c.b16 %v4038, %v4037
        %v4127 = vpack.c.b16 %v4040, %v4039
        %v4128 = vpack.c.b16 %v4042, %v4041
        %v4129 = vpack.c.b16 %v4044, %v4043
        %v4130 = vpack.c.b16 %v4046, %v4045
        %v4131 = vpack.c.b16 %v4048, %v4047
        %v4132 = vpack.c.b16 %v4050, %v4049
        %v4133 = vpack.c.b16 %v4052, %v4051
        %v4134 = vpack.c.b16 %v4054, %v4053
        %v4135 = vpack.c.b16 %v4056, %v4055
        %v4136 = vpack.c.b16 %v4058, %v4057
        %v4137 = vpack.c.b16 %v4060, %v4059
        %v4138 = vpack.c.b16 %v4062, %v4061
        %v4139 = vpack.c.b16 %v4064, %v4063
        %v4140 = vpack.c.b16 %v4066, %v4065
        %v4141 = vpack.c.b16 %v4068, %v4067
        %v4142 = vpack.c.b16 %v4070, %v4069
        %v4143 = vpack.c.b16 %v4072, %v4071
        %v4144 = vpack.c.b16 %v4074, %v4073
        %v4145 = vpack.c.b16 %v4076, %v4075
        %v4146 = vpack.c.b16 %v4078, %v4077
        %v4147 = vpack.c.b16 %v4080, %v4079
        %v4148 = vpack.c.b16 %v4082, %v4081
        %v4149 = vpack.c.b16 %v4084, %v4083
        %v4150 = vpack.c.b16 %v4086, %v4085
        %4215 = vmatprep.subr.bf16.mxu0 0
        %4216 = vmatpush1.bf16.msra.mxu0 %v4087
        %4217 = vmatprep.subr.bf16.mxu0 0
        %4218 = vmatpush1.bf16.msra.mxu0 %v4088
        %4219 = vmatprep.subr.bf16.mxu0 0
        %4220 = vmatpush1.bf16.msra.mxu0 %v4089
        %4221 = vmatprep.subr.bf16.mxu0 0
        %4222 = vmatpush1.bf16.msra.mxu0 %v4090
        %4223 = vmatprep.subr.bf16.mxu0 0
        %4224 = vmatpush1.bf16.msra.mxu0 %v4091
        %4225 = vmatprep.subr.bf16.mxu0 0
        %4226 = vmatpush1.bf16.msra.mxu0 %v4092
        %4227 = vmatprep.subr.bf16.mxu0 0
        %4228 = vmatpush1.bf16.msra.mxu0 %v4093
        %4229 = vmatprep.subr.bf16.mxu0 0
        %4230 = vmatpush1.bf16.msra.mxu0 %v4094
        %4231 = vmatprep.subr.bf16.mxu0 0
        %4232 = vmatpush1.bf16.msra.mxu0 %v4095
        %4233 = vmatprep.subr.bf16.mxu0 0
        %4234 = vmatpush1.bf16.msra.mxu0 %v4096
        %4235 = vmatprep.subr.bf16.mxu0 0
        %4236 = vmatpush1.bf16.msra.mxu0 %v4097
        %4237 = vmatprep.subr.bf16.mxu0 0
        %4238 = vmatpush1.bf16.msra.mxu0 %v4098
        %4239 = vmatprep.subr.bf16.mxu0 0
        %4240 = vmatpush1.bf16.msra.mxu0 %v4099
        %4241 = vmatprep.subr.bf16.mxu0 0
        %4242 = vmatpush1.bf16.msra.mxu0 %v4100
        %4243 = vmatprep.subr.bf16.mxu0 0
        %4244 = vmatpush1.bf16.msra.mxu0 %v4101
        %4245 = vmatprep.subr.bf16.mxu0 0
        %4246 = vmatpush1.bf16.msra.mxu0 %v4102
        %4247 = vmatprep.mubr.bf16.mxu0 %v3811
        %4248 = vmatmul.mubr.bf16.gmra.mrb[0].mxu0 %v3797
        %v4249 = vpop.f32.mrb[0].mxu0
        %v4250 = vadd.f32 0.0, %v4249
        %v4251 = vpop.f32.mrb[0].mxu0
        %v4252 = vpop.f32.mrb[0].mxu0
        %v4253 = vpop.f32.mrb[0].mxu0
        %4254 = vdwg.mxu0
        %4255 = vmatprep.subr.bf16.mxu0 0
        %4256 = vmatpush1.bf16.msra.mxu0 %v4103
        %4257 = vmatprep.subr.bf16.mxu0 0
        %4258 = vmatpush1.bf16.msra.mxu0 %v4104
        %4259 = vmatprep.subr.bf16.mxu0 0
        %4260 = vmatpush1.bf16.msra.mxu0 %v4105
        %4261 = vmatprep.subr.bf16.mxu0 0
        %4262 = vmatpush1.bf16.msra.mxu0 %v4106
        %4263 = vmatprep.subr.bf16.mxu0 0
        %4264 = vmatpush1.bf16.msra.mxu0 %v4107
        %4265 = vmatprep.subr.bf16.mxu0 0
        %4266 = vmatpush1.bf16.msra.mxu0 %v4108
        %4267 = vmatprep.subr.bf16.mxu0 0
        %4268 = vmatpush1.bf16.msra.mxu0 %v4109
        %4269 = vmatprep.subr.bf16.mxu0 0
        %4270 = vmatpush1.bf16.msra.mxu0 %v4110
        %4271 = vmatprep.subr.bf16.mxu0 0
        %4272 = vmatpush1.bf16.msra.mxu0 %v4111
        %4273 = vmatprep.subr.bf16.mxu0 0
        %4274 = vmatpush1.bf16.msra.mxu0 %v4112
        %4275 = vmatprep.subr.bf16.mxu0 0
        %4276 = vmatpush1.bf16.msra.mxu0 %v4113
        %4277 = vmatprep.subr.bf16.mxu0 0
        %4278 = vmatpush1.bf16.msra.mxu0 %v4114
        %4279 = vmatprep.subr.bf16.mxu0 0
        %4280 = vmatpush1.bf16.msra.mxu0 %v4115
        %4281 = vmatprep.subr.bf16.mxu0 0
        %4282 = vmatpush1.bf16.msra.mxu0 %v4116
        %4283 = vmatprep.subr.bf16.mxu0 0
        %4284 = vmatpush1.bf16.msra.mxu0 %v4117
        %4285 = vmatprep.subr.bf16.mxu0 0
        %4286 = vmatpush1.bf16.msra.mxu0 %v4118
        %4287 = vmatprep.mubr.bf16.mxu0 %v3821
        %4288 = vmatmul.mubr.bf16.gmra.mrb[0].mxu0 %v3819
        %v4289 = vpop.f32.mrb[0].mxu0
        %v4290 = vadd.f32 %v4250, %v4289
        %v4291 = vpop.f32.mrb[0].mxu0
        %v4292 = vpop.f32.mrb[0].mxu0
        %v4293 = vpop.f32.mrb[0].mxu0
        %4294 = vdwg.mxu0
        %4295 = vmatprep.subr.bf16.mxu0 0
        %4296 = vmatpush1.bf16.msra.mxu0 %v4119
        %4297 = vmatprep.subr.bf16.mxu0 0
        %4298 = vmatpush1.bf16.msra.mxu0 %v4120
        %4299 = vmatprep.subr.bf16.mxu0 0
        %4300 = vmatpush1.bf16.msra.mxu0 %v4121
        %4301 = vmatprep.subr.bf16.mxu0 0
        %4302 = vmatpush1.bf16.msra.mxu0 %v4122
        %4303 = vmatprep.subr.bf16.mxu0 0
        %4304 = vmatpush1.bf16.msra.mxu0 %v4123
        %4305 = vmatprep.subr.bf16.mxu0 0
        %4306 = vmatpush1.bf16.msra.mxu0 %v4124
        %4307 = vmatprep.subr.bf16.mxu0 0
        %4308 = vmatpush1.bf16.msra.mxu0 %v4125
        %4309 = vmatprep.subr.bf16.mxu0 0
        %4310 = vmatpush1.bf16.msra.mxu0 %v4126
        %4311 = vmatprep.subr.bf16.mxu0 0
        %4312 = vmatpush1.bf16.msra.mxu0 %v4127
        %4313 = vmatprep.subr.bf16.mxu0 0
        %4314 = vmatpush1.bf16.msra.mxu0 %v4128
        %4315 = vmatprep.subr.bf16.mxu0 0
        %4316 = vmatpush1.bf16.msra.mxu0 %v4129
        %4317 = vmatprep.subr.bf16.mxu0 0
        %4318 = vmatpush1.bf16.msra.mxu0 %v4130
        %4319 = vmatprep.subr.bf16.mxu0 0
        %4320 = vmatpush1.bf16.msra.mxu0 %v4131
        %4321 = vmatprep.subr.bf16.mxu0 0
        %4322 = vmatpush1.bf16.msra.mxu0 %v4132
        %4323 = vmatprep.subr.bf16.mxu0 0
        %4324 = vmatpush1.bf16.msra.mxu0 %v4133
        %4325 = vmatprep.subr.bf16.mxu0 0
        %4326 = vmatpush1.bf16.msra.mxu0 %v4134
        %4327 = vmatprep.mubr.bf16.mxu0 %v3818
        %4328 = vmatmul.mubr.bf16.gmra.mrb[0].mxu0 %v3804
        %v4329 = vpop.f32.mrb[0].mxu0
        %v4330 = vadd.f32 %v4290, %v4329
        %v4331 = vpop.f32.mrb[0].mxu0
        %v4332 = vpop.f32.mrb[0].mxu0
        %v4333 = vpop.f32.mrb[0].mxu0
        %4334 = vdwg.mxu0
        %4335 = vmatprep.subr.bf16.mxu0 0
        %4336 = vmatpush1.bf16.msra.mxu0 %v4135
        %4337 = vmatprep.subr.bf16.mxu0 0
        %4338 = vmatpush1.bf16.msra.mxu0 %v4136
        %4339 = vmatprep.subr.bf16.mxu0 0
        %4340 = vmatpush1.bf16.msra.mxu0 %v4137
        %4341 = vmatprep.subr.bf16.mxu0 0
        %4342 = vmatpush1.bf16.msra.mxu0 %v4138
        %4343 = vmatprep.subr.bf16.mxu0 0
        %4344 = vmatpush1.bf16.msra.mxu0 %v4139
        %4345 = vmatprep.subr.bf16.mxu0 0
        %4346 = vmatpush1.bf16.msra.mxu0 %v4140
        %4347 = vmatprep.subr.bf16.mxu0 0
        %4348 = vmatpush1.bf16.msra.mxu0 %v4141
        %4349 = vmatprep.subr.bf16.mxu0 0
        %4350 = vmatpush1.bf16.msra.mxu0 %v4142
        %4351 = vmatprep.subr.bf16.mxu0 0
        %4352 = vmatpush1.bf16.msra.mxu0 %v4143
        %4353 = vmatprep.subr.bf16.mxu0 0
        %4354 = vmatpush1.bf16.msra.mxu0 %v4144
        %4355 = vmatprep.subr.bf16.mxu0 0
        %4356 = vmatpush1.bf16.msra.mxu0 %v4145
        %4357 = vmatprep.subr.bf16.mxu0 0
        %4358 = vmatpush1.bf16.msra.mxu0 %v4146
        %4359 = vmatprep.subr.bf16.mxu0 0
        %4360 = vmatpush1.bf16.msra.mxu0 %v4147
        %4361 = vmatprep.subr.bf16.mxu0 0
        %4362 = vmatpush1.bf16.msra.mxu0 %v4148
        %4363 = vmatprep.subr.bf16.mxu0 0
        %4364 = vmatpush1.bf16.msra.mxu0 %v4149
        %4365 = vmatprep.subr.bf16.mxu0 0
        %4366 = vmatpush1.bf16.msra.mxu0 %v4150
        %4367 = vmatprep.mubr.bf16.mxu0 %v3822
        %4368 = vmatmul.mubr.bf16.gmra.mrb[0].mxu0 %v3820
        %v4369 = vpop.f32.mrb[0].mxu0
        %v4370 = vadd.f32 %v4330, %v4369
        %v4371 = vpop.f32.mrb[0].mxu0
        %v4372 = vpop.f32.mrb[0].mxu0
        %v4373 = vpop.f32.mrb[0].mxu0
        %4374 = vdwg.mxu0
        %v4376 = vcombine.high %v338, %v338
        %v4378 = vunpack.c.l.s4 1966171168
        %v4379 = vunpack.c.0.s8 %v4378
        %v4380 = vlaneseq
        %v4381 = vshrl.u32 %v4380, 7
        %v4382 = vsub.s32 %v4379, %v4381
        %v4383 = vrot.slane %v338, %v4382
        %v4385 = vunpack.c.l.s4 1966171168
        %v4386 = vunpack.c.0.s8 %v4385
        %v4387 = vlaneseq
        %v4388 = vshrl.u32 %v4387, 7
        %v4389 = vsub.s32 %v4386, %v4388
        %v4390 = vrot.slane %v4376, %v4389
        %v4391 = vcombine.high %v4383, %v4383
        %v4392 = vcombine.high %v4390, %v4390
        %v4394 = vunpack.c.l.s4 1966171168
        %v4395 = vunpack.c.0.s8 %v4394
        %v4396 = vlaneseq
        %v4397 = vshrl.u32 %v4396, 7
        %v4398 = vsub.s32 %v4395, %v4397
        %v4399 = vrot.slane %v4383, %v4398
        %v4401 = vunpack.c.l.s4 1966171168
        %v4402 = vunpack.c.0.s8 %v4401
        %v4403 = vlaneseq
        %v4404 = vshrl.u32 %v4403, 7
        %v4405 = vsub.s32 %v4402, %v4404
        %v4406 = vrot.slane %v4390, %v4405
        %v4408 = vunpack.c.l.s4 1966171168
        %v4409 = vunpack.c.0.s8 %v4408
        %v4410 = vlaneseq
        %v4411 = vshrl.u32 %v4410, 7
        %v4412 = vsub.s32 %v4409, %v4411
        %v4413 = vrot.slane %v4391, %v4412
        %v4415 = vunpack.c.l.s4 1966171168
        %v4416 = vunpack.c.0.s8 %v4415
        %v4417 = vlaneseq
        %v4418 = vshrl.u32 %v4417, 7
        %v4419 = vsub.s32 %v4416, %v4418
        %v4420 = vrot.slane %v4392, %v4419
        %v4421 = vcombine.high %v4399, %v4399
        %v4422 = vcombine.high %v4406, %v4406
        %v4423 = vcombine.high %v4413, %v4413
        %v4424 = vcombine.high %v4420, %v4420
        %v4561 = vunpack.c.l.b16 %v981
        %v4562 = vunpack.c.l.b16 %v982
        %v4563 = vunpack.c.l.b16 %v983
        %v4564 = vunpack.c.l.b16 %v984
        %v4565 = vunpack.c.l.b16 %v985
        %v4566 = vunpack.c.l.b16 %v986
        %v4567 = vunpack.c.l.b16 %v987
        %v4568 = vunpack.c.l.b16 %v988
        %v4569 = vunpack.c.l.b16 %v989
        %v4570 = vunpack.c.l.b16 %v990
        %v4571 = vunpack.c.l.b16 %v991
        %v4572 = vunpack.c.l.b16 %v992
        %v4573 = vunpack.c.l.b16 %v993
        %v4574 = vunpack.c.l.b16 %v994
        %v4575 = vunpack.c.l.b16 %v995
        %v4576 = vunpack.c.l.b16 %v996
        %v4577 = vunpack.c.l.b16 %v997
        %v4578 = vunpack.c.l.b16 %v998
        %v4579 = vunpack.c.l.b16 %v999
        %v4580 = vunpack.c.l.b16 %v1000
        %v4581 = vunpack.c.l.b16 %v1001
        %v4582 = vunpack.c.l.b16 %v1002
        %v4583 = vunpack.c.l.b16 %v1003
        %v4584 = vunpack.c.l.b16 %v1004
        %v4585 = vunpack.c.l.b16 %v1005
        %v4586 = vunpack.c.l.b16 %v1006
        %v4587 = vunpack.c.l.b16 %v1007
        %v4588 = vunpack.c.l.b16 %v1008
        %v4589 = vunpack.c.l.b16 %v1009
        %v4590 = vunpack.c.l.b16 %v1010
        %v4591 = vunpack.c.l.b16 %v1011
        %v4592 = vunpack.c.l.b16 %v1012
        %v4593 = vunpack.c.l.b16 %v1013
        %v4594 = vunpack.c.l.b16 %v1014
        %v4595 = vunpack.c.l.b16 %v1015
        %v4596 = vunpack.c.l.b16 %v1016
        %v4597 = vunpack.c.l.b16 %v1017
        %v4598 = vunpack.c.l.b16 %v1018
        %v4599 = vunpack.c.l.b16 %v1019
        %v4600 = vunpack.c.l.b16 %v1020
        %v4601 = vunpack.c.l.b16 %v1021
        %v4602 = vunpack.c.l.b16 %v1022
        %v4603 = vunpack.c.l.b16 %v1023
        %v4604 = vunpack.c.l.b16 %v1024
        %v4605 = vunpack.c.l.b16 %v1025
        %v4606 = vunpack.c.l.b16 %v1026
        %v4607 = vunpack.c.l.b16 %v1027
        %v4608 = vunpack.c.l.b16 %v1028
        %v4609 = vunpack.c.l.b16 %v1029
        %v4610 = vunpack.c.l.b16 %v1030
        %v4611 = vunpack.c.l.b16 %v1031
        %v4612 = vunpack.c.l.b16 %v1032
        %v4613 = vunpack.c.l.b16 %v1033
        %v4614 = vunpack.c.l.b16 %v1034
        %v4615 = vunpack.c.l.b16 %v1035
        %v4616 = vunpack.c.l.b16 %v1036
        %v4617 = vunpack.c.l.b16 %v1037
        %v4618 = vunpack.c.l.b16 %v1038
        %v4619 = vunpack.c.l.b16 %v1039
        %v4620 = vunpack.c.l.b16 %v1040
        %v4621 = vunpack.c.l.b16 %v1041
        %v4622 = vunpack.c.l.b16 %v1042
        %v4623 = vunpack.c.l.b16 %v1043
        %v4624 = vunpack.c.l.b16 %v1044
        %v4625 = vunpack.c.l.b16 %v1045
        %v4626 = vunpack.c.l.b16 %v1046
        %v4627 = vunpack.c.l.b16 %v1047
        %v4628 = vunpack.c.l.b16 %v1048
        %v4629 = vunpack.c.l.b16 %v1049
        %v4630 = vunpack.c.l.b16 %v1050
        %v4631 = vunpack.c.l.b16 %v1051
        %v4632 = vunpack.c.l.b16 %v1052
        %v4633 = vunpack.c.l.b16 %v1053
        %v4634 = vunpack.c.l.b16 %v1054
        %v4635 = vunpack.c.l.b16 %v1055
        %v4636 = vunpack.c.l.b16 %v1056
        %v4637 = vunpack.c.l.b16 %v1057
        %v4638 = vunpack.c.l.b16 %v1058
        %v4639 = vunpack.c.l.b16 %v1059
        %v4640 = vunpack.c.l.b16 %v1060
        %v4641 = vunpack.c.l.b16 %v1061
        %v4642 = vunpack.c.l.b16 %v1062
        %v4643 = vunpack.c.l.b16 %v1063
        %v4644 = vunpack.c.l.b16 %v1064
        %v4645 = vunpack.c.l.b16 %v1065
        %v4646 = vunpack.c.l.b16 %v1066
        %v4647 = vunpack.c.l.b16 %v1067
        %v4648 = vunpack.c.l.b16 %v1068
        %v4649 = vunpack.c.l.b16 %v1069
        %v4650 = vunpack.c.l.b16 %v1070
        %v4651 = vunpack.c.l.b16 %v1071
        %v4652 = vunpack.c.l.b16 %v1072
        %v4653 = vunpack.c.l.b16 %v1073
        %v4654 = vunpack.c.l.b16 %v1074
        %v4655 = vunpack.c.l.b16 %v1075
        %v4656 = vunpack.c.l.b16 %v1076
        %v4657 = vunpack.c.l.b16 %v1077
        %v4658 = vunpack.c.l.b16 %v1078
        %v4659 = vunpack.c.l.b16 %v1079
        %v4660 = vunpack.c.l.b16 %v1080
        %v4661 = vunpack.c.l.b16 %v1081
        %v4662 = vunpack.c.l.b16 %v1082
        %v4663 = vunpack.c.l.b16 %v1083
        %v4664 = vunpack.c.l.b16 %v1084
        %v4665 = vunpack.c.l.b16 %v1085
        %v4666 = vunpack.c.l.b16 %v1086
        %v4667 = vunpack.c.l.b16 %v1087
        %v4668 = vunpack.c.l.b16 %v1088
        %v4669 = vunpack.c.l.b16 %v1089
        %v4670 = vunpack.c.l.b16 %v1090
        %v4671 = vunpack.c.l.b16 %v1091
        %v4672 = vunpack.c.l.b16 %v1092
        %v4673 = vunpack.c.l.b16 %v1093
        %v4674 = vunpack.c.l.b16 %v1094
        %v4675 = vunpack.c.l.b16 %v1095
        %v4676 = vunpack.c.l.b16 %v1096
        %v4677 = vunpack.c.l.b16 %v1097
        %v4678 = vunpack.c.l.b16 %v1098
        %v4679 = vunpack.c.l.b16 %v1099
        %v4680 = vunpack.c.l.b16 %v1100
        %v4681 = vunpack.c.l.b16 %v1101
        %v4682 = vunpack.c.l.b16 %v1102
        %v4683 = vunpack.c.l.b16 %v1103
        %v4684 = vunpack.c.l.b16 %v1104
        %v4685 = vunpack.c.l.b16 %v1105
        %v4686 = vunpack.c.l.b16 %v1106
        %v4687 = vunpack.c.l.b16 %v1107
        %v4688 = vunpack.c.l.b16 %v1108
        %v4689 = vpack.c.b16 %v4562, %v4561
        %v4690 = vpack.c.b16 %v4564, %v4563
        %v4691 = vpack.c.b16 %v4566, %v4565
        %v4692 = vpack.c.b16 %v4568, %v4567
        %v4693 = vpack.c.b16 %v4570, %v4569
        %v4694 = vpack.c.b16 %v4572, %v4571
        %v4695 = vpack.c.b16 %v4574, %v4573
        %v4696 = vpack.c.b16 %v4576, %v4575
        %v4697 = vpack.c.b16 %v4578, %v4577
        %v4698 = vpack.c.b16 %v4580, %v4579
        %v4699 = vpack.c.b16 %v4582, %v4581
        %v4700 = vpack.c.b16 %v4584, %v4583
        %v4701 = vpack.c.b16 %v4586, %v4585
        %v4702 = vpack.c.b16 %v4588, %v4587
        %v4703 = vpack.c.b16 %v4590, %v4589
        %v4704 = vpack.c.b16 %v4592, %v4591
        %v4705 = vpack.c.b16 %v4594, %v4593
        %v4706 = vpack.c.b16 %v4596, %v4595
        %v4707 = vpack.c.b16 %v4598, %v4597
        %v4708 = vpack.c.b16 %v4600, %v4599
        %v4709 = vpack.c.b16 %v4602, %v4601
        %v4710 = vpack.c.b16 %v4604, %v4603
        %v4711 = vpack.c.b16 %v4606, %v4605
        %v4712 = vpack.c.b16 %v4608, %v4607
        %v4713 = vpack.c.b16 %v4610, %v4609
        %v4714 = vpack.c.b16 %v4612, %v4611
        %v4715 = vpack.c.b16 %v4614, %v4613
        %v4716 = vpack.c.b16 %v4616, %v4615
        %v4717 = vpack.c.b16 %v4618, %v4617
        %v4718 = vpack.c.b16 %v4620, %v4619
        %v4719 = vpack.c.b16 %v4622, %v4621
        %v4720 = vpack.c.b16 %v4624, %v4623
        %v4721 = vpack.c.b16 %v4626, %v4625
        %v4722 = vpack.c.b16 %v4628, %v4627
        %v4723 = vpack.c.b16 %v4630, %v4629
        %v4724 = vpack.c.b16 %v4632, %v4631
        %v4725 = vpack.c.b16 %v4634, %v4633
        %v4726 = vpack.c.b16 %v4636, %v4635
        %v4727 = vpack.c.b16 %v4638, %v4637
        %v4728 = vpack.c.b16 %v4640, %v4639
        %v4729 = vpack.c.b16 %v4642, %v4641
        %v4730 = vpack.c.b16 %v4644, %v4643
        %v4731 = vpack.c.b16 %v4646, %v4645
        %v4732 = vpack.c.b16 %v4648, %v4647
        %v4733 = vpack.c.b16 %v4650, %v4649
        %v4734 = vpack.c.b16 %v4652, %v4651
        %v4735 = vpack.c.b16 %v4654, %v4653
        %v4736 = vpack.c.b16 %v4656, %v4655
        %v4737 = vpack.c.b16 %v4658, %v4657
        %v4738 = vpack.c.b16 %v4660, %v4659
        %v4739 = vpack.c.b16 %v4662, %v4661
        %v4740 = vpack.c.b16 %v4664, %v4663
        %v4741 = vpack.c.b16 %v4666, %v4665
        %v4742 = vpack.c.b16 %v4668, %v4667
        %v4743 = vpack.c.b16 %v4670, %v4669
        %v4744 = vpack.c.b16 %v4672, %v4671
        %v4745 = vpack.c.b16 %v4674, %v4673
        %v4746 = vpack.c.b16 %v4676, %v4675
        %v4747 = vpack.c.b16 %v4678, %v4677
        %v4748 = vpack.c.b16 %v4680, %v4679
        %v4749 = vpack.c.b16 %v4682, %v4681
        %v4750 = vpack.c.b16 %v4684, %v4683
        %v4751 = vpack.c.b16 %v4686, %v4685
        %v4752 = vpack.c.b16 %v4688, %v4687
        %4817 = vmatprep.subr.bf16.mxu0 0
        %4818 = vmatpush1.bf16.msra.mxu0 %v4689
        %4819 = vmatprep.subr.bf16.mxu0 0
        %4820 = vmatpush1.bf16.msra.mxu0 %v4690
        %4821 = vmatprep.subr.bf16.mxu0 0
        %4822 = vmatpush1.bf16.msra.mxu0 %v4691
        %4823 = vmatprep.subr.bf16.mxu0 0
        %4824 = vmatpush1.bf16.msra.mxu0 %v4692
        %4825 = vmatprep.subr.bf16.mxu0 0
        %4826 = vmatpush1.bf16.msra.mxu0 %v4693
        %4827 = vmatprep.subr.bf16.mxu0 0
        %4828 = vmatpush1.bf16.msra.mxu0 %v4694
        %4829 = vmatprep.subr.bf16.mxu0 0
        %4830 = vmatpush1.bf16.msra.mxu0 %v4695
        %4831 = vmatprep.subr.bf16.mxu0 0
        %4832 = vmatpush1.bf16.msra.mxu0 %v4696
        %4833 = vmatprep.subr.bf16.mxu0 0
        %4834 = vmatpush1.bf16.msra.mxu0 %v4697
        %4835 = vmatprep.subr.bf16.mxu0 0
        %4836 = vmatpush1.bf16.msra.mxu0 %v4698
        %4837 = vmatprep.subr.bf16.mxu0 0
        %4838 = vmatpush1.bf16.msra.mxu0 %v4699
        %4839 = vmatprep.subr.bf16.mxu0 0
        %4840 = vmatpush1.bf16.msra.mxu0 %v4700
        %4841 = vmatprep.subr.bf16.mxu0 0
        %4842 = vmatpush1.bf16.msra.mxu0 %v4701
        %4843 = vmatprep.subr.bf16.mxu0 0
        %4844 = vmatpush1.bf16.msra.mxu0 %v4702
        %4845 = vmatprep.subr.bf16.mxu0 0
        %4846 = vmatpush1.bf16.msra.mxu0 %v4703
        %4847 = vmatprep.subr.bf16.mxu0 0
        %4848 = vmatpush1.bf16.msra.mxu0 %v4704
        %4849 = vmatprep.mubr.bf16.mxu0 %v4413
        %4850 = vmatmul.mubr.bf16.gmra.mrb[0].mxu0 %v4399
        %v4851 = vpop.f32.mrb[0].mxu0
        %v4852 = vadd.f32 0.0, %v4851
        %v4853 = vpop.f32.mrb[0].mxu0
        %v4854 = vpop.f32.mrb[0].mxu0
        %v4855 = vpop.f32.mrb[0].mxu0
        %4856 = vdwg.mxu0
        %4857 = vmatprep.subr.bf16.mxu0 0
        %4858 = vmatpush1.bf16.msra.mxu0 %v4705
        %4859 = vmatprep.subr.bf16.mxu0 0
        %4860 = vmatpush1.bf16.msra.mxu0 %v4706
        %4861 = vmatprep.subr.bf16.mxu0 0
        %4862 = vmatpush1.bf16.msra.mxu0 %v4707
        %4863 = vmatprep.subr.bf16.mxu0 0
        %4864 = vmatpush1.bf16.msra.mxu0 %v4708
        %4865 = vmatprep.subr.bf16.mxu0 0
        %4866 = vmatpush1.bf16.msra.mxu0 %v4709
        %4867 = vmatprep.subr.bf16.mxu0 0
        %4868 = vmatpush1.bf16.msra.mxu0 %v4710
        %4869 = vmatprep.subr.bf16.mxu0 0
        %4870 = vmatpush1.bf16.msra.mxu0 %v4711
        %4871 = vmatprep.subr.bf16.mxu0 0
        %4872 = vmatpush1.bf16.msra.mxu0 %v4712
        %4873 = vmatprep.subr.bf16.mxu0 0
        %4874 = vmatpush1.bf16.msra.mxu0 %v4713
        %4875 = vmatprep.subr.bf16.mxu0 0
        %4876 = vmatpush1.bf16.msra.mxu0 %v4714
        %4877 = vmatprep.subr.bf16.mxu0 0
        %4878 = vmatpush1.bf16.msra.mxu0 %v4715
        %4879 = vmatprep.subr.bf16.mxu0 0
        %4880 = vmatpush1.bf16.msra.mxu0 %v4716
        %4881 = vmatprep.subr.bf16.mxu0 0
        %4882 = vmatpush1.bf16.msra.mxu0 %v4717
        %4883 = vmatprep.subr.bf16.mxu0 0
        %4884 = vmatpush1.bf16.msra.mxu0 %v4718
        %4885 = vmatprep.subr.bf16.mxu0 0
        %4886 = vmatpush1.bf16.msra.mxu0 %v4719
        %4887 = vmatprep.subr.bf16.mxu0 0
        %4888 = vmatpush1.bf16.msra.mxu0 %v4720
        %4889 = vmatprep.mubr.bf16.mxu0 %v4423
        %4890 = vmatmul.mubr.bf16.gmra.mrb[0].mxu0 %v4421
        %v4891 = vpop.f32.mrb[0].mxu0
        %v4892 = vadd.f32 %v4852, %v4891
        %v4893 = vpop.f32.mrb[0].mxu0
        %v4894 = vpop.f32.mrb[0].mxu0
        %v4895 = vpop.f32.mrb[0].mxu0
        %4896 = vdwg.mxu0
        %4897 = vmatprep.subr.bf16.mxu0 0
        %4898 = vmatpush1.bf16.msra.mxu0 %v4721
        %4899 = vmatprep.subr.bf16.mxu0 0
        %4900 = vmatpush1.bf16.msra.mxu0 %v4722
        %4901 = vmatprep.subr.bf16.mxu0 0
        %4902 = vmatpush1.bf16.msra.mxu0 %v4723
        %4903 = vmatprep.subr.bf16.mxu0 0
        %4904 = vmatpush1.bf16.msra.mxu0 %v4724
        %4905 = vmatprep.subr.bf16.mxu0 0
        %4906 = vmatpush1.bf16.msra.mxu0 %v4725
        %4907 = vmatprep.subr.bf16.mxu0 0
        %4908 = vmatpush1.bf16.msra.mxu0 %v4726
        %4909 = vmatprep.subr.bf16.mxu0 0
        %4910 = vmatpush1.bf16.msra.mxu0 %v4727
        %4911 = vmatprep.subr.bf16.mxu0 0
        %4912 = vmatpush1.bf16.msra.mxu0 %v4728
        %4913 = vmatprep.subr.bf16.mxu0 0
        %4914 = vmatpush1.bf16.msra.mxu0 %v4729
        %4915 = vmatprep.subr.bf16.mxu0 0
        %4916 = vmatpush1.bf16.msra.mxu0 %v4730
        %4917 = vmatprep.subr.bf16.mxu0 0
        %4918 = vmatpush1.bf16.msra.mxu0 %v4731
        %4919 = vmatprep.subr.bf16.mxu0 0
        %4920 = vmatpush1.bf16.msra.mxu0 %v4732
        %4921 = vmatprep.subr.bf16.mxu0 0
        %4922 = vmatpush1.bf16.msra.mxu0 %v4733
        %4923 = vmatprep.subr.bf16.mxu0 0
        %4924 = vmatpush1.bf16.msra.mxu0 %v4734
        %4925 = vmatprep.subr.bf16.mxu0 0
        %4926 = vmatpush1.bf16.msra.mxu0 %v4735
        %4927 = vmatprep.subr.bf16.mxu0 0
        %4928 = vmatpush1.bf16.msra.mxu0 %v4736
        %4929 = vmatprep.mubr.bf16.mxu0 %v4420
        %4930 = vmatmul.mubr.bf16.gmra.mrb[0].mxu0 %v4406
        %v4931 = vpop.f32.mrb[0].mxu0
        %v4932 = vadd.f32 %v4892, %v4931
        %v4933 = vpop.f32.mrb[0].mxu0
        %v4934 = vpop.f32.mrb[0].mxu0
        %v4935 = vpop.f32.mrb[0].mxu0
        %4936 = vdwg.mxu0
        %4937 = vmatprep.subr.bf16.mxu0 0
        %4938 = vmatpush1.bf16.msra.mxu0 %v4737
        %4939 = vmatprep.subr.bf16.mxu0 0
        %4940 = vmatpush1.bf16.msra.mxu0 %v4738
        %4941 = vmatprep.subr.bf16.mxu0 0
        %4942 = vmatpush1.bf16.msra.mxu0 %v4739
        %4943 = vmatprep.subr.bf16.mxu0 0
        %4944 = vmatpush1.bf16.msra.mxu0 %v4740
        %4945 = vmatprep.subr.bf16.mxu0 0
        %4946 = vmatpush1.bf16.msra.mxu0 %v4741
        %4947 = vmatprep.subr.bf16.mxu0 0
        %4948 = vmatpush1.bf16.msra.mxu0 %v4742
        %4949 = vmatprep.subr.bf16.mxu0 0
        %4950 = vmatpush1.bf16.msra.mxu0 %v4743
        %4951 = vmatprep.subr.bf16.mxu0 0
        %4952 = vmatpush1.bf16.msra.mxu0 %v4744
        %4953 = vmatprep.subr.bf16.mxu0 0
        %4954 = vmatpush1.bf16.msra.mxu0 %v4745
        %4955 = vmatprep.subr.bf16.mxu0 0
        %4956 = vmatpush1.bf16.msra.mxu0 %v4746
        %4957 = vmatprep.subr.bf16.mxu0 0
        %4958 = vmatpush1.bf16.msra.mxu0 %v4747
        %4959 = vmatprep.subr.bf16.mxu0 0
        %4960 = vmatpush1.bf16.msra.mxu0 %v4748
        %4961 = vmatprep.subr.bf16.mxu0 0
        %4962 = vmatpush1.bf16.msra.mxu0 %v4749
        %4963 = vmatprep.subr.bf16.mxu0 0
        %4964 = vmatpush1.bf16.msra.mxu0 %v4750
        %4965 = vmatprep.subr.bf16.mxu0 0
        %4966 = vmatpush1.bf16.msra.mxu0 %v4751
        %4967 = vmatprep.subr.bf16.mxu0 0
        %4968 = vmatpush1.bf16.msra.mxu0 %v4752
        %4969 = vmatprep.mubr.bf16.mxu0 %v4424
        %4970 = vmatmul.mubr.bf16.gmra.mrb[0].mxu0 %v4422
        %v4971 = vpop.f32.mrb[0].mxu0
        %v4972 = vadd.f32 %v4932, %v4971
        %v4973 = vpop.f32.mrb[0].mxu0
        %v4974 = vpop.f32.mrb[0].mxu0
        %v4975 = vpop.f32.mrb[0].mxu0
        %4976 = vdwg.mxu0
        %v4978 = vcombine.high %v339, %v339
        %v4980 = vunpack.c.l.s4 1966171168
        %v4981 = vunpack.c.0.s8 %v4980
        %v4982 = vlaneseq
        %v4983 = vshrl.u32 %v4982, 7
        %v4984 = vsub.s32 %v4981, %v4983
        %v4985 = vrot.slane %v339, %v4984
        %v4987 = vunpack.c.l.s4 1966171168
        %v4988 = vunpack.c.0.s8 %v4987
        %v4989 = vlaneseq
        %v4990 = vshrl.u32 %v4989, 7
        %v4991 = vsub.s32 %v4988, %v4990
        %v4992 = vrot.slane %v4978, %v4991
        %v4993 = vcombine.high %v4985, %v4985
        %v4994 = vcombine.high %v4992, %v4992
        %v4996 = vunpack.c.l.s4 1966171168
        %v4997 = vunpack.c.0.s8 %v4996
        %v4998 = vlaneseq
        %v4999 = vshrl.u32 %v4998, 7
        %v5000 = vsub.s32 %v4997, %v4999
        %v5001 = vrot.slane %v4985, %v5000
        %v5003 = vunpack.c.l.s4 1966171168
        %v5004 = vunpack.c.0.s8 %v5003
        %v5005 = vlaneseq
        %v5006 = vshrl.u32 %v5005, 7
        %v5007 = vsub.s32 %v5004, %v5006
        %v5008 = vrot.slane %v4992, %v5007
        %v5010 = vunpack.c.l.s4 1966171168
        %v5011 = vunpack.c.0.s8 %v5010
        %v5012 = vlaneseq
        %v5013 = vshrl.u32 %v5012, 7
        %v5014 = vsub.s32 %v5011, %v5013
        %v5015 = vrot.slane %v4993, %v5014
        %v5017 = vunpack.c.l.s4 1966171168
        %v5018 = vunpack.c.0.s8 %v5017
        %v5019 = vlaneseq
        %v5020 = vshrl.u32 %v5019, 7
        %v5021 = vsub.s32 %v5018, %v5020
        %v5022 = vrot.slane %v4994, %v5021
        %v5023 = vcombine.high %v5001, %v5001
        %v5024 = vcombine.high %v5008, %v5008
        %v5025 = vcombine.high %v5015, %v5015
        %v5026 = vcombine.high %v5022, %v5022
        %v5163 = vunpack.c.l.b16 %v1109
        %v5164 = vunpack.c.l.b16 %v1110
        %v5165 = vunpack.c.l.b16 %v1111
        %v5166 = vunpack.c.l.b16 %v1112
        %v5167 = vunpack.c.l.b16 %v1113
        %v5168 = vunpack.c.l.b16 %v1114
        %v5169 = vunpack.c.l.b16 %v1115
        %v5170 = vunpack.c.l.b16 %v1116
        %v5171 = vunpack.c.l.b16 %v1117
        %v5172 = vunpack.c.l.b16 %v1118
        %v5173 = vunpack.c.l.b16 %v1119
        %v5174 = vunpack.c.l.b16 %v1120
        %v5175 = vunpack.c.l.b16 %v1121
        %v5176 = vunpack.c.l.b16 %v1122
        %v5177 = vunpack.c.l.b16 %v1123
        %v5178 = vunpack.c.l.b16 %v1124
        %v5179 = vunpack.c.l.b16 %v1125
        %v5180 = vunpack.c.l.b16 %v1126
        %v5181 = vunpack.c.l.b16 %v1127
        %v5182 = vunpack.c.l.b16 %v1128
        %v5183 = vunpack.c.l.b16 %v1129
        %v5184 = vunpack.c.l.b16 %v1130
        %v5185 = vunpack.c.l.b16 %v1131
        %v5186 = vunpack.c.l.b16 %v1132
        %v5187 = vunpack.c.l.b16 %v1133
        %v5188 = vunpack.c.l.b16 %v1134
        %v5189 = vunpack.c.l.b16 %v1135
        %v5190 = vunpack.c.l.b16 %v1136
        %v5191 = vunpack.c.l.b16 %v1137
        %v5192 = vunpack.c.l.b16 %v1138
        %v5193 = vunpack.c.l.b16 %v1139
        %v5194 = vunpack.c.l.b16 %v1140
        %v5195 = vunpack.c.l.b16 %v1141
        %v5196 = vunpack.c.l.b16 %v1142
        %v5197 = vunpack.c.l.b16 %v1143
        %v5198 = vunpack.c.l.b16 %v1144
        %v5199 = vunpack.c.l.b16 %v1145
        %v5200 = vunpack.c.l.b16 %v1146
        %v5201 = vunpack.c.l.b16 %v1147
        %v5202 = vunpack.c.l.b16 %v1148
        %v5203 = vunpack.c.l.b16 %v1149
        %v5204 = vunpack.c.l.b16 %v1150
        %v5205 = vunpack.c.l.b16 %v1151
        %v5206 = vunpack.c.l.b16 %v1152
        %v5207 = vunpack.c.l.b16 %v1153
        %v5208 = vunpack.c.l.b16 %v1154
        %v5209 = vunpack.c.l.b16 %v1155
        %v5210 = vunpack.c.l.b16 %v1156
        %v5211 = vunpack.c.l.b16 %v1157
        %v5212 = vunpack.c.l.b16 %v1158
        %v5213 = vunpack.c.l.b16 %v1159
        %v5214 = vunpack.c.l.b16 %v1160
        %v5215 = vunpack.c.l.b16 %v1161
        %v5216 = vunpack.c.l.b16 %v1162
        %v5217 = vunpack.c.l.b16 %v1163
        %v5218 = vunpack.c.l.b16 %v1164
        %v5219 = vunpack.c.l.b16 %v1165
        %v5220 = vunpack.c.l.b16 %v1166
        %v5221 = vunpack.c.l.b16 %v1167
        %v5222 = vunpack.c.l.b16 %v1168
        %v5223 = vunpack.c.l.b16 %v1169
        %v5224 = vunpack.c.l.b16 %v1170
        %v5225 = vunpack.c.l.b16 %v1171
        %v5226 = vunpack.c.l.b16 %v1172
        %v5227 = vunpack.c.l.b16 %v1173
        %v5228 = vunpack.c.l.b16 %v1174
        %v5229 = vunpack.c.l.b16 %v1175
        %v5230 = vunpack.c.l.b16 %v1176
        %v5231 = vunpack.c.l.b16 %v1177
        %v5232 = vunpack.c.l.b16 %v1178
        %v5233 = vunpack.c.l.b16 %v1179
        %v5234 = vunpack.c.l.b16 %v1180
        %v5235 = vunpack.c.l.b16 %v1181
        %v5236 = vunpack.c.l.b16 %v1182
        %v5237 = vunpack.c.l.b16 %v1183
        %v5238 = vunpack.c.l.b16 %v1184
        %v5239 = vunpack.c.l.b16 %v1185
        %v5240 = vunpack.c.l.b16 %v1186
        %v5241 = vunpack.c.l.b16 %v1187
        %v5242 = vunpack.c.l.b16 %v1188
        %v5243 = vunpack.c.l.b16 %v1189
        %v5244 = vunpack.c.l.b16 %v1190
        %v5245 = vunpack.c.l.b16 %v1191
        %v5246 = vunpack.c.l.b16 %v1192
        %v5247 = vunpack.c.l.b16 %v1193
        %v5248 = vunpack.c.l.b16 %v1194
        %v5249 = vunpack.c.l.b16 %v1195
        %v5250 = vunpack.c.l.b16 %v1196
        %v5251 = vunpack.c.l.b16 %v1197
        %v5252 = vunpack.c.l.b16 %v1198
        %v5253 = vunpack.c.l.b16 %v1199
        %v5254 = vunpack.c.l.b16 %v1200
        %v5255 = vunpack.c.l.b16 %v1201
        %v5256 = vunpack.c.l.b16 %v1202
        %v5257 = vunpack.c.l.b16 %v1203
        %v5258 = vunpack.c.l.b16 %v1204
        %v5259 = vunpack.c.l.b16 %v1205
        %v5260 = vunpack.c.l.b16 %v1206
        %v5261 = vunpack.c.l.b16 %v1207
        %v5262 = vunpack.c.l.b16 %v1208
        %v5263 = vunpack.c.l.b16 %v1209
        %v5264 = vunpack.c.l.b16 %v1210
        %v5265 = vunpack.c.l.b16 %v1211
        %v5266 = vunpack.c.l.b16 %v1212
        %v5267 = vunpack.c.l.b16 %v1213
        %v5268 = vunpack.c.l.b16 %v1214
        %v5269 = vunpack.c.l.b16 %v1215
        %v5270 = vunpack.c.l.b16 %v1216
        %v5271 = vunpack.c.l.b16 %v1217
        %v5272 = vunpack.c.l.b16 %v1218
        %v5273 = vunpack.c.l.b16 %v1219
        %v5274 = vunpack.c.l.b16 %v1220
        %v5275 = vunpack.c.l.b16 %v1221
        %v5276 = vunpack.c.l.b16 %v1222
        %v5277 = vunpack.c.l.b16 %v1223
        %v5278 = vunpack.c.l.b16 %v1224
        %v5279 = vunpack.c.l.b16 %v1225
        %v5280 = vunpack.c.l.b16 %v1226
        %v5281 = vunpack.c.l.b16 %v1227
        %v5282 = vunpack.c.l.b16 %v1228
        %v5283 = vunpack.c.l.b16 %v1229
        %v5284 = vunpack.c.l.b16 %v1230
        %v5285 = vunpack.c.l.b16 %v1231
        %v5286 = vunpack.c.l.b16 %v1232
        %v5287 = vunpack.c.l.b16 %v1233
        %v5288 = vunpack.c.l.b16 %v1234
        %v5289 = vunpack.c.l.b16 %v1235
        %v5290 = vunpack.c.l.b16 %v1236
        %v5291 = vpack.c.b16 %v5164, %v5163
        %v5292 = vpack.c.b16 %v5166, %v5165
        %v5293 = vpack.c.b16 %v5168, %v5167
        %v5294 = vpack.c.b16 %v5170, %v5169
        %v5295 = vpack.c.b16 %v5172, %v5171
        %v5296 = vpack.c.b16 %v5174, %v5173
        %v5297 = vpack.c.b16 %v5176, %v5175
        %v5298 = vpack.c.b16 %v5178, %v5177
        %v5299 = vpack.c.b16 %v5180, %v5179
        %v5300 = vpack.c.b16 %v5182, %v5181
        %v5301 = vpack.c.b16 %v5184, %v5183
        %v5302 = vpack.c.b16 %v5186, %v5185
        %v5303 = vpack.c.b16 %v5188, %v5187
        %v5304 = vpack.c.b16 %v5190, %v5189
        %v5305 = vpack.c.b16 %v5192, %v5191
        %v5306 = vpack.c.b16 %v5194, %v5193
        %v5307 = vpack.c.b16 %v5196, %v5195
        %v5308 = vpack.c.b16 %v5198, %v5197
        %v5309 = vpack.c.b16 %v5200, %v5199
        %v5310 = vpack.c.b16 %v5202, %v5201
        %v5311 = vpack.c.b16 %v5204, %v5203
        %v5312 = vpack.c.b16 %v5206, %v5205
        %v5313 = vpack.c.b16 %v5208, %v5207
        %v5314 = vpack.c.b16 %v5210, %v5209
        %v5315 = vpack.c.b16 %v5212, %v5211
        %v5316 = vpack.c.b16 %v5214, %v5213
        %v5317 = vpack.c.b16 %v5216, %v5215
        %v5318 = vpack.c.b16 %v5218, %v5217
        %v5319 = vpack.c.b16 %v5220, %v5219
        %v5320 = vpack.c.b16 %v5222, %v5221
        %v5321 = vpack.c.b16 %v5224, %v5223
        %v5322 = vpack.c.b16 %v5226, %v5225
        %v5323 = vpack.c.b16 %v5228, %v5227
        %v5324 = vpack.c.b16 %v5230, %v5229
        %v5325 = vpack.c.b16 %v5232, %v5231
        %v5326 = vpack.c.b16 %v5234, %v5233
        %v5327 = vpack.c.b16 %v5236, %v5235
        %v5328 = vpack.c.b16 %v5238, %v5237
        %v5329 = vpack.c.b16 %v5240, %v5239
        %v5330 = vpack.c.b16 %v5242, %v5241
        %v5331 = vpack.c.b16 %v5244, %v5243
        %v5332 = vpack.c.b16 %v5246, %v5245
        %v5333 = vpack.c.b16 %v5248, %v5247
        %v5334 = vpack.c.b16 %v5250, %v5249
        %v5335 = vpack.c.b16 %v5252, %v5251
        %v5336 = vpack.c.b16 %v5254, %v5253
        %v5337 = vpack.c.b16 %v5256, %v5255
        %v5338 = vpack.c.b16 %v5258, %v5257
        %v5339 = vpack.c.b16 %v5260, %v5259
        %v5340 = vpack.c.b16 %v5262, %v5261
        %v5341 = vpack.c.b16 %v5264, %v5263
        %v5342 = vpack.c.b16 %v5266, %v5265
        %v5343 = vpack.c.b16 %v5268, %v5267
        %v5344 = vpack.c.b16 %v5270, %v5269
        %v5345 = vpack.c.b16 %v5272, %v5271
        %v5346 = vpack.c.b16 %v5274, %v5273
        %v5347 = vpack.c.b16 %v5276, %v5275
        %v5348 = vpack.c.b16 %v5278, %v5277
        %v5349 = vpack.c.b16 %v5280, %v5279
        %v5350 = vpack.c.b16 %v5282, %v5281
        %v5351 = vpack.c.b16 %v5284, %v5283
        %v5352 = vpack.c.b16 %v5286, %v5285
        %v5353 = vpack.c.b16 %v5288, %v5287
        %v5354 = vpack.c.b16 %v5290, %v5289
        %5419 = vmatprep.subr.bf16.mxu0 0
        %5420 = vmatpush1.bf16.msra.mxu0 %v5291
        %5421 = vmatprep.subr.bf16.mxu0 0
        %5422 = vmatpush1.bf16.msra.mxu0 %v5292
        %5423 = vmatprep.subr.bf16.mxu0 0
        %5424 = vmatpush1.bf16.msra.mxu0 %v5293
        %5425 = vmatprep.subr.bf16.mxu0 0
        %5426 = vmatpush1.bf16.msra.mxu0 %v5294
        %5427 = vmatprep.subr.bf16.mxu0 0
        %5428 = vmatpush1.bf16.msra.mxu0 %v5295
        %5429 = vmatprep.subr.bf16.mxu0 0
        %5430 = vmatpush1.bf16.msra.mxu0 %v5296
        %5431 = vmatprep.subr.bf16.mxu0 0
        %5432 = vmatpush1.bf16.msra.mxu0 %v5297
        %5433 = vmatprep.subr.bf16.mxu0 0
        %5434 = vmatpush1.bf16.msra.mxu0 %v5298
        %5435 = vmatprep.subr.bf16.mxu0 0
        %5436 = vmatpush1.bf16.msra.mxu0 %v5299
        %5437 = vmatprep.subr.bf16.mxu0 0
        %5438 = vmatpush1.bf16.msra.mxu0 %v5300
        %5439 = vmatprep.subr.bf16.mxu0 0
        %5440 = vmatpush1.bf16.msra.mxu0 %v5301
        %5441 = vmatprep.subr.bf16.mxu0 0
        %5442 = vmatpush1.bf16.msra.mxu0 %v5302
        %5443 = vmatprep.subr.bf16.mxu0 0
        %5444 = vmatpush1.bf16.msra.mxu0 %v5303
        %5445 = vmatprep.subr.bf16.mxu0 0
        %5446 = vmatpush1.bf16.msra.mxu0 %v5304
        %5447 = vmatprep.subr.bf16.mxu0 0
        %5448 = vmatpush1.bf16.msra.mxu0 %v5305
        %5449 = vmatprep.subr.bf16.mxu0 0
        %5450 = vmatpush1.bf16.msra.mxu0 %v5306
        %5451 = vmatprep.mubr.bf16.mxu0 %v5015
        %5452 = vmatmul.mubr.bf16.gmra.mrb[0].mxu0 %v5001
        %v5453 = vpop.f32.mrb[0].mxu0
        %v5454 = vadd.f32 0.0, %v5453
        %v5455 = vpop.f32.mrb[0].mxu0
        %v5456 = vpop.f32.mrb[0].mxu0
        %v5457 = vpop.f32.mrb[0].mxu0
        %5458 = vdwg.mxu0
        %5459 = vmatprep.subr.bf16.mxu0 0
        %5460 = vmatpush1.bf16.msra.mxu0 %v5307
        %5461 = vmatprep.subr.bf16.mxu0 0
        %5462 = vmatpush1.bf16.msra.mxu0 %v5308
        %5463 = vmatprep.subr.bf16.mxu0 0
        %5464 = vmatpush1.bf16.msra.mxu0 %v5309
        %5465 = vmatprep.subr.bf16.mxu0 0
        %5466 = vmatpush1.bf16.msra.mxu0 %v5310
        %5467 = vmatprep.subr.bf16.mxu0 0
        %5468 = vmatpush1.bf16.msra.mxu0 %v5311
        %5469 = vmatprep.subr.bf16.mxu0 0
        %5470 = vmatpush1.bf16.msra.mxu0 %v5312
        %5471 = vmatprep.subr.bf16.mxu0 0
        %5472 = vmatpush1.bf16.msra.mxu0 %v5313
        %5473 = vmatprep.subr.bf16.mxu0 0
        %5474 = vmatpush1.bf16.msra.mxu0 %v5314
        %5475 = vmatprep.subr.bf16.mxu0 0
        %5476 = vmatpush1.bf16.msra.mxu0 %v5315
        %5477 = vmatprep.subr.bf16.mxu0 0
        %5478 = vmatpush1.bf16.msra.mxu0 %v5316
        %5479 = vmatprep.subr.bf16.mxu0 0
        %5480 = vmatpush1.bf16.msra.mxu0 %v5317
        %5481 = vmatprep.subr.bf16.mxu0 0
        %5482 = vmatpush1.bf16.msra.mxu0 %v5318
        %5483 = vmatprep.subr.bf16.mxu0 0
        %5484 = vmatpush1.bf16.msra.mxu0 %v5319
        %5485 = vmatprep.subr.bf16.mxu0 0
        %5486 = vmatpush1.bf16.msra.mxu0 %v5320
        %5487 = vmatprep.subr.bf16.mxu0 0
        %5488 = vmatpush1.bf16.msra.mxu0 %v5321
        %5489 = vmatprep.subr.bf16.mxu0 0
        %5490 = vmatpush1.bf16.msra.mxu0 %v5322
        %5491 = vmatprep.mubr.bf16.mxu0 %v5025
        %5492 = vmatmul.mubr.bf16.gmra.mrb[0].mxu0 %v5023
        %v5493 = vpop.f32.mrb[0].mxu0
        %v5494 = vadd.f32 %v5454, %v5493
        %v5495 = vpop.f32.mrb[0].mxu0
        %v5496 = vpop.f32.mrb[0].mxu0
        %v5497 = vpop.f32.mrb[0].mxu0
        %5498 = vdwg.mxu0
        %5499 = vmatprep.subr.bf16.mxu0 0
        %5500 = vmatpush1.bf16.msra.mxu0 %v5323
        %5501 = vmatprep.subr.bf16.mxu0 0
        %5502 = vmatpush1.bf16.msra.mxu0 %v5324
        %5503 = vmatprep.subr.bf16.mxu0 0
        %5504 = vmatpush1.bf16.msra.mxu0 %v5325
        %5505 = vmatprep.subr.bf16.mxu0 0
        %5506 = vmatpush1.bf16.msra.mxu0 %v5326
        %5507 = vmatprep.subr.bf16.mxu0 0
        %5508 = vmatpush1.bf16.msra.mxu0 %v5327
        %5509 = vmatprep.subr.bf16.mxu0 0
        %5510 = vmatpush1.bf16.msra.mxu0 %v5328
        %5511 = vmatprep.subr.bf16.mxu0 0
        %5512 = vmatpush1.bf16.msra.mxu0 %v5329
        %5513 = vmatprep.subr.bf16.mxu0 0
        %5514 = vmatpush1.bf16.msra.mxu0 %v5330
        %5515 = vmatprep.subr.bf16.mxu0 0
        %5516 = vmatpush1.bf16.msra.mxu0 %v5331
        %5517 = vmatprep.subr.bf16.mxu0 0
        %5518 = vmatpush1.bf16.msra.mxu0 %v5332
        %5519 = vmatprep.subr.bf16.mxu0 0
        %5520 = vmatpush1.bf16.msra.mxu0 %v5333
        %5521 = vmatprep.subr.bf16.mxu0 0
        %5522 = vmatpush1.bf16.msra.mxu0 %v5334
        %5523 = vmatprep.subr.bf16.mxu0 0
        %5524 = vmatpush1.bf16.msra.mxu0 %v5335
        %5525 = vmatprep.subr.bf16.mxu0 0
        %5526 = vmatpush1.bf16.msra.mxu0 %v5336
        %5527 = vmatprep.subr.bf16.mxu0 0
        %5528 = vmatpush1.bf16.msra.mxu0 %v5337
        %5529 = vmatprep.subr.bf16.mxu0 0
        %5530 = vmatpush1.bf16.msra.mxu0 %v5338
        %5531 = vmatprep.mubr.bf16.mxu0 %v5022
        %5532 = vmatmul.mubr.bf16.gmra.mrb[0].mxu0 %v5008
        %v5533 = vpop.f32.mrb[0].mxu0
        %v5534 = vadd.f32 %v5494, %v5533
        %v5535 = vpop.f32.mrb[0].mxu0
        %v5536 = vpop.f32.mrb[0].mxu0
        %v5537 = vpop.f32.mrb[0].mxu0
        %5538 = vdwg.mxu0
        %5539 = vmatprep.subr.bf16.mxu0 0
        %5540 = vmatpush1.bf16.msra.mxu0 %v5339
        %5541 = vmatprep.subr.bf16.mxu0 0
        %5542 = vmatpush1.bf16.msra.mxu0 %v5340
        %5543 = vmatprep.subr.bf16.mxu0 0
        %5544 = vmatpush1.bf16.msra.mxu0 %v5341
        %5545 = vmatprep.subr.bf16.mxu0 0
        %5546 = vmatpush1.bf16.msra.mxu0 %v5342
        %5547 = vmatprep.subr.bf16.mxu0 0
        %5548 = vmatpush1.bf16.msra.mxu0 %v5343
        %5549 = vmatprep.subr.bf16.mxu0 0
        %5550 = vmatpush1.bf16.msra.mxu0 %v5344
        %5551 = vmatprep.subr.bf16.mxu0 0
        %5552 = vmatpush1.bf16.msra.mxu0 %v5345
        %5553 = vmatprep.subr.bf16.mxu0 0
        %5554 = vmatpush1.bf16.msra.mxu0 %v5346
        %5555 = vmatprep.subr.bf16.mxu0 0
        %5556 = vmatpush1.bf16.msra.mxu0 %v5347
        %5557 = vmatprep.subr.bf16.mxu0 0
        %5558 = vmatpush1.bf16.msra.mxu0 %v5348
        %5559 = vmatprep.subr.bf16.mxu0 0
        %5560 = vmatpush1.bf16.msra.mxu0 %v5349
        %5561 = vmatprep.subr.bf16.mxu0 0
        %5562 = vmatpush1.bf16.msra.mxu0 %v5350
        %5563 = vmatprep.subr.bf16.mxu0 0
        %5564 = vmatpush1.bf16.msra.mxu0 %v5351
        %5565 = vmatprep.subr.bf16.mxu0 0
        %5566 = vmatpush1.bf16.msra.mxu0 %v5352
        %5567 = vmatprep.subr.bf16.mxu0 0
        %5568 = vmatpush1.bf16.msra.mxu0 %v5353
        %5569 = vmatprep.subr.bf16.mxu0 0
        %5570 = vmatpush1.bf16.msra.mxu0 %v5354
        %5571 = vmatprep.mubr.bf16.mxu0 %v5026
        %5572 = vmatmul.mubr.bf16.gmra.mrb[0].mxu0 %v5024
        %v5573 = vpop.f32.mrb[0].mxu0
        %v5574 = vadd.f32 %v5534, %v5573
        %v5575 = vpop.f32.mrb[0].mxu0
        %v5576 = vpop.f32.mrb[0].mxu0
        %v5577 = vpop.f32.mrb[0].mxu0
        %5578 = vdwg.mxu0
        %v5580 = vcombine.high %v340, %v340
        %v5582 = vunpack.c.l.s4 1966171168
        %v5583 = vunpack.c.0.s8 %v5582
        %v5584 = vlaneseq
        %v5585 = vshrl.u32 %v5584, 7
        %v5586 = vsub.s32 %v5583, %v5585
        %v5587 = vrot.slane %v340, %v5586
        %v5589 = vunpack.c.l.s4 1966171168
        %v5590 = vunpack.c.0.s8 %v5589
        %v5591 = vlaneseq
        %v5592 = vshrl.u32 %v5591, 7
        %v5593 = vsub.s32 %v5590, %v5592
        %v5594 = vrot.slane %v5580, %v5593
        %v5595 = vcombine.high %v5587, %v5587
        %v5596 = vcombine.high %v5594, %v5594
        %v5598 = vunpack.c.l.s4 1966171168
        %v5599 = vunpack.c.0.s8 %v5598
        %v5600 = vlaneseq
        %v5601 = vshrl.u32 %v5600, 7
        %v5602 = vsub.s32 %v5599, %v5601
        %v5603 = vrot.slane %v5587, %v5602
        %v5605 = vunpack.c.l.s4 1966171168
        %v5606 = vunpack.c.0.s8 %v5605
        %v5607 = vlaneseq
        %v5608 = vshrl.u32 %v5607, 7
        %v5609 = vsub.s32 %v5606, %v5608
        %v5610 = vrot.slane %v5594, %v5609
        %v5612 = vunpack.c.l.s4 1966171168
        %v5613 = vunpack.c.0.s8 %v5612
        %v5614 = vlaneseq
        %v5615 = vshrl.u32 %v5614, 7
        %v5616 = vsub.s32 %v5613, %v5615
        %v5617 = vrot.slane %v5595, %v5616
        %v5619 = vunpack.c.l.s4 1966171168
        %v5620 = vunpack.c.0.s8 %v5619
        %v5621 = vlaneseq
        %v5622 = vshrl.u32 %v5621, 7
        %v5623 = vsub.s32 %v5620, %v5622
        %v5624 = vrot.slane %v5596, %v5623
        %v5625 = vcombine.high %v5603, %v5603
        %v5626 = vcombine.high %v5610, %v5610
        %v5627 = vcombine.high %v5617, %v5617
        %v5628 = vcombine.high %v5624, %v5624
        %v5765 = vunpack.c.l.b16 %v1237
        %v5766 = vunpack.c.l.b16 %v1238
        %v5767 = vunpack.c.l.b16 %v1239
        %v5768 = vunpack.c.l.b16 %v1240
        %v5769 = vunpack.c.l.b16 %v1241
        %v5770 = vunpack.c.l.b16 %v1242
        %v5771 = vunpack.c.l.b16 %v1243
        %v5772 = vunpack.c.l.b16 %v1244
        %v5773 = vunpack.c.l.b16 %v1245
        %v5774 = vunpack.c.l.b16 %v1246
        %v5775 = vunpack.c.l.b16 %v1247
        %v5776 = vunpack.c.l.b16 %v1248
        %v5777 = vunpack.c.l.b16 %v1249
        %v5778 = vunpack.c.l.b16 %v1250
        %v5779 = vunpack.c.l.b16 %v1251
        %v5780 = vunpack.c.l.b16 %v1252
        %v5781 = vunpack.c.l.b16 %v1253
        %v5782 = vunpack.c.l.b16 %v1254
        %v5783 = vunpack.c.l.b16 %v1255
        %v5784 = vunpack.c.l.b16 %v1256
        %v5785 = vunpack.c.l.b16 %v1257
        %v5786 = vunpack.c.l.b16 %v1258
        %v5787 = vunpack.c.l.b16 %v1259
        %v5788 = vunpack.c.l.b16 %v1260
        %v5789 = vunpack.c.l.b16 %v1261
        %v5790 = vunpack.c.l.b16 %v1262
        %v5791 = vunpack.c.l.b16 %v1263
        %v5792 = vunpack.c.l.b16 %v1264
        %v5793 = vunpack.c.l.b16 %v1265
        %v5794 = vunpack.c.l.b16 %v1266
        %v5795 = vunpack.c.l.b16 %v1267
        %v5796 = vunpack.c.l.b16 %v1268
        %v5797 = vunpack.c.l.b16 %v1269
        %v5798 = vunpack.c.l.b16 %v1270
        %v5799 = vunpack.c.l.b16 %v1271
        %v5800 = vunpack.c.l.b16 %v1272
        %v5801 = vunpack.c.l.b16 %v1273
        %v5802 = vunpack.c.l.b16 %v1274
        %v5803 = vunpack.c.l.b16 %v1275
        %v5804 = vunpack.c.l.b16 %v1276
        %v5805 = vunpack.c.l.b16 %v1277
        %v5806 = vunpack.c.l.b16 %v1278
        %v5807 = vunpack.c.l.b16 %v1279
        %v5808 = vunpack.c.l.b16 %v1280
        %v5809 = vunpack.c.l.b16 %v1281
        %v5810 = vunpack.c.l.b16 %v1282
        %v5811 = vunpack.c.l.b16 %v1283
        %v5812 = vunpack.c.l.b16 %v1284
        %v5813 = vunpack.c.l.b16 %v1285
        %v5814 = vunpack.c.l.b16 %v1286
        %v5815 = vunpack.c.l.b16 %v1287
        %v5816 = vunpack.c.l.b16 %v1288
        %v5817 = vunpack.c.l.b16 %v1289
        %v5818 = vunpack.c.l.b16 %v1290
        %v5819 = vunpack.c.l.b16 %v1291
        %v5820 = vunpack.c.l.b16 %v1292
        %v5821 = vunpack.c.l.b16 %v1293
        %v5822 = vunpack.c.l.b16 %v1294
        %v5823 = vunpack.c.l.b16 %v1295
        %v5824 = vunpack.c.l.b16 %v1296
        %v5825 = vunpack.c.l.b16 %v1297
        %v5826 = vunpack.c.l.b16 %v1298
        %v5827 = vunpack.c.l.b16 %v1299
        %v5828 = vunpack.c.l.b16 %v1300
        %v5829 = vunpack.c.l.b16 %v1301
        %v5830 = vunpack.c.l.b16 %v1302
        %v5831 = vunpack.c.l.b16 %v1303
        %v5832 = vunpack.c.l.b16 %v1304
        %v5833 = vunpack.c.l.b16 %v1305
        %v5834 = vunpack.c.l.b16 %v1306
        %v5835 = vunpack.c.l.b16 %v1307
        %v5836 = vunpack.c.l.b16 %v1308
        %v5837 = vunpack.c.l.b16 %v1309
        %v5838 = vunpack.c.l.b16 %v1310
        %v5839 = vunpack.c.l.b16 %v1311
        %v5840 = vunpack.c.l.b16 %v1312
        %v5841 = vunpack.c.l.b16 %v1313
        %v5842 = vunpack.c.l.b16 %v1314
        %v5843 = vunpack.c.l.b16 %v1315
        %v5844 = vunpack.c.l.b16 %v1316
        %v5845 = vunpack.c.l.b16 %v1317
        %v5846 = vunpack.c.l.b16 %v1318
        %v5847 = vunpack.c.l.b16 %v1319
        %v5848 = vunpack.c.l.b16 %v1320
        %v5849 = vunpack.c.l.b16 %v1321
        %v5850 = vunpack.c.l.b16 %v1322
        %v5851 = vunpack.c.l.b16 %v1323
        %v5852 = vunpack.c.l.b16 %v1324
        %v5853 = vunpack.c.l.b16 %v1325
        %v5854 = vunpack.c.l.b16 %v1326
        %v5855 = vunpack.c.l.b16 %v1327
        %v5856 = vunpack.c.l.b16 %v1328
        %v5857 = vunpack.c.l.b16 %v1329
        %v5858 = vunpack.c.l.b16 %v1330
        %v5859 = vunpack.c.l.b16 %v1331
        %v5860 = vunpack.c.l.b16 %v1332
        %v5861 = vunpack.c.l.b16 %v1333
        %v5862 = vunpack.c.l.b16 %v1334
        %v5863 = vunpack.c.l.b16 %v1335
        %v5864 = vunpack.c.l.b16 %v1336
        %v5865 = vunpack.c.l.b16 %v1337
        %v5866 = vunpack.c.l.b16 %v1338
        %v5867 = vunpack.c.l.b16 %v1339
        %v5868 = vunpack.c.l.b16 %v1340
        %v5869 = vunpack.c.l.b16 %v1341
        %v5870 = vunpack.c.l.b16 %v1342
        %v5871 = vunpack.c.l.b16 %v1343
        %v5872 = vunpack.c.l.b16 %v1344
        %v5873 = vunpack.c.l.b16 %v1345
        %v5874 = vunpack.c.l.b16 %v1346
        %v5875 = vunpack.c.l.b16 %v1347
        %v5876 = vunpack.c.l.b16 %v1348
        %v5877 = vunpack.c.l.b16 %v1349
        %v5878 = vunpack.c.l.b16 %v1350
        %v5879 = vunpack.c.l.b16 %v1351
        %v5880 = vunpack.c.l.b16 %v1352
        %v5881 = vunpack.c.l.b16 %v1353
        %v5882 = vunpack.c.l.b16 %v1354
        %v5883 = vunpack.c.l.b16 %v1355
        %v5884 = vunpack.c.l.b16 %v1356
        %v5885 = vunpack.c.l.b16 %v1357
        %v5886 = vunpack.c.l.b16 %v1358
        %v5887 = vunpack.c.l.b16 %v1359
        %v5888 = vunpack.c.l.b16 %v1360
        %v5889 = vunpack.c.l.b16 %v1361
        %v5890 = vunpack.c.l.b16 %v1362
        %v5891 = vunpack.c.l.b16 %v1363
        %v5892 = vunpack.c.l.b16 %v1364
        %v5893 = vpack.c.b16 %v5766, %v5765
        %v5894 = vpack.c.b16 %v5768, %v5767
        %v5895 = vpack.c.b16 %v5770, %v5769
        %v5896 = vpack.c.b16 %v5772, %v5771
        %v5897 = vpack.c.b16 %v5774, %v5773
        %v5898 = vpack.c.b16 %v5776, %v5775
        %v5899 = vpack.c.b16 %v5778, %v5777
        %v5900 = vpack.c.b16 %v5780, %v5779
        %v5901 = vpack.c.b16 %v5782, %v5781
        %v5902 = vpack.c.b16 %v5784, %v5783
        %v5903 = vpack.c.b16 %v5786, %v5785
        %v5904 = vpack.c.b16 %v5788, %v5787
        %v5905 = vpack.c.b16 %v5790, %v5789
        %v5906 = vpack.c.b16 %v5792, %v5791
        %v5907 = vpack.c.b16 %v5794, %v5793
        %v5908 = vpack.c.b16 %v5796, %v5795
        %v5909 = vpack.c.b16 %v5798, %v5797
        %v5910 = vpack.c.b16 %v5800, %v5799
        %v5911 = vpack.c.b16 %v5802, %v5801
        %v5912 = vpack.c.b16 %v5804, %v5803
        %v5913 = vpack.c.b16 %v5806, %v5805
        %v5914 = vpack.c.b16 %v5808, %v5807
        %v5915 = vpack.c.b16 %v5810, %v5809
        %v5916 = vpack.c.b16 %v5812, %v5811
        %v5917 = vpack.c.b16 %v5814, %v5813
        %v5918 = vpack.c.b16 %v5816, %v5815
        %v5919 = vpack.c.b16 %v5818, %v5817
        %v5920 = vpack.c.b16 %v5820, %v5819
        %v5921 = vpack.c.b16 %v5822, %v5821
        %v5922 = vpack.c.b16 %v5824, %v5823
        %v5923 = vpack.c.b16 %v5826, %v5825
        %v5924 = vpack.c.b16 %v5828, %v5827
        %v5925 = vpack.c.b16 %v5830, %v5829
        %v5926 = vpack.c.b16 %v5832, %v5831
        %v5927 = vpack.c.b16 %v5834, %v5833
        %v5928 = vpack.c.b16 %v5836, %v5835
        %v5929 = vpack.c.b16 %v5838, %v5837
        %v5930 = vpack.c.b16 %v5840, %v5839
        %v5931 = vpack.c.b16 %v5842, %v5841
        %v5932 = vpack.c.b16 %v5844, %v5843
        %v5933 = vpack.c.b16 %v5846, %v5845
        %v5934 = vpack.c.b16 %v5848, %v5847
        %v5935 = vpack.c.b16 %v5850, %v5849
        %v5936 = vpack.c.b16 %v5852, %v5851
        %v5937 = vpack.c.b16 %v5854, %v5853
        %v5938 = vpack.c.b16 %v5856, %v5855
        %v5939 = vpack.c.b16 %v5858, %v5857
        %v5940 = vpack.c.b16 %v5860, %v5859
        %v5941 = vpack.c.b16 %v5862, %v5861
        %v5942 = vpack.c.b16 %v5864, %v5863
        %v5943 = vpack.c.b16 %v5866, %v5865
        %v5944 = vpack.c.b16 %v5868, %v5867
        %v5945 = vpack.c.b16 %v5870, %v5869
        %v5946 = vpack.c.b16 %v5872, %v5871
        %v5947 = vpack.c.b16 %v5874, %v5873
        %v5948 = vpack.c.b16 %v5876, %v5875
        %v5949 = vpack.c.b16 %v5878, %v5877
        %v5950 = vpack.c.b16 %v5880, %v5879
        %v5951 = vpack.c.b16 %v5882, %v5881
        %v5952 = vpack.c.b16 %v5884, %v5883
        %v5953 = vpack.c.b16 %v5886, %v5885
        %v5954 = vpack.c.b16 %v5888, %v5887
        %v5955 = vpack.c.b16 %v5890, %v5889
        %v5956 = vpack.c.b16 %v5892, %v5891
        %6021 = vmatprep.subr.bf16.mxu0 0
        %6022 = vmatpush1.bf16.msra.mxu0 %v5893
        %6023 = vmatprep.subr.bf16.mxu0 0
        %6024 = vmatpush1.bf16.msra.mxu0 %v5894
        %6025 = vmatprep.subr.bf16.mxu0 0
        %6026 = vmatpush1.bf16.msra.mxu0 %v5895
        %6027 = vmatprep.subr.bf16.mxu0 0
        %6028 = vmatpush1.bf16.msra.mxu0 %v5896
        %6029 = vmatprep.subr.bf16.mxu0 0
        %6030 = vmatpush1.bf16.msra.mxu0 %v5897
        %6031 = vmatprep.subr.bf16.mxu0 0
        %6032 = vmatpush1.bf16.msra.mxu0 %v5898
        %6033 = vmatprep.subr.bf16.mxu0 0
        %6034 = vmatpush1.bf16.msra.mxu0 %v5899
        %6035 = vmatprep.subr.bf16.mxu0 0
        %6036 = vmatpush1.bf16.msra.mxu0 %v5900
        %6037 = vmatprep.subr.bf16.mxu0 0
        %6038 = vmatpush1.bf16.msra.mxu0 %v5901
        %6039 = vmatprep.subr.bf16.mxu0 0
        %6040 = vmatpush1.bf16.msra.mxu0 %v5902
        %6041 = vmatprep.subr.bf16.mxu0 0
        %6042 = vmatpush1.bf16.msra.mxu0 %v5903
        %6043 = vmatprep.subr.bf16.mxu0 0
        %6044 = vmatpush1.bf16.msra.mxu0 %v5904
        %6045 = vmatprep.subr.bf16.mxu0 0
        %6046 = vmatpush1.bf16.msra.mxu0 %v5905
        %6047 = vmatprep.subr.bf16.mxu0 0
        %6048 = vmatpush1.bf16.msra.mxu0 %v5906
        %6049 = vmatprep.subr.bf16.mxu0 0
        %6050 = vmatpush1.bf16.msra.mxu0 %v5907
        %6051 = vmatprep.subr.bf16.mxu0 0
        %6052 = vmatpush1.bf16.msra.mxu0 %v5908
        %6053 = vmatprep.mubr.bf16.mxu0 %v5617
        %6054 = vmatmul.mubr.bf16.gmra.mrb[0].mxu0 %v5603
        %v6055 = vpop.f32.mrb[0].mxu0
        %v6056 = vadd.f32 0.0, %v6055
        %v6057 = vpop.f32.mrb[0].mxu0
        %v6058 = vpop.f32.mrb[0].mxu0
        %v6059 = vpop.f32.mrb[0].mxu0
        %6060 = vdwg.mxu0
        %6061 = vmatprep.subr.bf16.mxu0 0
        %6062 = vmatpush1.bf16.msra.mxu0 %v5909
        %6063 = vmatprep.subr.bf16.mxu0 0
        %6064 = vmatpush1.bf16.msra.mxu0 %v5910
        %6065 = vmatprep.subr.bf16.mxu0 0
        %6066 = vmatpush1.bf16.msra.mxu0 %v5911
        %6067 = vmatprep.subr.bf16.mxu0 0
        %6068 = vmatpush1.bf16.msra.mxu0 %v5912
        %6069 = vmatprep.subr.bf16.mxu0 0
        %6070 = vmatpush1.bf16.msra.mxu0 %v5913
        %6071 = vmatprep.subr.bf16.mxu0 0
        %6072 = vmatpush1.bf16.msra.mxu0 %v5914
        %6073 = vmatprep.subr.bf16.mxu0 0
        %6074 = vmatpush1.bf16.msra.mxu0 %v5915
        %6075 = vmatprep.subr.bf16.mxu0 0
        %6076 = vmatpush1.bf16.msra.mxu0 %v5916
        %6077 = vmatprep.subr.bf16.mxu0 0
        %6078 = vmatpush1.bf16.msra.mxu0 %v5917
        %6079 = vmatprep.subr.bf16.mxu0 0
        %6080 = vmatpush1.bf16.msra.mxu0 %v5918
        %6081 = vmatprep.subr.bf16.mxu0 0
        %6082 = vmatpush1.bf16.msra.mxu0 %v5919
        %6083 = vmatprep.subr.bf16.mxu0 0
        %6084 = vmatpush1.bf16.msra.mxu0 %v5920
        %6085 = vmatprep.subr.bf16.mxu0 0
        %6086 = vmatpush1.bf16.msra.mxu0 %v5921
        %6087 = vmatprep.subr.bf16.mxu0 0
        %6088 = vmatpush1.bf16.msra.mxu0 %v5922
        %6089 = vmatprep.subr.bf16.mxu0 0
        %6090 = vmatpush1.bf16.msra.mxu0 %v5923
        %6091 = vmatprep.subr.bf16.mxu0 0
        %6092 = vmatpush1.bf16.msra.mxu0 %v5924
        %6093 = vmatprep.mubr.bf16.mxu0 %v5627
        %6094 = vmatmul.mubr.bf16.gmra.mrb[0].mxu0 %v5625
        %v6095 = vpop.f32.mrb[0].mxu0
        %v6096 = vadd.f32 %v6056, %v6095
        %v6097 = vpop.f32.mrb[0].mxu0
        %v6098 = vpop.f32.mrb[0].mxu0
        %v6099 = vpop.f32.mrb[0].mxu0
        %6100 = vdwg.mxu0
        %6101 = vmatprep.subr.bf16.mxu0 0
        %6102 = vmatpush1.bf16.msra.mxu0 %v5925
        %6103 = vmatprep.subr.bf16.mxu0 0
        %6104 = vmatpush1.bf16.msra.mxu0 %v5926
        %6105 = vmatprep.subr.bf16.mxu0 0
        %6106 = vmatpush1.bf16.msra.mxu0 %v5927
        %6107 = vmatprep.subr.bf16.mxu0 0
        %6108 = vmatpush1.bf16.msra.mxu0 %v5928
        %6109 = vmatprep.subr.bf16.mxu0 0
        %6110 = vmatpush1.bf16.msra.mxu0 %v5929
        %6111 = vmatprep.subr.bf16.mxu0 0
        %6112 = vmatpush1.bf16.msra.mxu0 %v5930
        %6113 = vmatprep.subr.bf16.mxu0 0
        %6114 = vmatpush1.bf16.msra.mxu0 %v5931
        %6115 = vmatprep.subr.bf16.mxu0 0
        %6116 = vmatpush1.bf16.msra.mxu0 %v5932
        %6117 = vmatprep.subr.bf16.mxu0 0
        %6118 = vmatpush1.bf16.msra.mxu0 %v5933
        %6119 = vmatprep.subr.bf16.mxu0 0
        %6120 = vmatpush1.bf16.msra.mxu0 %v5934
        %6121 = vmatprep.subr.bf16.mxu0 0
        %6122 = vmatpush1.bf16.msra.mxu0 %v5935
        %6123 = vmatprep.subr.bf16.mxu0 0
        %6124 = vmatpush1.bf16.msra.mxu0 %v5936
        %6125 = vmatprep.subr.bf16.mxu0 0
        %6126 = vmatpush1.bf16.msra.mxu0 %v5937
        %6127 = vmatprep.subr.bf16.mxu0 0
        %6128 = vmatpush1.bf16.msra.mxu0 %v5938
        %6129 = vmatprep.subr.bf16.mxu0 0
        %6130 = vmatpush1.bf16.msra.mxu0 %v5939
        %6131 = vmatprep.subr.bf16.mxu0 0
        %6132 = vmatpush1.bf16.msra.mxu0 %v5940
        %6133 = vmatprep.mubr.bf16.mxu0 %v5624
        %6134 = vmatmul.mubr.bf16.gmra.mrb[0].mxu0 %v5610
        %v6135 = vpop.f32.mrb[0].mxu0
        %v6136 = vadd.f32 %v6096, %v6135
        %v6137 = vpop.f32.mrb[0].mxu0
        %v6138 = vpop.f32.mrb[0].mxu0
        %v6139 = vpop.f32.mrb[0].mxu0
        %6140 = vdwg.mxu0
        %6141 = vmatprep.subr.bf16.mxu0 0
        %6142 = vmatpush1.bf16.msra.mxu0 %v5941
        %6143 = vmatprep.subr.bf16.mxu0 0
        %6144 = vmatpush1.bf16.msra.mxu0 %v5942
        %6145 = vmatprep.subr.bf16.mxu0 0
        %6146 = vmatpush1.bf16.msra.mxu0 %v5943
        %6147 = vmatprep.subr.bf16.mxu0 0
        %6148 = vmatpush1.bf16.msra.mxu0 %v5944
        %6149 = vmatprep.subr.bf16.mxu0 0
        %6150 = vmatpush1.bf16.msra.mxu0 %v5945
        %6151 = vmatprep.subr.bf16.mxu0 0
        %6152 = vmatpush1.bf16.msra.mxu0 %v5946
        %6153 = vmatprep.subr.bf16.mxu0 0
        %6154 = vmatpush1.bf16.msra.mxu0 %v5947
        %6155 = vmatprep.subr.bf16.mxu0 0
        %6156 = vmatpush1.bf16.msra.mxu0 %v5948
        %6157 = vmatprep.subr.bf16.mxu0 0
        %6158 = vmatpush1.bf16.msra.mxu0 %v5949
        %6159 = vmatprep.subr.bf16.mxu0 0
        %6160 = vmatpush1.bf16.msra.mxu0 %v5950
        %6161 = vmatprep.subr.bf16.mxu0 0
        %6162 = vmatpush1.bf16.msra.mxu0 %v5951
        %6163 = vmatprep.subr.bf16.mxu0 0
        %6164 = vmatpush1.bf16.msra.mxu0 %v5952
        %6165 = vmatprep.subr.bf16.mxu0 0
        %6166 = vmatpush1.bf16.msra.mxu0 %v5953
        %6167 = vmatprep.subr.bf16.mxu0 0
        %6168 = vmatpush1.bf16.msra.mxu0 %v5954
        %6169 = vmatprep.subr.bf16.mxu0 0
        %6170 = vmatpush1.bf16.msra.mxu0 %v5955
        %6171 = vmatprep.subr.bf16.mxu0 0
        %6172 = vmatpush1.bf16.msra.mxu0 %v5956
        %6173 = vmatprep.mubr.bf16.mxu0 %v5628
        %6174 = vmatmul.mubr.bf16.gmra.mrb[0].mxu0 %v5626
        %v6175 = vpop.f32.mrb[0].mxu0
        %v6176 = vadd.f32 %v6136, %v6175
        %v6177 = vpop.f32.mrb[0].mxu0
        %v6178 = vpop.f32.mrb[0].mxu0
        %v6179 = vpop.f32.mrb[0].mxu0
        %6180 = vdwg.mxu0
        %v6181 = vadd.f32 %v325, %v1962
        %v6182 = vadd.f32 %v326, %v2564
        %v6183 = vadd.f32 %v327, %v3166
        %v6184 = vadd.f32 %v328, %v3768
        %v6185 = vadd.f32 %v329, %v4370
        %v6186 = vadd.f32 %v330, %v4972
        %v6187 = vadd.f32 %v331, %v5574
        %v6188 = vadd.f32 %v332, %v6176
        %vm6189 = vcmask 253952
        %6190 = vst.msk [vmem:[#allocation2] sm:$0x1] %vm6189, %v6181
        %6191 = vst.msk [vmem:[#allocation2 + $0x1] sm:$0x1] %vm6189, %v6182
        %6192 = vst.msk [vmem:[#allocation2 + $0x2] sm:$0x1] %vm6189, %v6183
        %6193 = vst.msk [vmem:[#allocation2 + $0x3] sm:$0x1] %vm6189, %v6184
        %6194 = vst.msk [vmem:[#allocation2 + $0x4] sm:$0x1] %vm6189, %v6185
        %6195 = vst.msk [vmem:[#allocation2 + $0x5] sm:$0x1] %vm6189, %v6186
        %6196 = vst.msk [vmem:[#allocation2 + $0x6] sm:$0x1] %vm6189, %v6187
        %6197 = vst.msk [vmem:[#allocation2 + $0x7] sm:$0x1] %vm6189, %v6188
        // Predicated region
        $region45: #{tpu_custom_call.1} parent=39 // pred_check
          %p6198 = pneg %p312
        $region46: #{tpu_custom_call.1} parent=39 // pred_check_branch
          %6200 = sbr.rel (%p6198) target = $region48
        $region47: #{tpu_custom_call.1} parent=39 // pred_region
          %v6201 = vld [vmem:[#allocation2] sm:$0x1]
          %v6202 = vld [vmem:[#allocation2 + $0x1] sm:$0x1]
          %v6203 = vld [vmem:[#allocation2 + $0x2] sm:$0x1]
          %v6204 = vld [vmem:[#allocation2 + $0x3] sm:$0x1]
          %v6205 = vld [vmem:[#allocation2 + $0x4] sm:$0x1]
          %v6206 = vld [vmem:[#allocation2 + $0x5] sm:$0x1]
          %v6207 = vld [vmem:[#allocation2 + $0x6] sm:$0x1]
          %v6208 = vld [vmem:[#allocation2 + $0x7] sm:$0x1]
          %v6209 = vld [vmem:[%s310] sm:$0xff]
          %6211 = vset.pattern.permute.xlu0 0
          %6212 = vperm.xlu0 %6211, %v6209
          %v6213 = vpop.permute.xlu0 %6212
          %v6214 = vlaneseq
          %v6215 = vshrl.u32 %v6214, 7
          %v6216 = vsub.s32 0, %v6215
          %v6217 = vrot.slane %v6213, %v6216
          %v6218 = vlaneseq
          %v6219 = vshrl.u32 %v6218, 7
          %v6220 = vsub.s32 1, %v6219
          %v6221 = vrot.slane %v6213, %v6220
          %v6222 = vlaneseq
          %v6223 = vshrl.u32 %v6222, 7
          %v6224 = vsub.s32 2, %v6223
          %v6225 = vrot.slane %v6213, %v6224
          %v6226 = vlaneseq
          %v6227 = vshrl.u32 %v6226, 7
          %v6228 = vsub.s32 3, %v6227
          %v6229 = vrot.slane %v6213, %v6228
          %v6230 = vlaneseq
          %v6231 = vshrl.u32 %v6230, 7
          %v6232 = vsub.s32 4, %v6231
          %v6233 = vrot.slane %v6213, %v6232
          %v6234 = vlaneseq
          %v6235 = vshrl.u32 %v6234, 7
          %v6236 = vsub.s32 5, %v6235
          %v6237 = vrot.slane %v6213, %v6236
          %v6238 = vlaneseq
          %v6239 = vshrl.u32 %v6238, 7
          %v6240 = vsub.s32 6, %v6239
          %v6241 = vrot.slane %v6213, %v6240
          %v6242 = vlaneseq
          %v6243 = vshrl.u32 %v6242, 7
          %v6244 = vsub.s32 7, %v6243
          %v6245 = vrot.slane %v6213, %v6244
          %v6254 = vmul.f32 %v6201, %v6217
          %v6255 = vmul.f32 %v6202, %v6221
          %v6256 = vmul.f32 %v6203, %v6225
          %v6257 = vmul.f32 %v6204, %v6229
          %v6258 = vmul.f32 %v6205, %v6233
          %v6259 = vmul.f32 %v6206, %v6237
          %v6260 = vmul.f32 %v6207, %v6241
          %v6261 = vmul.f32 %v6208, %v6245
          %v6262 = vld [vmem:[%s3] sm:$0xff]
          %v6263 = vld [vmem:[%s3 + $0x8] sm:$0xff]
          %v6264 = vld [vmem:[%s3 + $0x10] sm:$0xff]
          %v6265 = vld [vmem:[%s3 + $0x18] sm:$0xff]
          %v6266 = vld [vmem:[%s4] sm:$0x1]
          %v6268 = vlaneseq
          %v6269 = vshrl.u32 %v6268, 7
          %v6270 = vsub.s32 0, %v6269
          %v6271 = vrot.slane %v6266, %v6270
          %v6281 = vcombine.low %v6254, %v6255
          %v6282 = vcombine.low %v6256, %v6257
          %v6283 = vcombine.low %v6258, %v6259
          %v6284 = vcombine.low %v6260, %v6261
          %v6286 = vunpack.c.l.s4 1966171168
          %v6287 = vunpack.c.0.s8 %v6286
          %v6288 = vlaneseq
          %v6289 = vshrl.u32 %v6288, 7
          %v6290 = vsub.s32 %v6287, %v6289
          %v6291 = vrot.slane %v6281, %v6290
          %v6293 = vunpack.c.l.s4 1966171168
          %v6294 = vunpack.c.0.s8 %v6293
          %v6295 = vlaneseq
          %v6296 = vshrl.u32 %v6295, 7
          %v6297 = vsub.s32 %v6294, %v6296
          %v6298 = vrot.slane %v6282, %v6297
          %v6300 = vunpack.c.l.s4 1966171168
          %v6301 = vunpack.c.0.s8 %v6300
          %v6302 = vlaneseq
          %v6303 = vshrl.u32 %v6302, 7
          %v6304 = vsub.s32 %v6301, %v6303
          %v6305 = vrot.slane %v6283, %v6304
          %v6307 = vunpack.c.l.s4 1966171168
          %v6308 = vunpack.c.0.s8 %v6307
          %v6309 = vlaneseq
          %v6310 = vshrl.u32 %v6309, 7
          %v6311 = vsub.s32 %v6308, %v6310
          %v6312 = vrot.slane %v6284, %v6311
          %v6313 = vcombine.low %v6291, %v6298
          %v6314 = vcombine.low %v6305, %v6312
          %v6316 = vunpack.c.l.s4 1966171168
          %v6317 = vunpack.c.0.s8 %v6316
          %v6318 = vlaneseq
          %v6319 = vshrl.u32 %v6318, 7
          %v6320 = vsub.s32 %v6317, %v6319
          %v6321 = vrot.slane %v6313, %v6320
          %v6323 = vunpack.c.l.s4 1966171168
          %v6324 = vunpack.c.0.s8 %v6323
          %v6325 = vlaneseq
          %v6326 = vshrl.u32 %v6325, 7
          %v6327 = vsub.s32 %v6324, %v6326
          %v6328 = vrot.slane %v6314, %v6327
          %v6329 = vcombine.low %v6321, %v6328
          %vm6330 = vcmask 261120
          %v6331 = vsel %vm6330, %v6329, 0
          %6333 = vmatprep.subr.mxu0 0.0
          %6334 = vmatpush1.msra.mxu0 %v6262
          %6335 = vmatprep.subr.mxu0 0.0
          %6336 = vmatpush1.msra.mxu0 %v6263
          %6337 = vmatprep.subr.mxu0 0.0
          %6338 = vmatpush1.msra.mxu0 %v6264
          %6339 = vmatprep.subr.mxu0 0.0
          %6340 = vmatpush1.msra.mxu0 %v6265
          %6341 = vmatprep.subr.mxu0 0.0
          %6342 = vmatpush1.msra.mxu0 0.0
          %6343 = vmatprep.subr.mxu0 0.0
          %6344 = vmatpush1.msra.mxu0 0.0
          %6345 = vmatprep.subr.mxu0 0.0
          %6346 = vmatpush1.msra.mxu0 0.0
          %6347 = vmatprep.subr.mxu0 0.0
          %6348 = vmatpush1.msra.mxu0 0.0
          %6349 = vmatprep.subr.mxu0 0.0
          %6350 = vmatpush1.msra.mxu0 0.0
          %6351 = vmatprep.subr.mxu0 0.0
          %6352 = vmatpush1.msra.mxu0 0.0
          %6353 = vmatprep.subr.mxu0 0.0
          %6354 = vmatpush1.msra.mxu0 0.0
          %6355 = vmatprep.subr.mxu0 0.0
          %6356 = vmatpush1.msra.mxu0 0.0
          %6357 = vmatprep.subr.mxu0 0.0
          %6358 = vmatpush1.msra.mxu0 0.0
          %6359 = vmatprep.subr.mxu0 0.0
          %6360 = vmatpush1.msra.mxu0 0.0
          %6361 = vmatprep.subr.mxu0 0.0
          %6362 = vmatpush1.msra.mxu0 0.0
          %6363 = vmatprep.subr.mxu0 0.0
          %6364 = vmatpush1.msra.mxu0 0.0
          %6365 = vmatprep.subr.mxu0 0.0
          %6366 = vmatpush1.msra.mxu0 0.0
          %6367 = vmatprep.subr.mxu0 0.0
          %6368 = vmatpush1.msra.mxu0 0.0
          %6369 = vmatprep.subr.mxu0 0.0
          %6370 = vmatpush1.msra.mxu0 0.0
          %6371 = vmatprep.subr.mxu0 0.0
          %6372 = vmatpush1.msra.mxu0 0.0
          %6373 = vmatprep.subr.mxu0 0.0
          %6374 = vmatpush1.msra.mxu0 0.0
          %6375 = vmatprep.subr.mxu0 0.0
          %6376 = vmatpush1.msra.mxu0 0.0
          %6377 = vmatprep.subr.mxu0 0.0
          %6378 = vmatpush1.msra.mxu0 0.0
          %6379 = vmatprep.subr.mxu0 0.0
          %6380 = vmatpush1.msra.mxu0 0.0
          %6381 = vmatprep.subr.mxu0 0.0
          %6382 = vmatpush1.msra.mxu0 0.0
          %6383 = vmatprep.subr.mxu0 0.0
          %6384 = vmatpush1.msra.mxu0 0.0
          %6385 = vmatprep.subr.mxu0 0.0
          %6386 = vmatpush1.msra.mxu0 0.0
          %6387 = vmatprep.subr.mxu0 0.0
          %6388 = vmatpush1.msra.mxu0 0.0
          %6389 = vmatprep.subr.mxu0 0.0
          %6390 = vmatpush1.msra.mxu0 0.0
          %6391 = vmatprep.subr.mxu0 0.0
          %6392 = vmatpush1.msra.mxu0 0.0
          %6393 = vmatprep.subr.mxu0 0.0
          %6394 = vmatpush1.msra.mxu0 0.0
          %6395 = vmatprep.subr.mxu0 0.0
          %6396 = vmatpush1.msra.mxu0 0.0
          %6397 = vmatprep.mubr.f32.mxu0 0.0
          %6398 = vmatmul.mubr.f32.gmra.mrb[0].mxu0 %v6331
          %v6399 = vpop.f32.mrb[0].mxu0
          %v6400 = vadd.f32 %v6271, %v6399
          %v6401 = vpop.f32.mrb[0].mxu0
          %6402 = vdwg.mxu0
          %v6403 = vxor.u32 %v6400, 2147483648
          %v6404 = vmul.f32 %v6403, 1.442695
          %v6405 = vpow.pop %v6404
          %v6406 = vadd.f32 %v6405, 1.0
          %v6407 = vrcp.pop %v6406
          %v6408 = vmul.f32 1.0, %v6407
          %6409 = vst [vmem:[%s283] sm:$0xff] %v6408
        $region48: #{tpu_custom_call.1} parent=39 // pred_fallthru
          _
        %s6410 = sand.u32 %s163, 1
        %s6411 = scalar_lea.sflag [#allocation4], %s6410
        %s6412 = sand.u32 %s163, 1
        %s6413 = smul.addr %s6412, 8
        %s6414 = scalar_lea.vmem [#allocation3], %s6413
        // Predicated region
        $region49: #{tpu_custom_call.1} parent=39 // pred_check
          %p6415 = pneg %p173
        $region50: #{tpu_custom_call.1} parent=39 // pred_check_branch
          %6417 = sbr.rel (%p6415) target = $region52
        $region51: #{tpu_custom_call.1} parent=39 // pred_region
          %s6419 = ssub.s32 128, 128
          %6420 = vsyncadd %s6411, %s6419
          %s6421 = smul.addr %s23, 128
          %s6422 = scalar_lea.hbm %s5, %s6421
          %s6424 = sshll.u32 %s6414, 4
          %s6425 = int_to_ptr.vmem [resolvable:$true] %s6424
          %6427 = dma.vmem_to_hbm [thread:$0]  %s6425, 128, %s6422, %s6411
        $region52: #{tpu_custom_call.1} parent=39 // pred_fallthru
          _
      $region40: #{tpu_custom_call.1} parent=5 // pred_fallthru
        _
      %p6428 = scmp.le.s32.totalorder 2, %s14
      // Predicated region
      $region53: #{tpu_custom_call.1} parent=5 // pred_check
        %p6429 = pneg %p6428
      $region54: #{tpu_custom_call.1} parent=5 // pred_check_branch
        %6431 = sbr.rel (%p6429) target = $region56
      $region55: #{tpu_custom_call.1} parent=5 // pred_region
        %s6432 = ssub.s32 %s14, 2
        // Predicated region
        $region57: #{tpu_custom_call.1} parent=55 // pred_check
          %p6433 = pneg %p179
        $region58: #{tpu_custom_call.1} parent=55 // pred_check_branch
          %6435 = sbr.rel (%p6433) target = $region60
        $region59: #{tpu_custom_call.1} parent=55 // pred_region
          %s6436 = sand.u32 %s164, 1
          %s6437 = scalar_lea.sflag [#allocation4], %s6436
          %s6438 = sand.u32 %s164, 1
          %s6439 = smul.addr %s6438, 8
          %s6440 = scalar_lea.vmem [#allocation3], %s6439
          %6441 = dma.done %s6437, 128
        $region60: #{tpu_custom_call.1} parent=55 // pred_fallthru
          _
      $region56: #{tpu_custom_call.1} parent=5 // pred_fallthru
        _
    $region6: #{tpu_custom_call.1} parent=1 // loop_footer
      %s18 = sadd.s32 1, %s14
    $region7: #{tpu_custom_call.1} parent=1 // loop_footer_branch
      %13 = sbr.rel target = $region3
    $region8: #{tpu_custom_call.1} parent=1 // loop_exit
      _
    %6442 = vsyncpa [#allocation4], 1
    %s6443 = scalar_lea.sflag [#allocation4], 1
    %6444 = vsyncpa %s6443, 1

</llo_original>
